<compile_context>
chip_gen: v7x
topology: tpu7x:2x2x1
jax: 0.10.0
libtpu: 0.0.40
codegen_flags: <defaults>
</compile_context>

<pallas_src>
import functools
import numpy as np

import jax
import jax.numpy as jnp
from jax.experimental import pallas as pl
from jax.experimental.pallas import tpu as pltpu

LN_EPS = 1e-5
_VMEM_LIMIT = 32 * 1024 * 1024


# ----------------------------------------------------------------------------
# Tiling helpers
# ----------------------------------------------------------------------------
def _pick_row_tile(m, target=512):
    """Largest multiple-of-8 divisor of m <= min(target, m//2) so the grid has
    >= 2 parallel steps when possible; falls back to the full m (always legal)."""
    cap = min(target, m // 2 if m >= 16 else m)
    best = None
    for t in range(8, cap + 1, 8):
        if m % t == 0:
            best = t
    return best if best is not None else m


def _pick_window_batch(n_windows, n_tokens, max_rows=256):
    """Largest divisor of n_windows whose row count (windows * tokens) fits the
    per-step row budget."""
    best = 1
    for d in range(1, n_windows + 1):
        if n_windows % d == 0 and d * n_tokens <= max_rows:
            best = d
    return best


# ----------------------------------------------------------------------------
# Pallas kernels
# ----------------------------------------------------------------------------
def _layernorm_kernel(x_ref, g_ref, b_ref, o_ref):
    x = x_ref[...]                                        # (TM, C) f32
    mean = jnp.mean(x, axis=-1, keepdims=True)
    var = jnp.mean((x - mean) ** 2, axis=-1, keepdims=True)
    xn = (x - mean) * jax.lax.rsqrt(var + LN_EPS)
    o_ref[...] = xn * g_ref[...] + b_ref[...]


def _res_ffn_kernel(sc_ref, br_ref, g_ref, b_ref, w1_ref, b1_ref, w2_ref, b2_ref,
                    o_ref):
    # x   = shortcut + attention_branch                (fused residual add)
    # out = x + Linear2(GELU(Linear1(LayerNorm(x))))   (dropout p=0 -> identity)
    x = sc_ref[...] + br_ref[...]                         # (TM, C) f32
    mean = jnp.mean(x, axis=-1, keepdims=True)
    var = jnp.mean((x - mean) ** 2, axis=-1, keepdims=True)
    xn = (x - mean) * jax.lax.rsqrt(var + LN_EPS) * g_ref[...] + b_ref[...]
    h = jnp.dot(xn.astype(jnp.bfloat16), w1_ref[...],
                preferred_element_type=jnp.float32) + b1_ref[...]
    h = jax.nn.gelu(h, approximate=False)                 # exact (erf) GELU = nn.GELU
    y = jnp.dot(h.astype(jnp.bfloat16), w2_ref[...],
                preferred_element_type=jnp.float32) + b2_ref[...]
    o_ref[...] = x + y


def _window_attn_kernel(x_ref, bm_ref, g_ref, bln_ref,
                        wq_ref, wk_ref, wv_ref, bq_ref, bk_ref, bv_ref,
                        wp_ref, bp_ref, o_ref, *, num_heads, fuse_ln):
    # x_ref: (1, WB, N, C)  -- WB windows per grid step
    wb = x_ref.shape[1]
    n = x_ref.shape[2]
    c = x_ref.shape[3]
    rows = wb * n

    x = x_ref[0].reshape(rows, c)                         # (rows, C) f32
    if fuse_ln:
        mean = jnp.mean(x, axis=-1, keepdims=True)
        var = jnp.mean((x - mean) ** 2, axis=-1, keepdims=True)
        x = (x - mean) * jax.lax.rsqrt(var + LN_EPS) * g_ref[...] + bln_ref[...]
    xb = x.astype(jnp.bfloat16)

    head_outs = []
    for h in range(num_heads):                            # static unroll (small)
        q = jnp.dot(xb, wq_ref[h], preferred_element_type=jnp.float32) + bq_ref[h]
        k = jnp.dot(xb, wk_ref[h], preferred_element_type=jnp.float32) + bk_ref[h]
        v = jnp.dot(xb, wv_ref[h], preferred_element_type=jnp.float32) + bv_ref[h]
        hd = q.shape[-1]
        q = q.reshape(wb, n, hd).astype(jnp.bfloat16)     # scale pre-folded into wq/bq
        k = k.reshape(wb, n, hd).astype(jnp.bfloat16)
        v = v.reshape(wb, n, hd).astype(jnp.bfloat16)

        s = jnp.einsum("wnd,wmd->wnm", q, k,
                       preferred_element_type=jnp.float32)        # (WB, N, N)
        s = s + bm_ref[h]                                 # (WB or 1, N, N) bias+mask
        s = s - jnp.max(s, axis=-1, keepdims=True)
        p = jnp.exp(s)
        p = p * pl.reciprocal(jnp.sum(p, axis=-1, keepdims=True), approx=True)
        oh = jnp.einsum("wnm,wmd->wnd", p.astype(jnp.bfloat16), v,
                        preferred_element_type=jnp.float32)       # (WB, N, hd)
        head_outs.append(oh)

    o = jnp.concatenate(head_outs, axis=-1).reshape(rows, c)      # (rows, C)
    y = jnp.dot(o.astype(jnp.bfloat16), wp_ref[...],
                preferred_element_type=jnp.float32) + bp_ref[...]
    o_ref[0] = y.reshape(wb, n, c)


# ----------------------------------------------------------------------------
# Pallas wrappers
# ----------------------------------------------------------------------------
def layernorm_pallas(x, gamma, beta):
    m, c = x.shape
    tm = _pick_row_tile(m)
    return pl.pallas_call(
        _layernorm_kernel,
        out_shape=jax.ShapeDtypeStruct((m, c), x.dtype),
        grid=(m // tm,),
        in_specs=[pl.BlockSpec((tm, c), lambda i: (i, 0)),
                  pl.BlockSpec((1, c), lambda i: (0, 0)),
                  pl.BlockSpec((1, c), lambda i: (0, 0))],
        out_specs=pl.BlockSpec((tm, c), lambda i: (i, 0)),
        compiler_params=pltpu.CompilerParams(
            dimension_semantics=("parallel",), vmem_limit_bytes=_VMEM_LIMIT),
    )(x, gamma.reshape(1, c), beta.reshape(1, c))


def res_ffn_pallas(shortcut, branch, gamma, beta, w1, b1, w2, b2):
    m, c = shortcut.shape
    hidden = w1.shape[1]
    tm = _pick_row_tile(m)
    return pl.pallas_call(
        _res_ffn_kernel,
        out_shape=jax.ShapeDtypeStruct((m, c), shortcut.dtype),
        grid=(m // tm,),
        in_specs=[pl.BlockSpec((tm, c), lambda i: (i, 0)),
                  pl.BlockSpec((tm, c), lambda i: (i, 0)),
                  pl.BlockSpec((1, c), lambda i: (0, 0)),
                  pl.BlockSpec((1, c), lambda i: (0, 0)),
                  pl.BlockSpec((c, hidden), lambda i: (0, 0)),
                  pl.BlockSpec((1, hidden), lambda i: (0, 0)),
                  pl.BlockSpec((hidden, c), lambda i: (0, 0)),
                  pl.BlockSpec((1, c), lambda i: (0, 0))],
        out_specs=pl.BlockSpec((tm, c), lambda i: (i, 0)),
        compiler_params=pltpu.CompilerParams(
            dimension_semantics=("parallel",), vmem_limit_bytes=_VMEM_LIMIT),
    )(shortcut, branch, gamma.reshape(1, c), beta.reshape(1, c),
      w1.astype(jnp.bfloat16), b1.reshape(1, hidden),
      w2.astype(jnp.bfloat16), b2.reshape(1, c))


def window_attention_pallas(x_win, bm, wqkv, bqkv, wproj, bproj,
                            num_heads, scale, gamma, beta, fuse_ln, batch, n_win):
    # x_win: (B*nW, N, C);  bm: (heads, nW or 1, N, N) fused bias(+shift mask)
    _, n, c = x_win.shape
    hd = c // num_heads
    x4 = x_win.reshape(batch, n_win, n, c)

    # Pre-split QKV weights / biases per head (head-major), bf16 for the MXU.
    # The q scale is folded into the Q weights/bias (one-time tiny host op).
    def _split(w_cols, s=1.0):
        w = w_cols.reshape(c, num_heads, hd).transpose(1, 0, 2)
        return (w * s).astype(jnp.bfloat16)
    wq = _split(wqkv[:, 0 * c:1 * c], scale)
    wk = _split(wqkv[:, 1 * c:2 * c])
    wv = _split(wqkv[:, 2 * c:3 * c])
    bq = (bqkv[0 * c:1 * c] * scale).reshape(num_heads, 1, hd)
    bk = bqkv[1 * c:2 * c].reshape(num_heads, 1, hd)
    bv = bqkv[2 * c:3 * c].reshape(num_heads, 1, hd)

    wbw = _pick_window_batch(n_win, n)
    grid = (batch, n_win // wbw)

    shifted = bm.shape[1] > 1
    wbw_bm = wbw if shifted else 1
    bm_idx = (lambda b, g: (0, g, 0, 0)) if shifted else (lambda b, g: (0, 0, 0, 0))

    kernel = functools.partial(_window_attn_kernel, num_heads=num_heads,
                               fuse_ln=fuse_ln)
    out = pl.pallas_call(
        kernel,
        out_shape=jax.ShapeDtypeStruct((batch, n_win, n, c), x_win.dtype),
        grid=grid,
        in_specs=[
            pl.BlockSpec((1, wbw, n, c), lambda b, g: (b, g, 0, 0)),
            pl.BlockSpec((num_heads, wbw_bm, n, n), bm_idx),
            pl.BlockSpec((1, c), lambda b, g: (0, 0)),
            pl.BlockSpec((1, c), lambda b, g: (0, 0)),
            pl.BlockSpec((num_heads, c, hd), lambda b, g: (0, 0, 0)),
            pl.BlockSpec((num_heads, c, hd), lambda b, g: (0, 0, 0)),
            pl.BlockSpec((num_heads, c, hd), lambda b, g: (0, 0, 0)),
            pl.BlockSpec((num_heads, 1, hd), lambda b, g: (0, 0, 0)),
            pl.BlockSpec((num_heads, 1, hd), lambda b, g: (0, 0, 0)),
            pl.BlockSpec((num_heads, 1, hd), lambda b, g: (0, 0, 0)),
            pl.BlockSpec((c, c), lambda b, g: (0, 0)),
            pl.BlockSpec((1, c), lambda b, g: (0, 0)),
        ],
        out_specs=pl.BlockSpec((1, wbw, n, c), lambda b, g: (b, g, 0, 0)),
        compiler_params=pltpu.CompilerParams(
            dimension_semantics=("parallel", "parallel"),
            vmem_limit_bytes=_VMEM_LIMIT),
    )(x4, bm, gamma.reshape(1, c), beta.reshape(1, c),
      wq, wk, wv, bq, bk, bv, wproj.astype(jnp.bfloat16), bproj.reshape(1, c))
    return out.reshape(batch * n_win, n, c)


# ----------------------------------------------------------------------------
# Glue (pure JAX / numpy): windowing, masks, relative position index
# ----------------------------------------------------------------------------
def window_partition_jax(x, w):
    B, H, W, C = x.shape
    x = x.reshape(B, H // w, w, W // w, w, C)
    return x.transpose(0, 1, 3, 2, 4, 5).reshape(-1, w, w, C)


def window_reverse_jax(windows, w, H, W):
    B = windows.shape[0] // ((H // w) * (W // w))
    x = windows.reshape(B, H // w, W // w, w, w, -1)
    return x.transpose(0, 1, 3, 2, 4, 5).reshape(B, H, W, -1)


def relative_position_index(w):
    coords = np.stack(np.meshgrid(np.arange(w), np.arange(w), indexing="ij"))
    coords_flatten = coords.reshape(2, -1)
    rel = coords_flatten[:, :, None] - coords_flatten[:, None, :]
    rel = rel.transpose(1, 2, 0).copy()
    rel[:, :, 0] += w - 1
    rel[:, :, 1] += w - 1
    rel[:, :, 0] *= 2 * w - 1
    return rel.sum(-1)                                    # (N, N) int


def build_shift_attn_mask(Hp, Wp, w, shift):
    img_mask = np.zeros((1, Hp, Wp, 1), np.float32)
    h_slices = (slice(0, -w), slice(-w, -shift), slice(-shift, None))
    w_slices = (slice(0, -w), slice(-w, -shift), slice(-shift, None))
    cnt = 0
    for hs in h_slices:
        for ws in w_slices:
            img_mask[:, hs, ws, :] = cnt
            cnt += 1
    mw = window_partition_jax(jnp.asarray(img_mask), w).reshape(-1, w * w)
    attn_mask = mw[:, None, :] - mw[:, :, None]
    return jnp.where(attn_mask != 0, -100.0, 0.0).astype(jnp.float32)  # (nW, N, N)


# ----------------------------------------------------------------------------
# SwinBlock / TransformerLayer forward (kernels inside, glue outside)
# ----------------------------------------------------------------------------
def swin_block_forward(x, H, W, p, num_heads, window_size, shift_size, shift_mask,
                       rel_idx, use_pallas=True):
    B, L, C = x.shape
    w = window_size
    N = w * w
    head_dim = C // num_heads
    scale = head_dim ** (-0.5)

    shortcut = x
    pad_r = (w - W % w) % w
    pad_b = (w - H % w) % w
    Hp, Wp = H + pad_b, W + pad_r
    nW = (Hp // w) * (Wp // w)

    bias = p["rpb_table"][rel_idx.reshape(-1)].reshape(N, N, num_heads)
    bias = jnp.transpose(bias, (2, 0, 1)).astype(jnp.float32)        # (heads, N, N)

    if use_pallas:
        # Fuse LayerNorm into the attention kernel when no spatial padding is
        # needed (roll / window-partition commute with per-token LN); otherwise
        # apply LN first so padded tokens stay exactly zero as in the module.
        fuse_ln = (pad_r == 0 and pad_b == 0)
        if fuse_ln:
            xn = x.reshape(B, H, W, C)
        else:
            xn = layernorm_pallas(x.reshape(B * L, C), p["g1"], p["b1"])
            xn = xn.reshape(B, H, W, C)
            xn = jnp.pad(xn, ((0, 0), (0, pad_b), (0, pad_r), (0, 0)))

        if shift_size > 0:
            shifted = jnp.roll(xn, shift=(-shift_size, -shift_size), axis=(1, 2))
            bm = bias[:, None, :, :] + shift_mask[None, :, :, :]     # (heads, nW, N, N)
        else:
            shifted = xn
            bm = bias[:, None, :, :]                                 # (heads, 1, N, N)

        x_windows = window_partition_jax(shifted, w).reshape(-1, N, C)
        attn_out = window_attention_pallas(
            x_windows, bm, p["wqkv"], p["bqkv"], p["wproj"], p["bproj"],
            num_heads, scale, p["g1"], p["b1"], fuse_ln, B, nW)
    else:
        xf = x.reshape(B * L, C)
        mean = jnp.mean(xf, -1, keepdims=True)
        var = jnp.mean((xf - mean) ** 2, -1, keepdims=True)
        xn = ((xf - mean) * jax.lax.rsqrt(var + LN_EPS) * p["g1"] + p["b1"])
        xn = xn.reshape(B, H, W, C)
        xn = jnp.pad(xn, ((0, 0), (0, pad_b), (0, pad_r), (0, 0)))
        if shift_size > 0:
            shifted = jnp.roll(xn, shift=(-shift_size, -shift_size), axis=(1, 2))
            mask = jnp.tile(shift_mask, (B, 1, 1))
        else:
            shifted = xn
            mask = jnp.zeros((B * nW, N, N), jnp.float32)
        x_windows = window_partition_jax(shifted, w).reshape(-1, N, C)
        nWtot = x_windows.shape[0]
        qkv = x_windows @ p["wqkv"] + p["bqkv"]
        qkv = qkv.reshape(nWtot, N, 3, num_heads, head_dim).transpose(2, 0, 3, 1, 4)
        q, k, v = qkv[0] * scale, qkv[1], qkv[2]
        a = jnp.einsum("whnd,whmd->whnm", q, k) + bias[None] + mask[:, None]
        a = jax.nn.softmax(a, axis=-1)
        o = jnp.einsum("whnm,whmd->whnd", a, v).transpose(0, 2, 1, 3).reshape(nWtot, N, C)
        attn_out = o @ p["wproj"] + p["bproj"]

    attn_out = attn_out.reshape(-1, w, w, C)
    shifted = window_reverse_jax(attn_out, w, Hp, Wp)
    if shift_size > 0:
        xr = jnp.roll(shifted, shift=(shift_size, shift_size), axis=(1, 2))
    else:
        xr = shifted
    xr = xr[:, :H, :W, :].reshape(B, H * W, C)

    if use_pallas:
        # Residual add (shortcut + attn branch) fused into the FFN kernel.
        x = res_ffn_pallas(shortcut.reshape(B * L, C), xr.reshape(B * L, C),
                           p["g2"], p["b2"], p["w1"], p["b1f"],
                           p["w2"], p["b2f"]).reshape(B, L, C)
    else:
        x = shortcut + xr
        xf = x.reshape(B * L, C)
        mean = jnp.mean(xf, -1, keepdims=True)
        var = jnp.mean((xf - mean) ** 2, -1, keepdims=True)
        ln = (xf - mean) * jax.lax.rsqrt(var + LN_EPS) * p["g2"] + p["b2"]
        h = jax.nn.gelu(ln @ p["w1"] + p["b1f"], approximate=False)
        x = (xf + h @ p["w2"] + p["b2f"]).reshape(B, L, C)
    return x


def transformer_layer_forward(x, H, W, params, num_heads, window_size,
                              use_pallas=True):
    # scale=None in the module -> no PatchMerge/PatchSplit; returns (x, H, W).
    w = window_size
    shift = w // 2
    Hp = int(np.ceil(H / w)) * w
    Wp = int(np.ceil(W / w)) * w
    shift_mask = build_shift_attn_mask(Hp, Wp, w, shift)
    rel_idx = relative_position_index(w)
    for i, p in enumerate(params):
        shift_size = 0 if i % 2 == 0 else shift
        x = swin_block_forward(x, H, W, p, num_heads, w, shift_size, shift_mask,
                               rel_idx, use_pallas=use_pallas)
    return x, H, W


# ----------------------------------------------------------------------------
# Deterministic parameter init (synthetic; matches module shapes)
# ----------------------------------------------------------------------------
def init_block_params(key, C, num_heads, hidden, w):
    ks = jax.random.split(key, 6)
    f32 = jnp.float32
    return {
        "g1": jnp.ones((C,), f32), "b1": jnp.zeros((C,), f32),
        "wqkv": 0.02 * jax.random.normal(ks[0], (C, 3 * C), f32),
        "bqkv": jnp.zeros((3 * C,), f32),
        "wproj": 0.02 * jax.random.normal(ks[1], (C, C), f32),
        "bproj": jnp.zeros((C,), f32),
        "rpb_table": 0.02 * jax.random.normal(ks[2], ((2 * w - 1) ** 2, num_heads), f32),
        "g2": jnp.ones((C,), f32), "b2": jnp.zeros((C,), f32),
        "w1": 0.02 * jax.random.normal(ks[3], (C, hidden), f32),
        "b1f": jnp.zeros((hidden,), f32),
        "w2": 0.02 * jax.random.normal(ks[4], (hidden, C), f32),
        "b2f": jnp.zeros((C,), f32),
    }


# ----------------------------------------------------------------------------
if __name__ == "__main__":
    B, H, W = 2, 8, 8
    C = 32               # in_dim
    num_heads = 4
    window_size = 4
    depth = 2
    mlp_ratio = 2.0
    hidden = int(C * mlp_ratio)

    key = jax.random.PRNGKey(0)
    kx, kp = jax.random.split(key)
    x = jax.random.normal(kx, (B, H * W, C), jnp.float32)
    params = [init_block_params(k, C, num_heads, hidden, window_size)
              for k in jax.random.split(kp, depth)]

    out, Ho, Wo = transformer_layer_forward(x, H, W, params, num_heads, window_size,
                                            use_pallas=True)
    out = jax.block_until_ready(out)

    # Pure-JAX f32 reference for sanity check of the Pallas path.
    ref, _, _ = transformer_layer_forward(x, H, W, params, num_heads, window_size,
                                          use_pallas=False)
    ref = jax.block_until_ready(ref)

    np.testing.assert_allclose(np.asarray(out), np.asarray(ref), rtol=2e-2, atol=2e-2)
    assert out.shape == (B, H * W, C) and (Ho, Wo) == (H, W)
    print("KERNEL_OK")
</pallas_src>

<mosaic_0001>
module attributes {stable_mosaic.version = 11 : i64} {
  func.func @_window_attn_kernel(%arg0: i32, %arg1: i32, %arg2: memref<1x4x16x32xf32, #tpu.memory_space<vmem>>, %arg3: memref<4x1x16x16xf32, #tpu.memory_space<vmem>>, %arg4: memref<1x32xf32, #tpu.memory_space<vmem>>, %arg5: memref<1x32xf32, #tpu.memory_space<vmem>>, %arg6: memref<4x32x8xbf16, #tpu.memory_space<vmem>>, %arg7: memref<4x32x8xbf16, #tpu.memory_space<vmem>>, %arg8: memref<4x32x8xbf16, #tpu.memory_space<vmem>>, %arg9: memref<4x1x8xf32, #tpu.memory_space<vmem>>, %arg10: memref<4x1x8xf32, #tpu.memory_space<vmem>>, %arg11: memref<4x1x8xf32, #tpu.memory_space<vmem>>, %arg12: memref<32x32xbf16, #tpu.memory_space<vmem>>, %arg13: memref<1x32xf32, #tpu.memory_space<vmem>>, %arg14: memref<1x4x16x32xf32, #tpu.memory_space<vmem>>) attributes {dimension_semantics = [#tpu.dimension_semantics<parallel>, #tpu.dimension_semantics<parallel>], iteration_bounds = array<i64: 2, 1>, scalar_prefetch = 0 : i64, scratch_operands = 0 : i64, tpu.core_type = #tpu.core_type<tc>, window_params = [{transform_indices = @transform_0, window_bounds = array<i64: 1, 4, 16, 32>}, {pipeline_mode = #tpu.pipeline_mode<synchronous>, transform_indices = @transform_1, window_bounds = array<i64: 4, 1, 16, 16>}, {pipeline_mode = #tpu.pipeline_mode<synchronous>, transform_indices = @transform_2, window_bounds = array<i64: 1, 32>}, {pipeline_mode = #tpu.pipeline_mode<synchronous>, transform_indices = @transform_3, window_bounds = array<i64: 1, 32>}, {pipeline_mode = #tpu.pipeline_mode<synchronous>, transform_indices = @transform_4, window_bounds = array<i64: 4, 32, 8>}, {pipeline_mode = #tpu.pipeline_mode<synchronous>, transform_indices = @transform_5, window_bounds = array<i64: 4, 32, 8>}, {pipeline_mode = #tpu.pipeline_mode<synchronous>, transform_indices = @transform_6, window_bounds = array<i64: 4, 32, 8>}, {pipeline_mode = #tpu.pipeline_mode<synchronous>, transform_indices = @transform_7, window_bounds = array<i64: 4, 1, 8>}, {pipeline_mode = #tpu.pipeline_mode<synchronous>, transform_indices = @transform_8, window_bounds = array<i64: 4, 1, 8>}, {pipeline_mode = #tpu.pipeline_mode<synchronous>, transform_indices = @transform_9, window_bounds = array<i64: 4, 1, 8>}, {pipeline_mode = #tpu.pipeline_mode<synchronous>, transform_indices = @transform_10, window_bounds = array<i64: 32, 32>}, {pipeline_mode = #tpu.pipeline_mode<synchronous>, transform_indices = @transform_11, window_bounds = array<i64: 1, 32>}, {transform_indices = @transform_12, window_bounds = array<i64: 1, 4, 16, 32>}]} {
    %c0 = arith.constant 0 : index
    %c0_0 = arith.constant 0 : index
    %c0_1 = arith.constant 0 : index
    %c0_2 = arith.constant 0 : index
    %0 = vector.load %arg2[%c0, %c0_0, %c0_1, %c0_2] : memref<1x4x16x32xf32, #tpu.memory_space<vmem>>, vector<1x4x16x32xf32>
    %1 = vector.shape_cast %0 : vector<1x4x16x32xf32> to vector<4x16x32xf32>
    %2 = vector.shape_cast %1 : vector<4x16x32xf32> to vector<64x32xf32>
    %cst = arith.constant dense<0.000000e+00> : vector<64xf32>
    %3 = vector.multi_reduction <add>, %2, %cst [1] : vector<64x32xf32> to vector<64xf32>
    %4 = vector.shape_cast %3 : vector<64xf32> to vector<64x1xf32>
    %cst_3 = arith.constant 3.200000e+01 : f32
    %5 = vector.broadcast %cst_3 : f32 to vector<64x1xf32>
    %6 = arith.divf %4, %5 : vector<64x1xf32>
    %7 = vector.broadcast %6 : vector<64x1xf32> to vector<64x32xf32>
    %8 = arith.subf %2, %7 : vector<64x32xf32>
    %9 = arith.mulf %8, %8 : vector<64x32xf32>
    %cst_4 = arith.constant dense<0.000000e+00> : vector<64xf32>
    %10 = vector.multi_reduction <add>, %9, %cst_4 [1] : vector<64x32xf32> to vector<64xf32>
    %11 = vector.shape_cast %10 : vector<64xf32> to vector<64x1xf32>
    %cst_5 = arith.constant 3.200000e+01 : f32
    %12 = vector.broadcast %cst_5 : f32 to vector<64x1xf32>
    %13 = arith.divf %11, %12 : vector<64x1xf32>
    %14 = vector.broadcast %6 : vector<64x1xf32> to vector<64x32xf32>
    %15 = arith.subf %2, %14 : vector<64x32xf32>
    %cst_6 = arith.constant 9.99999974E-6 : f32
    %16 = vector.broadcast %cst_6 : f32 to vector<64x1xf32>
    %17 = arith.addf %13, %16 : vector<64x1xf32>
    %18 = math.rsqrt %17 : vector<64x1xf32>
    %19 = vector.broadcast %18 : vector<64x1xf32> to vector<64x32xf32>
    %20 = arith.mulf %15, %19 : vector<64x32xf32>
    %c0_7 = arith.constant 0 : index
    %c0_8 = arith.constant 0 : index
    %21 = vector.load %arg4[%c0_7, %c0_8] : memref<1x32xf32, #tpu.memory_space<vmem>>, vector<1x32xf32>
    %22 = vector.broadcast %21 : vector<1x32xf32> to vector<64x32xf32>
    %23 = arith.mulf %20, %22 : vector<64x32xf32>
    %c0_9 = arith.constant 0 : index
    %c0_10 = arith.constant 0 : index
    %24 = vector.load %arg5[%c0_9, %c0_10] : memref<1x32xf32, #tpu.memory_space<vmem>>, vector<1x32xf32>
    %25 = vector.broadcast %24 : vector<1x32xf32> to vector<64x32xf32>
    %26 = arith.addf %23, %25 : vector<64x32xf32>
    %27 = arith.truncf %26 : vector<64x32xf32> to vector<64x32xbf16>
    %c0_11 = arith.constant 0 : index
    %c0_12 = arith.constant 0 : index
    %c0_13 = arith.constant 0 : index
    %28 = vector.load %arg6[%c0_11, %c0_12, %c0_13] : memref<4x32x8xbf16, #tpu.memory_space<vmem>>, vector<1x32x8xbf16>
    %29 = vector.shape_cast %28 : vector<1x32x8xbf16> to vector<32x8xbf16>
    %cst_14 = arith.constant dense<0.000000e+00> : vector<64x8xf32>
    %30 = tpu.matmul %27, %29, %cst_14 {dimension_numbers = #tpu.dot_dimension_numbers<[1], [0], [0], [1], [0, 0, 1, 1], [], []>} : vector<64x32xbf16>, vector<32x8xbf16>, vector<64x8xf32> -> vector<64x8xf32>
    %c0_15 = arith.constant 0 : index
    %c0_16 = arith.constant 0 : index
    %c0_17 = arith.constant 0 : index
    %31 = vector.load %arg9[%c0_15, %c0_16, %c0_17] : memref<4x1x8xf32, #tpu.memory_space<vmem>>, vector<1x1x8xf32>
    %32 = vector.shape_cast %31 : vector<1x1x8xf32> to vector<1x8xf32>
    %33 = vector.broadcast %32 : vector<1x8xf32> to vector<64x8xf32>
    %34 = arith.addf %30, %33 : vector<64x8xf32>
    %c0_18 = arith.constant 0 : index
    %c0_19 = arith.constant 0 : index
    %c0_20 = arith.constant 0 : index
    %35 = vector.load %arg7[%c0_18, %c0_19, %c0_20] : memref<4x32x8xbf16, #tpu.memory_space<vmem>>, vector<1x32x8xbf16>
    %36 = vector.shape_cast %35 : vector<1x32x8xbf16> to vector<32x8xbf16>
    %cst_21 = arith.constant dense<0.000000e+00> : vector<64x8xf32>
    %37 = tpu.matmul %27, %36, %cst_21 {dimension_numbers = #tpu.dot_dimension_numbers<[1], [0], [0], [1], [0, 0, 1, 1], [], []>} : vector<64x32xbf16>, vector<32x8xbf16>, vector<64x8xf32> -> vector<64x8xf32>
    %c0_22 = arith.constant 0 : index
    %c0_23 = arith.constant 0 : index
    %c0_24 = arith.constant 0 : index
    %38 = vector.load %arg10[%c0_22, %c0_23, %c0_24] : memref<4x1x8xf32, #tpu.memory_space<vmem>>, vector<1x1x8xf32>
    %39 = vector.shape_cast %38 : vector<1x1x8xf32> to vector<1x8xf32>
    %40 = vector.broadcast %39 : vector<1x8xf32> to vector<64x8xf32>
    %41 = arith.addf %37, %40 : vector<64x8xf32>
    %c0_25 = arith.constant 0 : index
    %c0_26 = arith.constant 0 : index
    %c0_27 = arith.constant 0 : index
    %42 = vector.load %arg8[%c0_25, %c0_26, %c0_27] : memref<4x32x8xbf16, #tpu.memory_space<vmem>>, vector<1x32x8xbf16>
    %43 = vector.shape_cast %42 : vector<1x32x8xbf16> to vector<32x8xbf16>
    %cst_28 = arith.constant dense<0.000000e+00> : vector<64x8xf32>
    %44 = tpu.matmul %27, %43, %cst_28 {dimension_numbers = #tpu.dot_dimension_numbers<[1], [0], [0], [1], [0, 0, 1, 1], [], []>} : vector<64x32xbf16>, vector<32x8xbf16>, vector<64x8xf32> -> vector<64x8xf32>
    %c0_29 = arith.constant 0 : index
    %c0_30 = arith.constant 0 : index
    %c0_31 = arith.constant 0 : index
    %45 = vector.load %arg11[%c0_29, %c0_30, %c0_31] : memref<4x1x8xf32, #tpu.memory_space<vmem>>, vector<1x1x8xf32>
    %46 = vector.shape_cast %45 : vector<1x1x8xf32> to vector<1x8xf32>
    %47 = vector.broadcast %46 : vector<1x8xf32> to vector<64x8xf32>
    %48 = arith.addf %44, %47 : vector<64x8xf32>
    %49 = vector.shape_cast %34 : vector<64x8xf32> to vector<4x16x8xf32>
    %50 = arith.truncf %49 : vector<4x16x8xf32> to vector<4x16x8xbf16>
    %51 = vector.shape_cast %41 : vector<64x8xf32> to vector<4x16x8xf32>
    %52 = arith.truncf %51 : vector<4x16x8xf32> to vector<4x16x8xbf16>
    %53 = vector.shape_cast %48 : vector<64x8xf32> to vector<4x16x8xf32>
    %54 = arith.truncf %53 : vector<4x16x8xf32> to vector<4x16x8xbf16>
    "tpu.trace_start"() <{level = 10 : i32, message = "wnd,wmd->wnm"}> : () -> ()
    %cst_32 = arith.constant dense<0.000000e+00> : vector<4x16x16xf32>
    %55 = tpu.matmul %50, %52, %cst_32 {dimension_numbers = #tpu.dot_dimension_numbers<[2], [2], [1], [1], [0, 0, 0, 1, 1, 1], [0], [0]>} : vector<4x16x8xbf16>, vector<4x16x8xbf16>, vector<4x16x16xf32> -> vector<4x16x16xf32>
    "tpu.trace_stop"() : () -> ()
    %c0_33 = arith.constant 0 : index
    %c0_34 = arith.constant 0 : index
    %c0_35 = arith.constant 0 : index
    %c0_36 = arith.constant 0 : index
    %56 = vector.load %arg3[%c0_33, %c0_34, %c0_35, %c0_36] : memref<4x1x16x16xf32, #tpu.memory_space<vmem>>, vector<1x1x16x16xf32>
    %57 = vector.shape_cast %56 : vector<1x1x16x16xf32> to vector<1x16x16xf32>
    %58 = vector.broadcast %57 : vector<1x16x16xf32> to vector<4x16x16xf32>
    %59 = arith.addf %55, %58 : vector<4x16x16xf32>
    %cst_37 = arith.constant dense<0xFF800000> : vector<4x16xf32>
    %60 = vector.multi_reduction <maximumf>, %59, %cst_37 [2] : vector<4x16x16xf32> to vector<4x16xf32>
    %61 = vector.shape_cast %60 : vector<4x16xf32> to vector<4x16x1xf32>
    %62 = vector.broadcast %61 : vector<4x16x1xf32> to vector<4x16x16xf32>
    %63 = arith.subf %59, %62 : vector<4x16x16xf32>
    %64 = math.exp %63 : vector<4x16x16xf32>
    %cst_38 = arith.constant dense<0.000000e+00> : vector<4x16xf32>
    %65 = vector.multi_reduction <add>, %64, %cst_38 [2] : vector<4x16x16xf32> to vector<4x16xf32>
    %66 = vector.shape_cast %65 : vector<4x16xf32> to vector<4x16x1xf32>
    %67 = tpu.reciprocal %66 {approx = true} : vector<4x16x1xf32> -> vector<4x16x1xf32>
    %68 = vector.broadcast %67 : vector<4x16x1xf32> to vector<4x16x16xf32>
    %69 = arith.mulf %64, %68 : vector<4x16x16xf32>
    %70 = arith.truncf %69 : vector<4x16x16xf32> to vector<4x16x16xbf16>
    "tpu.trace_start"() <{level = 10 : i32, message = "wnm,wmd->wnd"}> : () -> ()
    %cst_39 = arith.constant dense<0.000000e+00> : vector<4x16x8xf32>
    %71 = tpu.matmul %70, %54, %cst_39 {dimension_numbers = #tpu.dot_dimension_numbers<[2], [1], [1], [2], [0, 0, 0, 1, 1, 2], [0], [0]>} : vector<4x16x16xbf16>, vector<4x16x8xbf16>, vector<4x16x8xf32> -> vector<4x16x8xf32>
    "tpu.trace_stop"() : () -> ()
    %c1 = arith.constant 1 : index
    %c0_40 = arith.constant 0 : index
    %c0_41 = arith.constant 0 : index
    %72 = vector.load %arg6[%c1, %c0_40, %c0_41] : memref<4x32x8xbf16, #tpu.memory_space<vmem>>, vector<1x32x8xbf16>
    %73 = vector.shape_cast %72 : vector<1x32x8xbf16> to vector<32x8xbf16>
    %cst_42 = arith.constant dense<0.000000e+00> : vector<64x8xf32>
    %74 = tpu.matmul %27, %73, %cst_42 {dimension_numbers = #tpu.dot_dimension_numbers<[1], [0], [0], [1], [0, 0, 1, 1], [], []>} : vector<64x32xbf16>, vector<32x8xbf16>, vector<64x8xf32> -> vector<64x8xf32>
    %c1_43 = arith.constant 1 : index
    %c0_44 = arith.constant 0 : index
    %c0_45 = arith.constant 0 : index
    %75 = vector.load %arg9[%c1_43, %c0_44, %c0_45] : memref<4x1x8xf32, #tpu.memory_space<vmem>>, vector<1x1x8xf32>
    %76 = vector.shape_cast %75 : vector<1x1x8xf32> to vector<1x8xf32>
    %77 = vector.broadcast %76 : vector<1x8xf32> to vector<64x8xf32>
    %78 = arith.addf %74, %77 : vector<64x8xf32>
    %c1_46 = arith.constant 1 : index
    %c0_47 = arith.constant 0 : index
    %c0_48 = arith.constant 0 : index
    %79 = vector.load %arg7[%c1_46, %c0_47, %c0_48] : memref<4x32x8xbf16, #tpu.memory_space<vmem>>, vector<1x32x8xbf16>
    %80 = vector.shape_cast %79 : vector<1x32x8xbf16> to vector<32x8xbf16>
    %cst_49 = arith.constant dense<0.000000e+00> : vector<64x8xf32>
    %81 = tpu.matmul %27, %80, %cst_49 {dimension_numbers = #tpu.dot_dimension_numbers<[1], [0], [0], [1], [0, 0, 1, 1], [], []>} : vector<64x32xbf16>, vector<32x8xbf16>, vector<64x8xf32> -> vector<64x8xf32>
    %c1_50 = arith.constant 1 : index
    %c0_51 = arith.constant 0 : index
    %c0_52 = arith.constant 0 : index
    %82 = vector.load %arg10[%c1_50, %c0_51, %c0_52] : memref<4x1x8xf32, #tpu.memory_space<vmem>>, vector<1x1x8xf32>
    %83 = vector.shape_cast %82 : vector<1x1x8xf32> to vector<1x8xf32>
    %84 = vector.broadcast %83 : vector<1x8xf32> to vector<64x8xf32>
    %85 = arith.addf %81, %84 : vector<64x8xf32>
    %c1_53 = arith.constant 1 : index
    %c0_54 = arith.constant 0 : index
    %c0_55 = arith.constant 0 : index
    %86 = vector.load %arg8[%c1_53, %c0_54, %c0_55] : memref<4x32x8xbf16, #tpu.memory_space<vmem>>, vector<1x32x8xbf16>
    %87 = vector.shape_cast %86 : vector<1x32x8xbf16> to vector<32x8xbf16>
    %cst_56 = arith.constant dense<0.000000e+00> : vector<64x8xf32>
    %88 = tpu.matmul %27, %87, %cst_56 {dimension_numbers = #tpu.dot_dimension_numbers<[1], [0], [0], [1], [0, 0, 1, 1], [], []>} : vector<64x32xbf16>, vector<32x8xbf16>, vector<64x8xf32> -> vector<64x8xf32>
    %c1_57 = arith.constant 1 : index
    %c0_58 = arith.constant 0 : index
    %c0_59 = arith.constant 0 : index
    %89 = vector.load %arg11[%c1_57, %c0_58, %c0_59] : memref<4x1x8xf32, #tpu.memory_space<vmem>>, vector<1x1x8xf32>
    %90 = vector.shape_cast %89 : vector<1x1x8xf32> to vector<1x8xf32>
    %91 = vector.broadcast %90 : vector<1x8xf32> to vector<64x8xf32>
    %92 = arith.addf %88, %91 : vector<64x8xf32>
    %93 = vector.shape_cast %78 : vector<64x8xf32> to vector<4x16x8xf32>
    %94 = arith.truncf %93 : vector<4x16x8xf32> to vector<4x16x8xbf16>
    %95 = vector.shape_cast %85 : vector<64x8xf32> to vector<4x16x8xf32>
    %96 = arith.truncf %95 : vector<4x16x8xf32> to vector<4x16x8xbf16>
    %97 = vector.shape_cast %92 : vector<64x8xf32> to vector<4x16x8xf32>
    %98 = arith.truncf %97 : vector<4x16x8xf32> to vector<4x16x8xbf16>
    "tpu.trace_start"() <{level = 10 : i32, message = "wnd,wmd->wnm"}> : () -> ()
    %cst_60 = arith.constant dense<0.000000e+00> : vector<4x16x16xf32>
    %99 = tpu.matmul %94, %96, %cst_60 {dimension_numbers = #tpu.dot_dimension_numbers<[2], [2], [1], [1], [0, 0, 0, 1, 1, 1], [0], [0]>} : vector<4x16x8xbf16>, vector<4x16x8xbf16>, vector<4x16x16xf32> -> vector<4x16x16xf32>
    "tpu.trace_stop"() : () -> ()
    %c1_61 = arith.constant 1 : index
    %c0_62 = arith.constant 0 : index
    %c0_63 = arith.constant 0 : index
    %c0_64 = arith.constant 0 : index
    %100 = vector.load %arg3[%c1_61, %c0_62, %c0_63, %c0_64] : memref<4x1x16x16xf32, #tpu.memory_space<vmem>>, vector<1x1x16x16xf32>
    %101 = vector.shape_cast %100 : vector<1x1x16x16xf32> to vector<1x16x16xf32>
    %102 = vector.broadcast %101 : vector<1x16x16xf32> to vector<4x16x16xf32>
    %103 = arith.addf %99, %102 : vector<4x16x16xf32>
    %cst_65 = arith.constant dense<0xFF800000> : vector<4x16xf32>
    %104 = vector.multi_reduction <maximumf>, %103, %cst_65 [2] : vector<4x16x16xf32> to vector<4x16xf32>
    %105 = vector.shape_cast %104 : vector<4x16xf32> to vector<4x16x1xf32>
    %106 = vector.broadcast %105 : vector<4x16x1xf32> to vector<4x16x16xf32>
    %107 = arith.subf %103, %106 : vector<4x16x16xf32>
    %108 = math.exp %107 : vector<4x16x16xf32>
    %cst_66 = arith.constant dense<0.000000e+00> : vector<4x16xf32>
    %109 = vector.multi_reduction <add>, %108, %cst_66 [2] : vector<4x16x16xf32> to vector<4x16xf32>
    %110 = vector.shape_cast %109 : vector<4x16xf32> to vector<4x16x1xf32>
    %111 = tpu.reciprocal %110 {approx = true} : vector<4x16x1xf32> -> vector<4x16x1xf32>
    %112 = vector.broadcast %111 : vector<4x16x1xf32> to vector<4x16x16xf32>
    %113 = arith.mulf %108, %112 : vector<4x16x16xf32>
    %114 = arith.truncf %113 : vector<4x16x16xf32> to vector<4x16x16xbf16>
    "tpu.trace_start"() <{level = 10 : i32, message = "wnm,wmd->wnd"}> : () -> ()
    %cst_67 = arith.constant dense<0.000000e+00> : vector<4x16x8xf32>
    %115 = tpu.matmul %114, %98, %cst_67 {dimension_numbers = #tpu.dot_dimension_numbers<[2], [1], [1], [2], [0, 0, 0, 1, 1, 2], [0], [0]>} : vector<4x16x16xbf16>, vector<4x16x8xbf16>, vector<4x16x8xf32> -> vector<4x16x8xf32>
    "tpu.trace_stop"() : () -> ()
    %c2 = arith.constant 2 : index
    %c0_68 = arith.constant 0 : index
    %c0_69 = arith.constant 0 : index
    %116 = vector.load %arg6[%c2, %c0_68, %c0_69] : memref<4x32x8xbf16, #tpu.memory_space<vmem>>, vector<1x32x8xbf16>
    %117 = vector.shape_cast %116 : vector<1x32x8xbf16> to vector<32x8xbf16>
    %cst_70 = arith.constant dense<0.000000e+00> : vector<64x8xf32>
    %118 = tpu.matmul %27, %117, %cst_70 {dimension_numbers = #tpu.dot_dimension_numbers<[1], [0], [0], [1], [0, 0, 1, 1], [], []>} : vector<64x32xbf16>, vector<32x8xbf16>, vector<64x8xf32> -> vector<64x8xf32>
    %c2_71 = arith.constant 2 : index
    %c0_72 = arith.constant 0 : index
    %c0_73 = arith.constant 0 : index
    %119 = vector.load %arg9[%c2_71, %c0_72, %c0_73] : memref<4x1x8xf32, #tpu.memory_space<vmem>>, vector<1x1x8xf32>
    %120 = vector.shape_cast %119 : vector<1x1x8xf32> to vector<1x8xf32>
    %121 = vector.broadcast %120 : vector<1x8xf32> to vector<64x8xf32>
    %122 = arith.addf %118, %121 : vector<64x8xf32>
    %c2_74 = arith.constant 2 : index
    %c0_75 = arith.constant 0 : index
    %c0_76 = arith.constant 0 : index
    %123 = vector.load %arg7[%c2_74, %c0_75, %c0_76] : memref<4x32x8xbf16, #tpu.memory_space<vmem>>, vector<1x32x8xbf16>
    %124 = vector.shape_cast %123 : vector<1x32x8xbf16> to vector<32x8xbf16>
    %cst_77 = arith.constant dense<0.000000e+00> : vector<64x8xf32>
    %125 = tpu.matmul %27, %124, %cst_77 {dimension_numbers = #tpu.dot_dimension_numbers<[1], [0], [0], [1], [0, 0, 1, 1], [], []>} : vector<64x32xbf16>, vector<32x8xbf16>, vector<64x8xf32> -> vector<64x8xf32>
    %c2_78 = arith.constant 2 : index
    %c0_79 = arith.constant 0 : index
    %c0_80 = arith.constant 0 : index
    %126 = vector.load %arg10[%c2_78, %c0_79, %c0_80] : memref<4x1x8xf32, #tpu.memory_space<vmem>>, vector<1x1x8xf32>
    %127 = vector.shape_cast %126 : vector<1x1x8xf32> to vector<1x8xf32>
    %128 = vector.broadcast %127 : vector<1x8xf32> to vector<64x8xf32>
    %129 = arith.addf %125, %128 : vector<64x8xf32>
    %c2_81 = arith.constant 2 : index
    %c0_82 = arith.constant 0 : index
    %c0_83 = arith.constant 0 : index
    %130 = vector.load %arg8[%c2_81, %c0_82, %c0_83] : memref<4x32x8xbf16, #tpu.memory_space<vmem>>, vector<1x32x8xbf16>
    %131 = vector.shape_cast %130 : vector<1x32x8xbf16> to vector<32x8xbf16>
    %cst_84 = arith.constant dense<0.000000e+00> : vector<64x8xf32>
    %132 = tpu.matmul %27, %131, %cst_84 {dimension_numbers = #tpu.dot_dimension_numbers<[1], [0], [0], [1], [0, 0, 1, 1], [], []>} : vector<64x32xbf16>, vector<32x8xbf16>, vector<64x8xf32> -> vector<64x8xf32>
    %c2_85 = arith.constant 2 : index
    %c0_86 = arith.constant 0 : index
    %c0_87 = arith.constant 0 : index
    %133 = vector.load %arg11[%c2_85, %c0_86, %c0_87] : memref<4x1x8xf32, #tpu.memory_space<vmem>>, vector<1x1x8xf32>
    %134 = vector.shape_cast %133 : vector<1x1x8xf32> to vector<1x8xf32>
    %135 = vector.broadcast %134 : vector<1x8xf32> to vector<64x8xf32>
    %136 = arith.addf %132, %135 : vector<64x8xf32>
    %137 = vector.shape_cast %122 : vector<64x8xf32> to vector<4x16x8xf32>
    %138 = arith.truncf %137 : vector<4x16x8xf32> to vector<4x16x8xbf16>
    %139 = vector.shape_cast %129 : vector<64x8xf32> to vector<4x16x8xf32>
    %140 = arith.truncf %139 : vector<4x16x8xf32> to vector<4x16x8xbf16>
    %141 = vector.shape_cast %136 : vector<64x8xf32> to vector<4x16x8xf32>
    %142 = arith.truncf %141 : vector<4x16x8xf32> to vector<4x16x8xbf16>
    "tpu.trace_start"() <{level = 10 : i32, message = "wnd,wmd->wnm"}> : () -> ()
    %cst_88 = arith.constant dense<0.000000e+00> : vector<4x16x16xf32>
    %143 = tpu.matmul %138, %140, %cst_88 {dimension_numbers = #tpu.dot_dimension_numbers<[2], [2], [1], [1], [0, 0, 0, 1, 1, 1], [0], [0]>} : vector<4x16x8xbf16>, vector<4x16x8xbf16>, vector<4x16x16xf32> -> vector<4x16x16xf32>
    "tpu.trace_stop"() : () -> ()
    %c2_89 = arith.constant 2 : index
    %c0_90 = arith.constant 0 : index
    %c0_91 = arith.constant 0 : index
    %c0_92 = arith.constant 0 : index
    %144 = vector.load %arg3[%c2_89, %c0_90, %c0_91, %c0_92] : memref<4x1x16x16xf32, #tpu.memory_space<vmem>>, vector<1x1x16x16xf32>
    %145 = vector.shape_cast %144 : vector<1x1x16x16xf32> to vector<1x16x16xf32>
    %146 = vector.broadcast %145 : vector<1x16x16xf32> to vector<4x16x16xf32>
    %147 = arith.addf %143, %146 : vector<4x16x16xf32>
    %cst_93 = arith.constant dense<0xFF800000> : vector<4x16xf32>
    %148 = vector.multi_reduction <maximumf>, %147, %cst_93 [2] : vector<4x16x16xf32> to vector<4x16xf32>
    %149 = vector.shape_cast %148 : vector<4x16xf32> to vector<4x16x1xf32>
    %150 = vector.broadcast %149 : vector<4x16x1xf32> to vector<4x16x16xf32>
    %151 = arith.subf %147, %150 : vector<4x16x16xf32>
    %152 = math.exp %151 : vector<4x16x16xf32>
    %cst_94 = arith.constant dense<0.000000e+00> : vector<4x16xf32>
    %153 = vector.multi_reduction <add>, %152, %cst_94 [2] : vector<4x16x16xf32> to vector<4x16xf32>
    %154 = vector.shape_cast %153 : vector<4x16xf32> to vector<4x16x1xf32>
    %155 = tpu.reciprocal %154 {approx = true} : vector<4x16x1xf32> -> vector<4x16x1xf32>
    %156 = vector.broadcast %155 : vector<4x16x1xf32> to vector<4x16x16xf32>
    %157 = arith.mulf %152, %156 : vector<4x16x16xf32>
    %158 = arith.truncf %157 : vector<4x16x16xf32> to vector<4x16x16xbf16>
    "tpu.trace_start"() <{level = 10 : i32, message = "wnm,wmd->wnd"}> : () -> ()
    %cst_95 = arith.constant dense<0.000000e+00> : vector<4x16x8xf32>
    %159 = tpu.matmul %158, %142, %cst_95 {dimension_numbers = #tpu.dot_dimension_numbers<[2], [1], [1], [2], [0, 0, 0, 1, 1, 2], [0], [0]>} : vector<4x16x16xbf16>, vector<4x16x8xbf16>, vector<4x16x8xf32> -> vector<4x16x8xf32>
    "tpu.trace_stop"() : () -> ()
    %c3 = arith.constant 3 : index
    %c0_96 = arith.constant 0 : index
    %c0_97 = arith.constant 0 : index
    %160 = vector.load %arg6[%c3, %c0_96, %c0_97] : memref<4x32x8xbf16, #tpu.memory_space<vmem>>, vector<1x32x8xbf16>
    %161 = vector.shape_cast %160 : vector<1x32x8xbf16> to vector<32x8xbf16>
    %cst_98 = arith.constant dense<0.000000e+00> : vector<64x8xf32>
    %162 = tpu.matmul %27, %161, %cst_98 {dimension_numbers = #tpu.dot_dimension_numbers<[1], [0], [0], [1], [0, 0, 1, 1], [], []>} : vector<64x32xbf16>, vector<32x8xbf16>, vector<64x8xf32> -> vector<64x8xf32>
    %c3_99 = arith.constant 3 : index
    %c0_100 = arith.constant 0 : index
    %c0_101 = arith.constant 0 : index
    %163 = vector.load %arg9[%c3_99, %c0_100, %c0_101] : memref<4x1x8xf32, #tpu.memory_space<vmem>>, vector<1x1x8xf32>
    %164 = vector.shape_cast %163 : vector<1x1x8xf32> to vector<1x8xf32>
    %165 = vector.broadcast %164 : vector<1x8xf32> to vector<64x8xf32>
    %166 = arith.addf %162, %165 : vector<64x8xf32>
    %c3_102 = arith.constant 3 : index
    %c0_103 = arith.constant 0 : index
    %c0_104 = arith.constant 0 : index
    %167 = vector.load %arg7[%c3_102, %c0_103, %c0_104] : memref<4x32x8xbf16, #tpu.memory_space<vmem>>, vector<1x32x8xbf16>
    %168 = vector.shape_cast %167 : vector<1x32x8xbf16> to vector<32x8xbf16>
    %cst_105 = arith.constant dense<0.000000e+00> : vector<64x8xf32>
    %169 = tpu.matmul %27, %168, %cst_105 {dimension_numbers = #tpu.dot_dimension_numbers<[1], [0], [0], [1], [0, 0, 1, 1], [], []>} : vector<64x32xbf16>, vector<32x8xbf16>, vector<64x8xf32> -> vector<64x8xf32>
    %c3_106 = arith.constant 3 : index
    %c0_107 = arith.constant 0 : index
    %c0_108 = arith.constant 0 : index
    %170 = vector.load %arg10[%c3_106, %c0_107, %c0_108] : memref<4x1x8xf32, #tpu.memory_space<vmem>>, vector<1x1x8xf32>
    %171 = vector.shape_cast %170 : vector<1x1x8xf32> to vector<1x8xf32>
    %172 = vector.broadcast %171 : vector<1x8xf32> to vector<64x8xf32>
    %173 = arith.addf %169, %172 : vector<64x8xf32>
    %c3_109 = arith.constant 3 : index
    %c0_110 = arith.constant 0 : index
    %c0_111 = arith.constant 0 : index
    %174 = vector.load %arg8[%c3_109, %c0_110, %c0_111] : memref<4x32x8xbf16, #tpu.memory_space<vmem>>, vector<1x32x8xbf16>
    %175 = vector.shape_cast %174 : vector<1x32x8xbf16> to vector<32x8xbf16>
    %cst_112 = arith.constant dense<0.000000e+00> : vector<64x8xf32>
    %176 = tpu.matmul %27, %175, %cst_112 {dimension_numbers = #tpu.dot_dimension_numbers<[1], [0], [0], [1], [0, 0, 1, 1], [], []>} : vector<64x32xbf16>, vector<32x8xbf16>, vector<64x8xf32> -> vector<64x8xf32>
    %c3_113 = arith.constant 3 : index
    %c0_114 = arith.constant 0 : index
    %c0_115 = arith.constant 0 : index
    %177 = vector.load %arg11[%c3_113, %c0_114, %c0_115] : memref<4x1x8xf32, #tpu.memory_space<vmem>>, vector<1x1x8xf32>
    %178 = vector.shape_cast %177 : vector<1x1x8xf32> to vector<1x8xf32>
    %179 = vector.broadcast %178 : vector<1x8xf32> to vector<64x8xf32>
    %180 = arith.addf %176, %179 : vector<64x8xf32>
    %181 = vector.shape_cast %166 : vector<64x8xf32> to vector<4x16x8xf32>
    %182 = arith.truncf %181 : vector<4x16x8xf32> to vector<4x16x8xbf16>
    %183 = vector.shape_cast %173 : vector<64x8xf32> to vector<4x16x8xf32>
    %184 = arith.truncf %183 : vector<4x16x8xf32> to vector<4x16x8xbf16>
    %185 = vector.shape_cast %180 : vector<64x8xf32> to vector<4x16x8xf32>
    %186 = arith.truncf %185 : vector<4x16x8xf32> to vector<4x16x8xbf16>
    "tpu.trace_start"() <{level = 10 : i32, message = "wnd,wmd->wnm"}> : () -> ()
    %cst_116 = arith.constant dense<0.000000e+00> : vector<4x16x16xf32>
    %187 = tpu.matmul %182, %184, %cst_116 {dimension_numbers = #tpu.dot_dimension_numbers<[2], [2], [1], [1], [0, 0, 0, 1, 1, 1], [0], [0]>} : vector<4x16x8xbf16>, vector<4x16x8xbf16>, vector<4x16x16xf32> -> vector<4x16x16xf32>
    "tpu.trace_stop"() : () -> ()
    %c3_117 = arith.constant 3 : index
    %c0_118 = arith.constant 0 : index
    %c0_119 = arith.constant 0 : index
    %c0_120 = arith.constant 0 : index
    %188 = vector.load %arg3[%c3_117, %c0_118, %c0_119, %c0_120] : memref<4x1x16x16xf32, #tpu.memory_space<vmem>>, vector<1x1x16x16xf32>
    %189 = vector.shape_cast %188 : vector<1x1x16x16xf32> to vector<1x16x16xf32>
    %190 = vector.broadcast %189 : vector<1x16x16xf32> to vector<4x16x16xf32>
    %191 = arith.addf %187, %190 : vector<4x16x16xf32>
    %cst_121 = arith.constant dense<0xFF800000> : vector<4x16xf32>
    %192 = vector.multi_reduction <maximumf>, %191, %cst_121 [2] : vector<4x16x16xf32> to vector<4x16xf32>
    %193 = vector.shape_cast %192 : vector<4x16xf32> to vector<4x16x1xf32>
    %194 = vector.broadcast %193 : vector<4x16x1xf32> to vector<4x16x16xf32>
    %195 = arith.subf %191, %194 : vector<4x16x16xf32>
    %196 = math.exp %195 : vector<4x16x16xf32>
    %cst_122 = arith.constant dense<0.000000e+00> : vector<4x16xf32>
    %197 = vector.multi_reduction <add>, %196, %cst_122 [2] : vector<4x16x16xf32> to vector<4x16xf32>
    %198 = vector.shape_cast %197 : vector<4x16xf32> to vector<4x16x1xf32>
    %199 = tpu.reciprocal %198 {approx = true} : vector<4x16x1xf32> -> vector<4x16x1xf32>
    %200 = vector.broadcast %199 : vector<4x16x1xf32> to vector<4x16x16xf32>
    %201 = arith.mulf %196, %200 : vector<4x16x16xf32>
    %202 = arith.truncf %201 : vector<4x16x16xf32> to vector<4x16x16xbf16>
    "tpu.trace_start"() <{level = 10 : i32, message = "wnm,wmd->wnd"}> : () -> ()
    %cst_123 = arith.constant dense<0.000000e+00> : vector<4x16x8xf32>
    %203 = tpu.matmul %202, %186, %cst_123 {dimension_numbers = #tpu.dot_dimension_numbers<[2], [1], [1], [2], [0, 0, 0, 1, 1, 2], [0], [0]>} : vector<4x16x16xbf16>, vector<4x16x8xbf16>, vector<4x16x8xf32> -> vector<4x16x8xf32>
    "tpu.trace_stop"() : () -> ()
    %204 = tpu.concatenate %71, %115, %159, %203 in 2 : vector<4x16x8xf32>, vector<4x16x8xf32>, vector<4x16x8xf32>, vector<4x16x8xf32> -> vector<4x16x32xf32>
    %205 = vector.shape_cast %204 : vector<4x16x32xf32> to vector<64x32xf32>
    %206 = arith.truncf %205 : vector<64x32xf32> to vector<64x32xbf16>
    %c0_124 = arith.constant 0 : index
    %c0_125 = arith.constant 0 : index
    %207 = vector.load %arg12[%c0_124, %c0_125] : memref<32x32xbf16, #tpu.memory_space<vmem>>, vector<32x32xbf16>
    %cst_126 = arith.constant dense<0.000000e+00> : vector<64x32xf32>
    %208 = tpu.matmul %206, %207, %cst_126 {dimension_numbers = #tpu.dot_dimension_numbers<[1], [0], [0], [1], [0, 0, 1, 1], [], []>} : vector<64x32xbf16>, vector<32x32xbf16>, vector<64x32xf32> -> vector<64x32xf32>
    %c0_127 = arith.constant 0 : index
    %c0_128 = arith.constant 0 : index
    %209 = vector.load %arg13[%c0_127, %c0_128] : memref<1x32xf32, #tpu.memory_space<vmem>>, vector<1x32xf32>
    %210 = vector.broadcast %209 : vector<1x32xf32> to vector<64x32xf32>
    %211 = arith.addf %208, %210 : vector<64x32xf32>
    %212 = vector.shape_cast %211 : vector<64x32xf32> to vector<4x16x32xf32>
    %c0_129 = arith.constant 0 : index
    %c0_130 = arith.constant 0 : index
    %c0_131 = arith.constant 0 : index
    %c0_132 = arith.constant 0 : index
    %213 = vector.load %arg14[%c0_129, %c0_130, %c0_131, %c0_132] : memref<1x4x16x32xf32, #tpu.memory_space<vmem>>, vector<1x4x16x32xf32>
    %214 = vector.shape_cast %213 : vector<1x4x16x32xf32> to vector<4x16x32xf32>
    %215 = vector.shape_cast %212 : vector<4x16x32xf32> to vector<1x4x16x32xf32>
    tpu.vector_store %arg14[%c0_129, %c0_130, %c0_131, %c0_132], %215 {strides = array<i32>} : memref<1x4x16x32xf32, #tpu.memory_space<vmem>>, vector<1x4x16x32xf32>,
    return
  }
  func.func @transform_0(%arg0: i32, %arg1: i32) -> (i32, i32, i32, i32) {
    %c0_i32 = arith.constant 0 : i32
    %c0_i32_0 = arith.constant 0 : i32
    %c0_i32_1 = arith.constant 0 : i32
    return %arg0, %arg1, %c0_i32, %c0_i32_0 : i32, i32, i32, i32
  }
  func.func @transform_1(%arg0: i32, %arg1: i32) -> (i32, i32, i32, i32) {
    %c0_i32 = arith.constant 0 : i32
    %c0_i32_0 = arith.constant 0 : i32
    %c0_i32_1 = arith.constant 0 : i32
    %c0_i32_2 = arith.constant 0 : i32
    %c0_i32_3 = arith.constant 0 : i32
    return %c0_i32, %c0_i32_0, %c0_i32_1, %c0_i32_2 : i32, i32, i32, i32
  }
  func.func @transform_2(%arg0: i32, %arg1: i32) -> (i32, i32) {
    %c0_i32 = arith.constant 0 : i32
    %c0_i32_0 = arith.constant 0 : i32
    %c0_i32_1 = arith.constant 0 : i32
    return %c0_i32, %c0_i32_0 : i32, i32
  }
  func.func @transform_3(%arg0: i32, %arg1: i32) -> (i32, i32) {
    %c0_i32 = arith.constant 0 : i32
    %c0_i32_0 = arith.constant 0 : i32
    %c0_i32_1 = arith.constant 0 : i32
    return %c0_i32, %c0_i32_0 : i32, i32
  }
  func.func @transform_4(%arg0: i32, %arg1: i32) -> (i32, i32, i32) {
    %c0_i32 = arith.constant 0 : i32
    %c0_i32_0 = arith.constant 0 : i32
    %c0_i32_1 = arith.constant 0 : i32
    %c0_i32_2 = arith.constant 0 : i32
    return %c0_i32, %c0_i32_0, %c0_i32_1 : i32, i32, i32
  }
  func.func @transform_5(%arg0: i32, %arg1: i32) -> (i32, i32, i32) {
    %c0_i32 = arith.constant 0 : i32
    %c0_i32_0 = arith.constant 0 : i32
    %c0_i32_1 = arith.constant 0 : i32
    %c0_i32_2 = arith.constant 0 : i32
    return %c0_i32, %c0_i32_0, %c0_i32_1 : i32, i32, i32
  }
  func.func @transform_6(%arg0: i32, %arg1: i32) -> (i32, i32, i32) {
    %c0_i32 = arith.constant 0 : i32
    %c0_i32_0 = arith.constant 0 : i32
    %c0_i32_1 = arith.constant 0 : i32
    %c0_i32_2 = arith.constant 0 : i32
    return %c0_i32, %c0_i32_0, %c0_i32_1 : i32, i32, i32
  }
  func.func @transform_7(%arg0: i32, %arg1: i32) -> (i32, i32, i32) {
    %c0_i32 = arith.constant 0 : i32
    %c0_i32_0 = arith.constant 0 : i32
    %c0_i32_1 = arith.constant 0 : i32
    %c0_i32_2 = arith.constant 0 : i32
    return %c0_i32, %c0_i32_0, %c0_i32_1 : i32, i32, i32
  }
  func.func @transform_8(%arg0: i32, %arg1: i32) -> (i32, i32, i32) {
    %c0_i32 = arith.constant 0 : i32
    %c0_i32_0 = arith.constant 0 : i32
    %c0_i32_1 = arith.constant 0 : i32
    %c0_i32_2 = arith.constant 0 : i32
    return %c0_i32, %c0_i32_0, %c0_i32_1 : i32, i32, i32
  }
  func.func @transform_9(%arg0: i32, %arg1: i32) -> (i32, i32, i32) {
    %c0_i32 = arith.constant 0 : i32
    %c0_i32_0 = arith.constant 0 : i32
    %c0_i32_1 = arith.constant 0 : i32
    %c0_i32_2 = arith.constant 0 : i32
    return %c0_i32, %c0_i32_0, %c0_i32_1 : i32, i32, i32
  }
  func.func @transform_10(%arg0: i32, %arg1: i32) -> (i32, i32) {
    %c0_i32 = arith.constant 0 : i32
    %c0_i32_0 = arith.constant 0 : i32
    %c0_i32_1 = arith.constant 0 : i32
    return %c0_i32, %c0_i32_0 : i32, i32
  }
  func.func @transform_11(%arg0: i32, %arg1: i32) -> (i32, i32) {
    %c0_i32 = arith.constant 0 : i32
    %c0_i32_0 = arith.constant 0 : i32
    %c0_i32_1 = arith.constant 0 : i32
    return %c0_i32, %c0_i32_0 : i32, i32
  }
  func.func @transform_12(%arg0: i32, %arg1: i32) -> (i32, i32, i32, i32) {
    %c0_i32 = arith.constant 0 : i32
    %c0_i32_0 = arith.constant 0 : i32
    %c0_i32_1 = arith.constant 0 : i32
    return %arg0, %arg1, %c0_i32, %c0_i32_0 : i32, i32, i32, i32
  }
}

</mosaic_0001>

<llo_original>
// kernel: tpu_custom_call.1
$region0: #{tpu_custom_call.1}
  #allocation0 [shape = 'u32[]', space=smem, size = 0x4, offset = 0x4, fixed_abs, tag = 'smem constant byte address 0x4 - core index']
  #allocation1 [shape = 'u32[144,128]{1,0:T(1,128)}', space=vmem, size = 0x12000, scoped, tag = 'internal scratch']
  %s0 = inlined_call_operand.vmem [shape: f32[2,4,16,32], index: 0, kind: input, shape index: {}]
  %s1 = inlined_call_operand.vmem [shape: f32[4,1,16,16], index: 1, kind: input, shape index: {}]
  %s2 = inlined_call_operand.vmem [shape: f32[1,32], index: 2, kind: input, shape index: {}]
  %s3 = inlined_call_operand.vmem [shape: f32[1,32], index: 3, kind: input, shape index: {}]
  %s4 = inlined_call_operand.vmem [shape: bf16[4,32,8], index: 4, kind: input, shape index: {}]
  %s5 = inlined_call_operand.vmem [shape: bf16[4,32,8], index: 5, kind: input, shape index: {}]
  %s6 = inlined_call_operand.vmem [shape: bf16[4,32,8], index: 6, kind: input, shape index: {}]
  %s7 = inlined_call_operand.vmem [shape: f32[4,1,8], index: 7, kind: input, shape index: {}]
  %s8 = inlined_call_operand.vmem [shape: f32[4,1,8], index: 8, kind: input, shape index: {}]
  %s9 = inlined_call_operand.vmem [shape: f32[4,1,8], index: 9, kind: input, shape index: {}]
  %s10 = inlined_call_operand.vmem [shape: bf16[32,32], index: 10, kind: input, shape index: {}]
  %s11 = inlined_call_operand.vmem [shape: f32[1,32], index: 11, kind: input, shape index: {}]
  %s12 = inlined_call_operand.hbm [shape: f32[2,4,16,32], index: 12, kind: output, shape index: {}]
  %s13 = sld [smem:[#allocation0]]
  $region81: #{tpu_custom_call.1} parent=0
    _
  %s15 = ssub.s32 1, %s13
  %s16 = scalar_select 0, %s15, %s13
  $region1: #{tpu_custom_call.1} parent=0
    #allocation2 [shape = 'u8[65536]{0}', space=vmem, size = 0x10000, scoped, tag = 'output window, operand 0']
    #allocation3 [shape = 's32[2]{0}', space=sflag, size = 0x8, scoped, tag = 'scoped memory for tpu_custom_call.1']
    %17 = vsyncpa [#allocation3], 0
    %s18 = scalar_lea.sflag [#allocation3], 1
    %19 = vsyncpa %s18, 0
    loop: start=0, step=1, limit=4
    $region2: #{tpu_custom_call.1} parent=1 // loop_pre_header
      _
    $region3: #{tpu_custom_call.1} parent=1 // loop_header
      %s21 = sphi 0, %s25
      %p22 = scmp.ge.s32.totalorder %s21, 4
      %s28 = sphi 0, %s40
      %s29 = sphi 0, %s36
      %s30 = sphi 0, %s28
      %s31 = sphi 0, %s29
      %s32 = sphi 0, %s30
      %s33 = sphi 0, %s31
      %s45 = sphi 0, %s47
      %s48 = sphi 0, %s45
      %s49 = sphi 0, %s48
      %s65 = sphi 0, %s49
      %s69 = sphi 0, %s69
      %s71 = sphi 0, %s69
      %s72 = sphi 0, %s71
      %s86 = sphi 0, %s72
      %s90 = sphi 0, %s90
      %s92 = sphi 0, %s90
      %s93 = sphi 0, %s92
      %s107 = sphi 0, %s93
      %s111 = sphi 0, %s111
      %s113 = sphi 0, %s111
      %s114 = sphi 0, %s113
      %s128 = sphi 0, %s114
      %s132 = sphi 0, %s132
      %s134 = sphi 0, %s132
      %s135 = sphi 0, %s134
      %s149 = sphi 0, %s135
      %s153 = sphi 0, %s153
      %s155 = sphi 0, %s153
      %s156 = sphi 0, %s155
      %s170 = sphi 0, %s156
      %s174 = sphi 0, %s174
      %s176 = sphi 0, %s174
      %s177 = sphi 0, %s176
      %s191 = sphi 0, %s177
      %s195 = sphi 0, %s195
      %s197 = sphi 0, %s195
      %s198 = sphi 0, %s197
      %s212 = sphi 0, %s198
      %s216 = sphi 0, %s216
      %s218 = sphi 0, %s216
      %s219 = sphi 0, %s218
      %s233 = sphi 0, %s219
      %s237 = sphi 0, %s237
      %s239 = sphi 0, %s237
      %s240 = sphi 0, %s239
      %s254 = sphi 0, %s240
      %s258 = sphi 0, %s258
      %s260 = sphi 0, %s258
      %s261 = sphi 0, %s260
      %s275 = sphi 0, %s261
      %s279 = sphi 0, %s279
      %s281 = sphi 0, %s279
      %s282 = sphi 0, %s281
      %s296 = sphi 0, %s282
      %s304 = sphi 0, %s306
      %s307 = sphi 0, %s304
      %s308 = sphi 0, %s307
      %s324 = sphi 0, %s308
    $region4: #{tpu_custom_call.1} parent=1 // loop_header_branch
      %24 = sbr.rel (%p22) target = $region8
    $region5: #{tpu_custom_call.1} parent=1 // loop_body
      %s26 = ssub.s32 %s21, 1
      %s27 = ssub.s32 %s21, 2
      %s34 = sadd.s32 1, %s29
      %p35 = scmp.ge.s32.totalorder %s34, 1
      %s36 = scalar_select %p35, 0, %s34
      %s37 = sadd.s32 1, %s28
      %s38 = scalar_select %p35, %s37, %s28
      %p39 = scmp.ge.s32.totalorder %s38, 2
      %s40 = scalar_select %p39, 0, %s38
      %s41 = ssub.s32 %s28, %s40
      %s42 = ssub.s32 %s29, %s36
      %s43 = sor.u32 %s41, %s42
      %p44 = scmp.eq.s32.totalorder %s43, 0
      %s46 = sadd.s32 %s45, 1
      %s47 = scalar_select %p44, %s45, %s46
      %p50 = pneg %p44
      %p51 = scmp.eq.s32.totalorder %s21, 1
      %p52 = por %p50, %p51
      %p53 = scmp.ne.s32.totalorder %s45, %s48
      %p54 = scmp.eq.s32.totalorder %s21, 0
      %p55 = por %p53, %p54
      %p56 = scmp.ne.s32.totalorder %s45, %s48
      %p57 = scmp.eq.s32.totalorder %s26, 1
      %p58 = por %p56, %p57
      %p59 = scmp.ne.s32.totalorder %s48, %s49
      %p60 = scmp.eq.s32.totalorder %s26, 0
      %p61 = por %p59, %p60
      %p62 = scmp.ne.s32.totalorder %s48, %s49
      %p63 = scmp.eq.s32.totalorder %s27, 1
      %p64 = por %p62, %p63
      %p66 = scmp.ne.s32.totalorder %s49, %s65
      %p67 = scmp.eq.s32.totalorder %s27, 0
      %p68 = por %p66, %p67
      %s70 = sadd.s32 %s69, 1
      %p73 = scmp.eq.s32.totalorder %s21, 1
      %p74 = scmp.ne.s32.totalorder %s69, %s71
      %p75 = scmp.eq.s32.totalorder %s21, 0
      %p76 = por %p74, %p75
      %p77 = scmp.ne.s32.totalorder %s69, %s71
      %p78 = scmp.eq.s32.totalorder %s26, 1
      %p79 = por %p77, %p78
      %p80 = scmp.ne.s32.totalorder %s71, %s72
      %p81 = scmp.eq.s32.totalorder %s26, 0
      %p82 = por %p80, %p81
      %p83 = scmp.ne.s32.totalorder %s71, %s72
      %p84 = scmp.eq.s32.totalorder %s27, 1
      %p85 = por %p83, %p84
      %p87 = scmp.ne.s32.totalorder %s72, %s86
      %p88 = scmp.eq.s32.totalorder %s27, 0
      %p89 = por %p87, %p88
      %s91 = sadd.s32 %s90, 1
      %p94 = scmp.eq.s32.totalorder %s21, 1
      %p95 = scmp.ne.s32.totalorder %s90, %s92
      %p96 = scmp.eq.s32.totalorder %s21, 0
      %p97 = por %p95, %p96
      %p98 = scmp.ne.s32.totalorder %s90, %s92
      %p99 = scmp.eq.s32.totalorder %s26, 1
      %p100 = por %p98, %p99
      %p101 = scmp.ne.s32.totalorder %s92, %s93
      %p102 = scmp.eq.s32.totalorder %s26, 0
      %p103 = por %p101, %p102
      %p104 = scmp.ne.s32.totalorder %s92, %s93
      %p105 = scmp.eq.s32.totalorder %s27, 1
      %p106 = por %p104, %p105
      %p108 = scmp.ne.s32.totalorder %s93, %s107
      %p109 = scmp.eq.s32.totalorder %s27, 0
      %p110 = por %p108, %p109
      %s112 = sadd.s32 %s111, 1
      %p115 = scmp.eq.s32.totalorder %s21, 1
      %p116 = scmp.ne.s32.totalorder %s111, %s113
      %p117 = scmp.eq.s32.totalorder %s21, 0
      %p118 = por %p116, %p117
      %p119 = scmp.ne.s32.totalorder %s111, %s113
      %p120 = scmp.eq.s32.totalorder %s26, 1
      %p121 = por %p119, %p120
      %p122 = scmp.ne.s32.totalorder %s113, %s114
      %p123 = scmp.eq.s32.totalorder %s26, 0
      %p124 = por %p122, %p123
      %p125 = scmp.ne.s32.totalorder %s113, %s114
      %p126 = scmp.eq.s32.totalorder %s27, 1
      %p127 = por %p125, %p126
      %p129 = scmp.ne.s32.totalorder %s114, %s128
      %p130 = scmp.eq.s32.totalorder %s27, 0
      %p131 = por %p129, %p130
      %s133 = sadd.s32 %s132, 1
      %p136 = scmp.eq.s32.totalorder %s21, 1
      %p137 = scmp.ne.s32.totalorder %s132, %s134
      %p138 = scmp.eq.s32.totalorder %s21, 0
      %p139 = por %p137, %p138
      %p140 = scmp.ne.s32.totalorder %s132, %s134
      %p141 = scmp.eq.s32.totalorder %s26, 1
      %p142 = por %p140, %p141
      %p143 = scmp.ne.s32.totalorder %s134, %s135
      %p144 = scmp.eq.s32.totalorder %s26, 0
      %p145 = por %p143, %p144
      %p146 = scmp.ne.s32.totalorder %s134, %s135
      %p147 = scmp.eq.s32.totalorder %s27, 1
      %p148 = por %p146, %p147
      %p150 = scmp.ne.s32.totalorder %s135, %s149
      %p151 = scmp.eq.s32.totalorder %s27, 0
      %p152 = por %p150, %p151
      %s154 = sadd.s32 %s153, 1
      %p157 = scmp.eq.s32.totalorder %s21, 1
      %p158 = scmp.ne.s32.totalorder %s153, %s155
      %p159 = scmp.eq.s32.totalorder %s21, 0
      %p160 = por %p158, %p159
      %p161 = scmp.ne.s32.totalorder %s153, %s155
      %p162 = scmp.eq.s32.totalorder %s26, 1
      %p163 = por %p161, %p162
      %p164 = scmp.ne.s32.totalorder %s155, %s156
      %p165 = scmp.eq.s32.totalorder %s26, 0
      %p166 = por %p164, %p165
      %p167 = scmp.ne.s32.totalorder %s155, %s156
      %p168 = scmp.eq.s32.totalorder %s27, 1
      %p169 = por %p167, %p168
      %p171 = scmp.ne.s32.totalorder %s156, %s170
      %p172 = scmp.eq.s32.totalorder %s27, 0
      %p173 = por %p171, %p172
      %s175 = sadd.s32 %s174, 1
      %p178 = scmp.eq.s32.totalorder %s21, 1
      %p179 = scmp.ne.s32.totalorder %s174, %s176
      %p180 = scmp.eq.s32.totalorder %s21, 0
      %p181 = por %p179, %p180
      %p182 = scmp.ne.s32.totalorder %s174, %s176
      %p183 = scmp.eq.s32.totalorder %s26, 1
      %p184 = por %p182, %p183
      %p185 = scmp.ne.s32.totalorder %s176, %s177
      %p186 = scmp.eq.s32.totalorder %s26, 0
      %p187 = por %p185, %p186
      %p188 = scmp.ne.s32.totalorder %s176, %s177
      %p189 = scmp.eq.s32.totalorder %s27, 1
      %p190 = por %p188, %p189
      %p192 = scmp.ne.s32.totalorder %s177, %s191
      %p193 = scmp.eq.s32.totalorder %s27, 0
      %p194 = por %p192, %p193
      %s196 = sadd.s32 %s195, 1
      %p199 = scmp.eq.s32.totalorder %s21, 1
      %p200 = scmp.ne.s32.totalorder %s195, %s197
      %p201 = scmp.eq.s32.totalorder %s21, 0
      %p202 = por %p200, %p201
      %p203 = scmp.ne.s32.totalorder %s195, %s197
      %p204 = scmp.eq.s32.totalorder %s26, 1
      %p205 = por %p203, %p204
      %p206 = scmp.ne.s32.totalorder %s197, %s198
      %p207 = scmp.eq.s32.totalorder %s26, 0
      %p208 = por %p206, %p207
      %p209 = scmp.ne.s32.totalorder %s197, %s198
      %p210 = scmp.eq.s32.totalorder %s27, 1
      %p211 = por %p209, %p210
      %p213 = scmp.ne.s32.totalorder %s198, %s212
      %p214 = scmp.eq.s32.totalorder %s27, 0
      %p215 = por %p213, %p214
      %s217 = sadd.s32 %s216, 1
      %p220 = scmp.eq.s32.totalorder %s21, 1
      %p221 = scmp.ne.s32.totalorder %s216, %s218
      %p222 = scmp.eq.s32.totalorder %s21, 0
      %p223 = por %p221, %p222
      %p224 = scmp.ne.s32.totalorder %s216, %s218
      %p225 = scmp.eq.s32.totalorder %s26, 1
      %p226 = por %p224, %p225
      %p227 = scmp.ne.s32.totalorder %s218, %s219
      %p228 = scmp.eq.s32.totalorder %s26, 0
      %p229 = por %p227, %p228
      %p230 = scmp.ne.s32.totalorder %s218, %s219
      %p231 = scmp.eq.s32.totalorder %s27, 1
      %p232 = por %p230, %p231
      %p234 = scmp.ne.s32.totalorder %s219, %s233
      %p235 = scmp.eq.s32.totalorder %s27, 0
      %p236 = por %p234, %p235
      %s238 = sadd.s32 %s237, 1
      %p241 = scmp.eq.s32.totalorder %s21, 1
      %p242 = scmp.ne.s32.totalorder %s237, %s239
      %p243 = scmp.eq.s32.totalorder %s21, 0
      %p244 = por %p242, %p243
      %p245 = scmp.ne.s32.totalorder %s237, %s239
      %p246 = scmp.eq.s32.totalorder %s26, 1
      %p247 = por %p245, %p246
      %p248 = scmp.ne.s32.totalorder %s239, %s240
      %p249 = scmp.eq.s32.totalorder %s26, 0
      %p250 = por %p248, %p249
      %p251 = scmp.ne.s32.totalorder %s239, %s240
      %p252 = scmp.eq.s32.totalorder %s27, 1
      %p253 = por %p251, %p252
      %p255 = scmp.ne.s32.totalorder %s240, %s254
      %p256 = scmp.eq.s32.totalorder %s27, 0
      %p257 = por %p255, %p256
      %s259 = sadd.s32 %s258, 1
      %p262 = scmp.eq.s32.totalorder %s21, 1
      %p263 = scmp.ne.s32.totalorder %s258, %s260
      %p264 = scmp.eq.s32.totalorder %s21, 0
      %p265 = por %p263, %p264
      %p266 = scmp.ne.s32.totalorder %s258, %s260
      %p267 = scmp.eq.s32.totalorder %s26, 1
      %p268 = por %p266, %p267
      %p269 = scmp.ne.s32.totalorder %s260, %s261
      %p270 = scmp.eq.s32.totalorder %s26, 0
      %p271 = por %p269, %p270
      %p272 = scmp.ne.s32.totalorder %s260, %s261
      %p273 = scmp.eq.s32.totalorder %s27, 1
      %p274 = por %p272, %p273
      %p276 = scmp.ne.s32.totalorder %s261, %s275
      %p277 = scmp.eq.s32.totalorder %s27, 0
      %p278 = por %p276, %p277
      %s280 = sadd.s32 %s279, 1
      %p283 = scmp.eq.s32.totalorder %s21, 1
      %p284 = scmp.ne.s32.totalorder %s279, %s281
      %p285 = scmp.eq.s32.totalorder %s21, 0
      %p286 = por %p284, %p285
      %p287 = scmp.ne.s32.totalorder %s279, %s281
      %p288 = scmp.eq.s32.totalorder %s26, 1
      %p289 = por %p287, %p288
      %p290 = scmp.ne.s32.totalorder %s281, %s282
      %p291 = scmp.eq.s32.totalorder %s26, 0
      %p292 = por %p290, %p291
      %p293 = scmp.ne.s32.totalorder %s281, %s282
      %p294 = scmp.eq.s32.totalorder %s27, 1
      %p295 = por %p293, %p294
      %p297 = scmp.ne.s32.totalorder %s282, %s296
      %p298 = scmp.eq.s32.totalorder %s27, 0
      %p299 = por %p297, %p298
      %s300 = ssub.s32 %s28, %s40
      %s301 = ssub.s32 %s29, %s36
      %s302 = sor.u32 %s300, %s301
      %p303 = scmp.eq.s32.totalorder %s302, 0
      %s305 = sadd.s32 %s304, 1
      %s306 = scalar_select %p303, %s304, %s305
      %p309 = pneg %p303
      %p310 = scmp.eq.s32.totalorder %s21, 1
      %p311 = por %p309, %p310
      %p312 = scmp.ne.s32.totalorder %s304, %s307
      %p313 = scmp.eq.s32.totalorder %s21, 0
      %p314 = por %p312, %p313
      %p315 = scmp.ne.s32.totalorder %s304, %s307
      %p316 = scmp.eq.s32.totalorder %s26, 1
      %p317 = por %p315, %p316
      %p318 = scmp.ne.s32.totalorder %s307, %s308
      %p319 = scmp.eq.s32.totalorder %s26, 0
      %p320 = por %p318, %p319
      %p321 = scmp.ne.s32.totalorder %s307, %s308
      %p322 = scmp.eq.s32.totalorder %s27, 1
      %p323 = por %p321, %p322
      %p325 = scmp.ne.s32.totalorder %s308, %s324
      %p326 = scmp.eq.s32.totalorder %s27, 0
      %p327 = por %p325, %p326
      %p328 = scmp.le.s32.totalorder 1, %s21
      %p329 = scmp.lt.s32.totalorder %s21, 3
      %p330 = pnand %p328, %p329
      %p331 = pneg %p330
      // Predicated region
      $region9: #{tpu_custom_call.1} parent=5 // pred_check
        _
      $region10: #{tpu_custom_call.1} parent=5 // pred_check_branch
        %333 = sbr.rel (%p330) target = $region12
      $region11: #{tpu_custom_call.1} parent=5 // pred_region
        %s334 = ssub.s32 %s21, 1
        // Predicated region
        $region13: #{tpu_custom_call.1} parent=11 // pred_check
          %p335 = pneg %p82
        $region14: #{tpu_custom_call.1} parent=11 // pred_check_branch
          %337 = sbr.rel (%p335) target = $region16
        $region15: #{tpu_custom_call.1} parent=11 // pred_region
          _
        $region16: #{tpu_custom_call.1} parent=11 // pred_fallthru
          _
        // Predicated region
        $region17: #{tpu_custom_call.1} parent=11 // pred_check
          %p338 = pneg %p103
        $region18: #{tpu_custom_call.1} parent=11 // pred_check_branch
          %340 = sbr.rel (%p338) target = $region20
        $region19: #{tpu_custom_call.1} parent=11 // pred_region
          _
        $region20: #{tpu_custom_call.1} parent=11 // pred_fallthru
          _
        // Predicated region
        $region21: #{tpu_custom_call.1} parent=11 // pred_check
          %p341 = pneg %p124
        $region22: #{tpu_custom_call.1} parent=11 // pred_check_branch
          %343 = sbr.rel (%p341) target = $region24
        $region23: #{tpu_custom_call.1} parent=11 // pred_region
          _
        $region24: #{tpu_custom_call.1} parent=11 // pred_fallthru
          _
        // Predicated region
        $region25: #{tpu_custom_call.1} parent=11 // pred_check
          %p344 = pneg %p145
        $region26: #{tpu_custom_call.1} parent=11 // pred_check_branch
          %346 = sbr.rel (%p344) target = $region28
        $region27: #{tpu_custom_call.1} parent=11 // pred_region
          _
        $region28: #{tpu_custom_call.1} parent=11 // pred_fallthru
          _
        // Predicated region
        $region29: #{tpu_custom_call.1} parent=11 // pred_check
          %p347 = pneg %p166
        $region30: #{tpu_custom_call.1} parent=11 // pred_check_branch
          %349 = sbr.rel (%p347) target = $region32
        $region31: #{tpu_custom_call.1} parent=11 // pred_region
          _
        $region32: #{tpu_custom_call.1} parent=11 // pred_fallthru
          _
        // Predicated region
        $region33: #{tpu_custom_call.1} parent=11 // pred_check
          %p350 = pneg %p187
        $region34: #{tpu_custom_call.1} parent=11 // pred_check_branch
          %352 = sbr.rel (%p350) target = $region36
        $region35: #{tpu_custom_call.1} parent=11 // pred_region
          _
        $region36: #{tpu_custom_call.1} parent=11 // pred_fallthru
          _
        // Predicated region
        $region37: #{tpu_custom_call.1} parent=11 // pred_check
          %p353 = pneg %p208
        $region38: #{tpu_custom_call.1} parent=11 // pred_check_branch
          %355 = sbr.rel (%p353) target = $region40
        $region39: #{tpu_custom_call.1} parent=11 // pred_region
          _
        $region40: #{tpu_custom_call.1} parent=11 // pred_fallthru
          _
        // Predicated region
        $region41: #{tpu_custom_call.1} parent=11 // pred_check
          %p356 = pneg %p229
        $region42: #{tpu_custom_call.1} parent=11 // pred_check_branch
          %358 = sbr.rel (%p356) target = $region44
        $region43: #{tpu_custom_call.1} parent=11 // pred_region
          _
        $region44: #{tpu_custom_call.1} parent=11 // pred_fallthru
          _
        // Predicated region
        $region45: #{tpu_custom_call.1} parent=11 // pred_check
          %p359 = pneg %p250
        $region46: #{tpu_custom_call.1} parent=11 // pred_check_branch
          %361 = sbr.rel (%p359) target = $region48
        $region47: #{tpu_custom_call.1} parent=11 // pred_region
          _
        $region48: #{tpu_custom_call.1} parent=11 // pred_fallthru
          _
        // Predicated region
        $region49: #{tpu_custom_call.1} parent=11 // pred_check
          %p362 = pneg %p271
        $region50: #{tpu_custom_call.1} parent=11 // pred_check_branch
          %364 = sbr.rel (%p362) target = $region52
        $region51: #{tpu_custom_call.1} parent=11 // pred_region
          _
        $region52: #{tpu_custom_call.1} parent=11 // pred_fallthru
          _
        // Predicated region
        $region53: #{tpu_custom_call.1} parent=11 // pred_check
          %p365 = pneg %p292
        $region54: #{tpu_custom_call.1} parent=11 // pred_check_branch
          %367 = sbr.rel (%p365) target = $region56
        $region55: #{tpu_custom_call.1} parent=11 // pred_region
          _
        $region56: #{tpu_custom_call.1} parent=11 // pred_fallthru
          _
      $region12: #{tpu_custom_call.1} parent=5 // pred_fallthru
        _
      %p368 = scmp.lt.s32.totalorder %s21, 2
      // Predicated region
      $region57: #{tpu_custom_call.1} parent=5 // pred_check
        %p369 = pneg %p368
      $region58: #{tpu_custom_call.1} parent=5 // pred_check_branch
        %371 = sbr.rel (%p369) target = $region60
      $region59: #{tpu_custom_call.1} parent=5 // pred_region
        // Predicated region
        $region61: #{tpu_custom_call.1} parent=59 // pred_check
          %p372 = pneg %p55
        $region62: #{tpu_custom_call.1} parent=59 // pred_check_branch
          %374 = sbr.rel (%p372) target = $region64
        $region63: #{tpu_custom_call.1} parent=59 // pred_region
          %s375 = smul.u32 4, %s29
          %p376 = scmp.lt.s32.totalorder %s28, 1
          %s377 = scalar_select %p376, %s28, 1
          %p378 = scmp.lt.s32.totalorder %s375, 3
          %s379 = scalar_select %p378, %s375, 3
          %s380 = smul.addr %s379, 2
          %s381 = smul.addr %s377, 8
          %s382 = sadd.s32 %s380, %s381
          %s383 = smul.addr %s382, 8
          %s384 = scalar_lea.vmem %s0, %s383
          %s385 = smul.u32 4, %s29
        $region64: #{tpu_custom_call.1} parent=59 // pred_fallthru
          _
      $region60: #{tpu_custom_call.1} parent=5 // pred_fallthru
        _
      %p386 = scmp.le.s32.totalorder 1, %s21
      %p387 = scmp.lt.s32.totalorder %s21, 3
      %p388 = pnand %p386, %p387
      %p389 = pneg %p388
      // Predicated region
      $region65: #{tpu_custom_call.1} parent=5 // pred_check
        _
      $region66: #{tpu_custom_call.1} parent=5 // pred_check_branch
        %391 = sbr.rel (%p388) target = $region68
      $region67: #{tpu_custom_call.1} parent=5 // pred_region
        %s392 = ssub.s32 %s21, 1
        %s393 = smul.u32 4, %s31
        %p394 = scmp.lt.s32.totalorder %s30, 1
        %s395 = scalar_select %p394, %s30, 1
        %p396 = scmp.lt.s32.totalorder %s393, 3
        %s397 = scalar_select %p396, %s393, 3
        %s398 = smul.addr %s397, 2
        %s399 = smul.addr %s395, 8
        %s400 = sadd.s32 %s398, %s399
        %s401 = smul.addr %s400, 8
        %s402 = scalar_lea.vmem %s0, %s401
        %p403 = pneg %p61
        %p404 = pneg %p58
        %p405 = pneg %p82
        %p406 = pneg %p79
        %p407 = pneg %p103
        %p408 = pneg %p100
        %p409 = pneg %p124
        %p410 = pneg %p121
        %p411 = pneg %p145
        %p412 = pneg %p142
        %p413 = pneg %p166
        %p414 = pneg %p163
        %p415 = pneg %p187
        %p416 = pneg %p184
        %p417 = pneg %p208
        %p418 = pneg %p205
        %p419 = pneg %p229
        %p420 = pneg %p226
        %p421 = pneg %p250
        %p422 = pneg %p247
        %p423 = pneg %p271
        %p424 = pneg %p268
        %p425 = pneg %p292
        %p426 = pneg %p289
        %p427 = pneg %p320
        %p428 = pneg %p317
        %s429 = sand.u32 %s307, 1
        %s430 = scalar_lea.sflag [#allocation3], %s429
        %s431 = sand.u32 %s307, 1
        %s432 = smul.addr %s431, 64
        %s433 = scalar_lea.vmem [#allocation2], %s432
        %s434 = smul.u32 4, %s31
        %p435 = scmp.lt.s32.totalorder %s30, 1
        %s436 = scalar_select %p435, %s30, 1
        %p437 = scmp.lt.s32.totalorder %s434, 3
        %s438 = scalar_select %p437, %s434, 3
        %s439 = smul.addr %s438, 2
        %s440 = smul.addr %s436, 8
        %s441 = sadd.s32 %s439, %s440
        %s442 = smul.addr %s441, 8
        %s443 = scalar_lea.vmem %s0, %s442
        %s444 = smul.u32 4, %s31
        %s445 = smul.u32 4, %s31
        %v447 = vld [vmem:[%s443] sm:$0xff]
        %v448 = vld [vmem:[%s443 + $0x8] sm:$0xff]
        %v449 = vld [vmem:[%s443 + $0x10] sm:$0xff]
        %v450 = vld [vmem:[%s443 + $0x18] sm:$0xff]
        %v451 = vld [vmem:[%s443 + $0x20] sm:$0xff]
        %v452 = vld [vmem:[%s443 + $0x28] sm:$0xff]
        %v453 = vld [vmem:[%s443 + $0x30] sm:$0xff]
        %v454 = vld [vmem:[%s443 + $0x38] sm:$0xff]
        %vm455 = vcmask 261120
        %v456 = vsel %vm455, %v447, 0.0
        %457 = vadd.xlane.f32.xlu0 %v456
        %v458 = vpop.xlane.xlu0 %457
        %v459 = vsel %vm455, %v448, 0.0
        %460 = vadd.xlane.f32.xlu0 %v459
        %v461 = vpop.xlane.xlu0 %460
        %v462 = vsel %vm455, %v449, 0.0
        %463 = vadd.xlane.f32.xlu0 %v462
        %v464 = vpop.xlane.xlu0 %463
        %v465 = vsel %vm455, %v450, 0.0
        %466 = vadd.xlane.f32.xlu0 %v465
        %v467 = vpop.xlane.xlu0 %466
        %v468 = vsel %vm455, %v451, 0.0
        %469 = vadd.xlane.f32.xlu0 %v468
        %v470 = vpop.xlane.xlu0 %469
        %v471 = vsel %vm455, %v452, 0.0
        %472 = vadd.xlane.f32.xlu0 %v471
        %v473 = vpop.xlane.xlu0 %472
        %v474 = vsel %vm455, %v453, 0.0
        %475 = vadd.xlane.f32.xlu0 %v474
        %v476 = vpop.xlane.xlu0 %475
        %v477 = vsel %vm455, %v454, 0.0
        %478 = vadd.xlane.f32.xlu0 %v477
        %v479 = vpop.xlane.xlu0 %478
        %v480 = vrcp.pop 32.0
        %v481 = vmul.f32 %v458, %v480
        %v482 = vmul.f32 %v461, %v480
        %v483 = vmul.f32 %v464, %v480
        %v484 = vmul.f32 %v467, %v480
        %v485 = vmul.f32 %v470, %v480
        %v486 = vmul.f32 %v473, %v480
        %v487 = vmul.f32 %v476, %v480
        %v488 = vmul.f32 %v479, %v480
        %v489 = vsub.f32 %v447, %v481
        %v490 = vsub.f32 %v448, %v482
        %v491 = vsub.f32 %v449, %v483
        %v492 = vsub.f32 %v450, %v484
        %v493 = vsub.f32 %v451, %v485
        %v494 = vsub.f32 %v452, %v486
        %v495 = vsub.f32 %v453, %v487
        %v496 = vsub.f32 %v454, %v488
        %v497 = vmul.f32 %v489, %v489
        %v498 = vmul.f32 %v490, %v490
        %v499 = vmul.f32 %v491, %v491
        %v500 = vmul.f32 %v492, %v492
        %v501 = vmul.f32 %v493, %v493
        %v502 = vmul.f32 %v494, %v494
        %v503 = vmul.f32 %v495, %v495
        %v504 = vmul.f32 %v496, %v496
        %v505 = vsel %vm455, %v497, 0.0
        %506 = vadd.xlane.f32.xlu0 %v505
        %v507 = vpop.xlane.xlu0 %506
        %v508 = vsel %vm455, %v498, 0.0
        %509 = vadd.xlane.f32.xlu0 %v508
        %v510 = vpop.xlane.xlu0 %509
        %v511 = vsel %vm455, %v499, 0.0
        %512 = vadd.xlane.f32.xlu0 %v511
        %v513 = vpop.xlane.xlu0 %512
        %v514 = vsel %vm455, %v500, 0.0
        %515 = vadd.xlane.f32.xlu0 %v514
        %v516 = vpop.xlane.xlu0 %515
        %v517 = vsel %vm455, %v501, 0.0
        %518 = vadd.xlane.f32.xlu0 %v517
        %v519 = vpop.xlane.xlu0 %518
        %v520 = vsel %vm455, %v502, 0.0
        %521 = vadd.xlane.f32.xlu0 %v520
        %v522 = vpop.xlane.xlu0 %521
        %v523 = vsel %vm455, %v503, 0.0
        %524 = vadd.xlane.f32.xlu0 %v523
        %v525 = vpop.xlane.xlu0 %524
        %v526 = vsel %vm455, %v504, 0.0
        %527 = vadd.xlane.f32.xlu0 %v526
        %v528 = vpop.xlane.xlu0 %527
        %v529 = vmul.f32 %v507, %v480
        %v530 = vmul.f32 %v510, %v480
        %v531 = vmul.f32 %v513, %v480
        %v532 = vmul.f32 %v516, %v480
        %v533 = vmul.f32 %v519, %v480
        %v534 = vmul.f32 %v522, %v480
        %v535 = vmul.f32 %v525, %v480
        %v536 = vmul.f32 %v528, %v480
        %v537 = vadd.f32 %v529, 1e-05
        %v538 = vadd.f32 %v530, 1e-05
        %v539 = vadd.f32 %v531, 1e-05
        %v540 = vadd.f32 %v532, 1e-05
        %v541 = vadd.f32 %v533, 1e-05
        %v542 = vadd.f32 %v534, 1e-05
        %v543 = vadd.f32 %v535, 1e-05
        %v544 = vadd.f32 %v536, 1e-05
        %v545 = vrsqrt.pop %v537
        %v546 = vrsqrt.pop %v538
        %v547 = vrsqrt.pop %v539
        %v548 = vrsqrt.pop %v540
        %v549 = vrsqrt.pop %v541
        %v550 = vrsqrt.pop %v542
        %v551 = vrsqrt.pop %v543
        %v552 = vrsqrt.pop %v544
        %v553 = vmul.f32 %v489, %v545
        %v554 = vmul.f32 %v490, %v546
        %v555 = vmul.f32 %v491, %v547
        %v556 = vmul.f32 %v492, %v548
        %v557 = vmul.f32 %v493, %v549
        %v558 = vmul.f32 %v494, %v550
        %v559 = vmul.f32 %v495, %v551
        %v560 = vmul.f32 %v496, %v552
        %v561 = vld [vmem:[%s2] sm:$0x1]
        %v563 = vlaneseq
        %v564 = vshrl.u32 %v563, 7
        %v565 = vsub.s32 0, %v564
        %v566 = vrot.slane %v561, %v565
        %v568 = vmul.f32 %v553, %v566
        %v569 = vmul.f32 %v554, %v566
        %v570 = vmul.f32 %v555, %v566
        %v571 = vmul.f32 %v556, %v566
        %v572 = vmul.f32 %v557, %v566
        %v573 = vmul.f32 %v558, %v566
        %v574 = vmul.f32 %v559, %v566
        %v575 = vmul.f32 %v560, %v566
        %v576 = vld [vmem:[%s3] sm:$0x1]
        %v578 = vlaneseq
        %v579 = vshrl.u32 %v578, 7
        %v580 = vsub.s32 0, %v579
        %v581 = vrot.slane %v576, %v580
        %v583 = vadd.f32 %v568, %v581
        %v584 = vadd.f32 %v569, %v581
        %v585 = vadd.f32 %v570, %v581
        %v586 = vadd.f32 %v571, %v581
        %v587 = vadd.f32 %v572, %v581
        %v588 = vadd.f32 %v573, %v581
        %v589 = vadd.f32 %v574, %v581
        %v590 = vadd.f32 %v575, %v581
        %v591 = vpack.c.bf16 %v584, %v583
        %v592 = vpack.c.bf16 %v586, %v585
        %v593 = vpack.c.bf16 %v588, %v587
        %v594 = vpack.c.bf16 %v590, %v589
        %v595 = vld [vmem:[%s4] sm:$0xf]
        %v596 = vld [vmem:[%s4 + $0x4] sm:$0xf]
        %v597 = vld [vmem:[%s4 + $0x8] sm:$0xf]
        %v598 = vld [vmem:[%s4 + $0xc] sm:$0xf]
        %v599 = vld [vmem:[%s7] sm:$0x1]
        %v601 = vlaneseq
        %v602 = vshrl.u32 %v601, 7
        %v603 = vsub.s32 0, %v602
        %v604 = vrot.slane %v599, %v603
        %v610 = vunpack.c.l.b16 %v595
        %v611 = vunpack.c.l.b16 %v596
        %v612 = vunpack.c.l.b16 %v597
        %v613 = vunpack.c.l.b16 %v598
        %v614 = vpack.c.b16 %v611, %v610
        %v615 = vpack.c.b16 %v613, %v612
        %v619 = vsel %vm455, %v591, 0
        %v622 = vsel %vm455, %v592, 0
        %v625 = vsel %vm455, %v593, 0
        %v628 = vsel %vm455, %v594, 0
        %630 = vmatprep.subr.bf16.mxu0 0
        %631 = vmatpush1.bf16.msra.mxu0 %v614
        %632 = vmatprep.subr.bf16.mxu0 0
        %633 = vmatpush1.bf16.msra.mxu0 %v615
        %634 = vmatprep.subr.bf16.mxu0 0
        %635 = vmatpush1.bf16.msra.mxu0 0
        %636 = vmatprep.subr.bf16.mxu0 0
        %637 = vmatpush1.bf16.msra.mxu0 0
        %638 = vmatprep.subr.bf16.mxu0 0
        %639 = vmatpush1.bf16.msra.mxu0 0
        %640 = vmatprep.subr.bf16.mxu0 0
        %641 = vmatpush1.bf16.msra.mxu0 0
        %642 = vmatprep.subr.bf16.mxu0 0
        %643 = vmatpush1.bf16.msra.mxu0 0
        %644 = vmatprep.subr.bf16.mxu0 0
        %645 = vmatpush1.bf16.msra.mxu0 0
        %646 = vmatprep.subr.bf16.mxu0 0
        %647 = vmatpush1.bf16.msra.mxu0 0
        %648 = vmatprep.subr.bf16.mxu0 0
        %649 = vmatpush1.bf16.msra.mxu0 0
        %650 = vmatprep.subr.bf16.mxu0 0
        %651 = vmatpush1.bf16.msra.mxu0 0
        %652 = vmatprep.subr.bf16.mxu0 0
        %653 = vmatpush1.bf16.msra.mxu0 0
        %654 = vmatprep.subr.bf16.mxu0 0
        %655 = vmatpush1.bf16.msra.mxu0 0
        %656 = vmatprep.subr.bf16.mxu0 0
        %657 = vmatpush1.bf16.msra.mxu0 0
        %658 = vmatprep.subr.bf16.mxu0 0
        %659 = vmatpush1.bf16.msra.mxu0 0
        %660 = vmatprep.subr.bf16.mxu0 0
        %661 = vmatpush1.bf16.msra.mxu0 0
        %662 = vmatprep.mubr.bf16.mxu0 0
        %663 = vmatmul.mubr.bf16.gmra.mrb[0].mxu0 %v619
        %v664 = vpop.f32.mrb[0].mxu0
        %v665 = vadd.f32 %v604, %v664
        %v666 = vpop.f32.mrb[0].mxu0
        %v667 = vpop.f32.mrb[0].mxu0
        %v668 = vadd.f32 %v604, %v667
        %v669 = vpop.f32.mrb[0].mxu0
        %670 = vmatprep.mubr.bf16.mxu0 0
        %671 = vmatmul.mubr.bf16.gmra.mrb[0].mxu0 %v622
        %v672 = vpop.f32.mrb[0].mxu0
        %v673 = vadd.f32 %v604, %v672
        %v674 = vpop.f32.mrb[0].mxu0
        %v675 = vpop.f32.mrb[0].mxu0
        %v676 = vadd.f32 %v604, %v675
        %v677 = vpop.f32.mrb[0].mxu0
        %678 = vmatprep.mubr.bf16.mxu0 0
        %679 = vmatmul.mubr.bf16.gmra.mrb[0].mxu0 %v625
        %v680 = vpop.f32.mrb[0].mxu0
        %v681 = vadd.f32 %v604, %v680
        %v682 = vpop.f32.mrb[0].mxu0
        %v683 = vpop.f32.mrb[0].mxu0
        %v684 = vadd.f32 %v604, %v683
        %v685 = vpop.f32.mrb[0].mxu0
        %686 = vmatprep.mubr.bf16.mxu0 0
        %687 = vmatmul.mubr.bf16.gmra.mrb[0].mxu0 %v628
        %v688 = vpop.f32.mrb[0].mxu0
        %v689 = vadd.f32 %v604, %v688
        %v690 = vpop.f32.mrb[0].mxu0
        %v691 = vpop.f32.mrb[0].mxu0
        %v692 = vadd.f32 %v604, %v691
        %v693 = vpop.f32.mrb[0].mxu0
        %694 = vdwg.mxu0
        %v695 = vld [vmem:[%s5] sm:$0xf]
        %v696 = vld [vmem:[%s5 + $0x4] sm:$0xf]
        %v697 = vld [vmem:[%s5 + $0x8] sm:$0xf]
        %v698 = vld [vmem:[%s5 + $0xc] sm:$0xf]
        %v699 = vld [vmem:[%s8] sm:$0x1]
        %v701 = vlaneseq
        %v702 = vshrl.u32 %v701, 7
        %v703 = vsub.s32 0, %v702
        %v704 = vrot.slane %v699, %v703
        %v710 = vunpack.c.l.b16 %v695
        %v711 = vunpack.c.l.b16 %v696
        %v712 = vunpack.c.l.b16 %v697
        %v713 = vunpack.c.l.b16 %v698
        %v714 = vpack.c.b16 %v711, %v710
        %v715 = vpack.c.b16 %v713, %v712
        %718 = vmatprep.subr.bf16.mxu0 0
        %719 = vmatpush1.bf16.msra.mxu0 %v714
        %720 = vmatprep.subr.bf16.mxu0 0
        %721 = vmatpush1.bf16.msra.mxu0 %v715
        %722 = vmatprep.subr.bf16.mxu0 0
        %723 = vmatpush1.bf16.msra.mxu0 0
        %724 = vmatprep.subr.bf16.mxu0 0
        %725 = vmatpush1.bf16.msra.mxu0 0
        %726 = vmatprep.subr.bf16.mxu0 0
        %727 = vmatpush1.bf16.msra.mxu0 0
        %728 = vmatprep.subr.bf16.mxu0 0
        %729 = vmatpush1.bf16.msra.mxu0 0
        %730 = vmatprep.subr.bf16.mxu0 0
        %731 = vmatpush1.bf16.msra.mxu0 0
        %732 = vmatprep.subr.bf16.mxu0 0
        %733 = vmatpush1.bf16.msra.mxu0 0
        %734 = vmatprep.subr.bf16.mxu0 0
        %735 = vmatpush1.bf16.msra.mxu0 0
        %736 = vmatprep.subr.bf16.mxu0 0
        %737 = vmatpush1.bf16.msra.mxu0 0
        %738 = vmatprep.subr.bf16.mxu0 0
        %739 = vmatpush1.bf16.msra.mxu0 0
        %740 = vmatprep.subr.bf16.mxu0 0
        %741 = vmatpush1.bf16.msra.mxu0 0
        %742 = vmatprep.subr.bf16.mxu0 0
        %743 = vmatpush1.bf16.msra.mxu0 0
        %744 = vmatprep.subr.bf16.mxu0 0
        %745 = vmatpush1.bf16.msra.mxu0 0
        %746 = vmatprep.subr.bf16.mxu0 0
        %747 = vmatpush1.bf16.msra.mxu0 0
        %748 = vmatprep.subr.bf16.mxu0 0
        %749 = vmatpush1.bf16.msra.mxu0 0
        %750 = vmatprep.mubr.bf16.mxu0 0
        %751 = vmatmul.mubr.bf16.gmra.mrb[0].mxu0 %v619
        %v752 = vpop.f32.mrb[0].mxu0
        %v753 = vadd.f32 %v704, %v752
        %v754 = vpop.f32.mrb[0].mxu0
        %v755 = vpop.f32.mrb[0].mxu0
        %v756 = vadd.f32 %v704, %v755
        %v757 = vpop.f32.mrb[0].mxu0
        %758 = vmatprep.mubr.bf16.mxu0 0
        %759 = vmatmul.mubr.bf16.gmra.mrb[0].mxu0 %v622
        %v760 = vpop.f32.mrb[0].mxu0
        %v761 = vadd.f32 %v704, %v760
        %v762 = vpop.f32.mrb[0].mxu0
        %v763 = vpop.f32.mrb[0].mxu0
        %v764 = vadd.f32 %v704, %v763
        %v765 = vpop.f32.mrb[0].mxu0
        %766 = vmatprep.mubr.bf16.mxu0 0
        %767 = vmatmul.mubr.bf16.gmra.mrb[0].mxu0 %v625
        %v768 = vpop.f32.mrb[0].mxu0
        %v769 = vadd.f32 %v704, %v768
        %v770 = vpop.f32.mrb[0].mxu0
        %v771 = vpop.f32.mrb[0].mxu0
        %v772 = vadd.f32 %v704, %v771
        %v773 = vpop.f32.mrb[0].mxu0
        %774 = vmatprep.mubr.bf16.mxu0 0
        %775 = vmatmul.mubr.bf16.gmra.mrb[0].mxu0 %v628
        %v776 = vpop.f32.mrb[0].mxu0
        %v777 = vadd.f32 %v704, %v776
        %v778 = vpop.f32.mrb[0].mxu0
        %v779 = vpop.f32.mrb[0].mxu0
        %v780 = vadd.f32 %v704, %v779
        %v781 = vpop.f32.mrb[0].mxu0
        %782 = vdwg.mxu0
        %v783 = vld [vmem:[%s6] sm:$0xf]
        %v784 = vld [vmem:[%s6 + $0x4] sm:$0xf]
        %v785 = vld [vmem:[%s6 + $0x8] sm:$0xf]
        %v786 = vld [vmem:[%s6 + $0xc] sm:$0xf]
        %v787 = vld [vmem:[%s9] sm:$0x1]
        %v789 = vlaneseq
        %v790 = vshrl.u32 %v789, 7
        %v791 = vsub.s32 0, %v790
        %v792 = vrot.slane %v787, %v791
        %v798 = vunpack.c.l.b16 %v783
        %v799 = vunpack.c.l.b16 %v784
        %v800 = vunpack.c.l.b16 %v785
        %v801 = vunpack.c.l.b16 %v786
        %v802 = vpack.c.b16 %v799, %v798
        %v803 = vpack.c.b16 %v801, %v800
        %806 = vmatprep.subr.bf16.mxu0 0
        %807 = vmatpush1.bf16.msra.mxu0 %v802
        %808 = vmatprep.subr.bf16.mxu0 0
        %809 = vmatpush1.bf16.msra.mxu0 %v803
        %810 = vmatprep.subr.bf16.mxu0 0
        %811 = vmatpush1.bf16.msra.mxu0 0
        %812 = vmatprep.subr.bf16.mxu0 0
        %813 = vmatpush1.bf16.msra.mxu0 0
        %814 = vmatprep.subr.bf16.mxu0 0
        %815 = vmatpush1.bf16.msra.mxu0 0
        %816 = vmatprep.subr.bf16.mxu0 0
        %817 = vmatpush1.bf16.msra.mxu0 0
        %818 = vmatprep.subr.bf16.mxu0 0
        %819 = vmatpush1.bf16.msra.mxu0 0
        %820 = vmatprep.subr.bf16.mxu0 0
        %821 = vmatpush1.bf16.msra.mxu0 0
        %822 = vmatprep.subr.bf16.mxu0 0
        %823 = vmatpush1.bf16.msra.mxu0 0
        %824 = vmatprep.subr.bf16.mxu0 0
        %825 = vmatpush1.bf16.msra.mxu0 0
        %826 = vmatprep.subr.bf16.mxu0 0
        %827 = vmatpush1.bf16.msra.mxu0 0
        %828 = vmatprep.subr.bf16.mxu0 0
        %829 = vmatpush1.bf16.msra.mxu0 0
        %830 = vmatprep.subr.bf16.mxu0 0
        %831 = vmatpush1.bf16.msra.mxu0 0
        %832 = vmatprep.subr.bf16.mxu0 0
        %833 = vmatpush1.bf16.msra.mxu0 0
        %834 = vmatprep.subr.bf16.mxu0 0
        %835 = vmatpush1.bf16.msra.mxu0 0
        %836 = vmatprep.subr.bf16.mxu0 0
        %837 = vmatpush1.bf16.msra.mxu0 0
        %838 = vmatprep.mubr.bf16.mxu0 0
        %839 = vmatmul.mubr.bf16.gmra.mrb[0].mxu0 %v619
        %v840 = vpop.f32.mrb[0].mxu0
        %v841 = vadd.f32 %v792, %v840
        %v842 = vpop.f32.mrb[0].mxu0
        %v843 = vpop.f32.mrb[0].mxu0
        %v844 = vadd.f32 %v792, %v843
        %v845 = vpop.f32.mrb[0].mxu0
        %846 = vmatprep.mubr.bf16.mxu0 0
        %847 = vmatmul.mubr.bf16.gmra.mrb[0].mxu0 %v622
        %v848 = vpop.f32.mrb[0].mxu0
        %v849 = vadd.f32 %v792, %v848
        %v850 = vpop.f32.mrb[0].mxu0
        %v851 = vpop.f32.mrb[0].mxu0
        %v852 = vadd.f32 %v792, %v851
        %v853 = vpop.f32.mrb[0].mxu0
        %854 = vmatprep.mubr.bf16.mxu0 0
        %855 = vmatmul.mubr.bf16.gmra.mrb[0].mxu0 %v625
        %v856 = vpop.f32.mrb[0].mxu0
        %v857 = vadd.f32 %v792, %v856
        %v858 = vpop.f32.mrb[0].mxu0
        %v859 = vpop.f32.mrb[0].mxu0
        %v860 = vadd.f32 %v792, %v859
        %v861 = vpop.f32.mrb[0].mxu0
        %862 = vmatprep.mubr.bf16.mxu0 0
        %863 = vmatmul.mubr.bf16.gmra.mrb[0].mxu0 %v628
        %v864 = vpop.f32.mrb[0].mxu0
        %v865 = vadd.f32 %v792, %v864
        %v866 = vpop.f32.mrb[0].mxu0
        %v867 = vpop.f32.mrb[0].mxu0
        %v868 = vadd.f32 %v792, %v867
        %v869 = vpop.f32.mrb[0].mxu0
        %870 = vdwg.mxu0
        %v871 = vpack.c.bf16 %v668, %v665
        %v872 = vpack.c.bf16 %v676, %v673
        %v873 = vpack.c.bf16 %v684, %v681
        %v874 = vpack.c.bf16 %v692, %v689
        %v875 = vpack.c.bf16 %v756, %v753
        %v876 = vpack.c.bf16 %v764, %v761
        %v877 = vpack.c.bf16 %v772, %v769
        %v878 = vpack.c.bf16 %v780, %v777
        %v879 = vpack.c.bf16 %v844, %v841
        %v880 = vpack.c.bf16 %v852, %v849
        %v881 = vpack.c.bf16 %v860, %v857
        %v882 = vpack.c.bf16 %v868, %v865
        %v883 = vld [vmem:[%s1] sm:$0xff]
        %v884 = vld [vmem:[%s1 + $0x8] sm:$0xff]
        %vm885 = vcmask 64512
        %v887 = vsel %vm885, %v871, 0
        %v890 = vsel %vm885, %v875, 0
        %892 = vmatprep.subr.bf16.mxu0 0
        %893 = vmatpush1.bf16.xpose.msra.mxu0 %v890
        %894 = vmatprep.subr.bf16.mxu0 0
        %895 = vmatpush1.bf16.xpose.msra.mxu0 0
        %896 = vmatprep.subr.bf16.mxu0 0
        %897 = vmatpush1.bf16.xpose.msra.mxu0 0
        %898 = vmatprep.subr.bf16.mxu0 0
        %899 = vmatpush1.bf16.xpose.msra.mxu0 0
        %900 = vmatprep.subr.bf16.mxu0 0
        %901 = vmatpush1.bf16.xpose.msra.mxu0 0
        %902 = vmatprep.subr.bf16.mxu0 0
        %903 = vmatpush1.bf16.xpose.msra.mxu0 0
        %904 = vmatprep.subr.bf16.mxu0 0
        %905 = vmatpush1.bf16.xpose.msra.mxu0 0
        %906 = vmatprep.subr.bf16.mxu0 0
        %907 = vmatpush1.bf16.xpose.msra.mxu0 0
        %908 = vmatprep.subr.bf16.mxu0 0
        %909 = vmatpush1.bf16.xpose.msra.mxu0 0
        %910 = vmatprep.subr.bf16.mxu0 0
        %911 = vmatpush1.bf16.xpose.msra.mxu0 0
        %912 = vmatprep.subr.bf16.mxu0 0
        %913 = vmatpush1.bf16.xpose.msra.mxu0 0
        %914 = vmatprep.subr.bf16.mxu0 0
        %915 = vmatpush1.bf16.xpose.msra.mxu0 0
        %916 = vmatprep.subr.bf16.mxu0 0
        %917 = vmatpush1.bf16.xpose.msra.mxu0 0
        %918 = vmatprep.subr.bf16.mxu0 0
        %919 = vmatpush1.bf16.xpose.msra.mxu0 0
        %920 = vmatprep.subr.bf16.mxu0 0
        %921 = vmatpush1.bf16.xpose.msra.mxu0 0
        %922 = vmatprep.subr.bf16.mxu0 0
        %923 = vmatpush1.bf16.xpose.msra.mxu0 0
        %924 = vmatprep.mubr.bf16.mxu0 0
        %925 = vmatmul.mubr.bf16.gmra.mrb[0].mxu0 %v887
        %v926 = vpop.f32.mrb[0].mxu0
        %v927 = vadd.f32 %v883, %v926
        %v928 = vpop.f32.mrb[0].mxu0
        %v929 = vpop.f32.mrb[0].mxu0
        %v930 = vadd.f32 %v884, %v929
        %v931 = vpop.f32.mrb[0].mxu0
        %932 = vdwg.mxu0
        %v934 = vsel %vm885, %v872, 0
        %v937 = vsel %vm885, %v876, 0
        %939 = vmatprep.subr.bf16.mxu0 0
        %940 = vmatpush1.bf16.xpose.msra.mxu0 %v937
        %941 = vmatprep.subr.bf16.mxu0 0
        %942 = vmatpush1.bf16.xpose.msra.mxu0 0
        %943 = vmatprep.subr.bf16.mxu0 0
        %944 = vmatpush1.bf16.xpose.msra.mxu0 0
        %945 = vmatprep.subr.bf16.mxu0 0
        %946 = vmatpush1.bf16.xpose.msra.mxu0 0
        %947 = vmatprep.subr.bf16.mxu0 0
        %948 = vmatpush1.bf16.xpose.msra.mxu0 0
        %949 = vmatprep.subr.bf16.mxu0 0
        %950 = vmatpush1.bf16.xpose.msra.mxu0 0
        %951 = vmatprep.subr.bf16.mxu0 0
        %952 = vmatpush1.bf16.xpose.msra.mxu0 0
        %953 = vmatprep.subr.bf16.mxu0 0
        %954 = vmatpush1.bf16.xpose.msra.mxu0 0
        %955 = vmatprep.subr.bf16.mxu0 0
        %956 = vmatpush1.bf16.xpose.msra.mxu0 0
        %957 = vmatprep.subr.bf16.mxu0 0
        %958 = vmatpush1.bf16.xpose.msra.mxu0 0
        %959 = vmatprep.subr.bf16.mxu0 0
        %960 = vmatpush1.bf16.xpose.msra.mxu0 0
        %961 = vmatprep.subr.bf16.mxu0 0
        %962 = vmatpush1.bf16.xpose.msra.mxu0 0
        %963 = vmatprep.subr.bf16.mxu0 0
        %964 = vmatpush1.bf16.xpose.msra.mxu0 0
        %965 = vmatprep.subr.bf16.mxu0 0
        %966 = vmatpush1.bf16.xpose.msra.mxu0 0
        %967 = vmatprep.subr.bf16.mxu0 0
        %968 = vmatpush1.bf16.xpose.msra.mxu0 0
        %969 = vmatprep.subr.bf16.mxu0 0
        %970 = vmatpush1.bf16.xpose.msra.mxu0 0
        %971 = vmatprep.mubr.bf16.mxu0 0
        %972 = vmatmul.mubr.bf16.gmra.mrb[0].mxu0 %v934
        %v973 = vpop.f32.mrb[0].mxu0
        %v974 = vadd.f32 %v883, %v973
        %v975 = vpop.f32.mrb[0].mxu0
        %v976 = vpop.f32.mrb[0].mxu0
        %v977 = vadd.f32 %v884, %v976
        %v978 = vpop.f32.mrb[0].mxu0
        %979 = vdwg.mxu0
        %v981 = vsel %vm885, %v873, 0
        %v984 = vsel %vm885, %v877, 0
        %986 = vmatprep.subr.bf16.mxu0 0
        %987 = vmatpush1.bf16.xpose.msra.mxu0 %v984
        %988 = vmatprep.subr.bf16.mxu0 0
        %989 = vmatpush1.bf16.xpose.msra.mxu0 0
        %990 = vmatprep.subr.bf16.mxu0 0
        %991 = vmatpush1.bf16.xpose.msra.mxu0 0
        %992 = vmatprep.subr.bf16.mxu0 0
        %993 = vmatpush1.bf16.xpose.msra.mxu0 0
        %994 = vmatprep.subr.bf16.mxu0 0
        %995 = vmatpush1.bf16.xpose.msra.mxu0 0
        %996 = vmatprep.subr.bf16.mxu0 0
        %997 = vmatpush1.bf16.xpose.msra.mxu0 0
        %998 = vmatprep.subr.bf16.mxu0 0
        %999 = vmatpush1.bf16.xpose.msra.mxu0 0
        %1000 = vmatprep.subr.bf16.mxu0 0
        %1001 = vmatpush1.bf16.xpose.msra.mxu0 0
        %1002 = vmatprep.subr.bf16.mxu0 0
        %1003 = vmatpush1.bf16.xpose.msra.mxu0 0
        %1004 = vmatprep.subr.bf16.mxu0 0
        %1005 = vmatpush1.bf16.xpose.msra.mxu0 0
        %1006 = vmatprep.subr.bf16.mxu0 0
        %1007 = vmatpush1.bf16.xpose.msra.mxu0 0
        %1008 = vmatprep.subr.bf16.mxu0 0
        %1009 = vmatpush1.bf16.xpose.msra.mxu0 0
        %1010 = vmatprep.subr.bf16.mxu0 0
        %1011 = vmatpush1.bf16.xpose.msra.mxu0 0
        %1012 = vmatprep.subr.bf16.mxu0 0
        %1013 = vmatpush1.bf16.xpose.msra.mxu0 0
        %1014 = vmatprep.subr.bf16.mxu0 0
        %1015 = vmatpush1.bf16.xpose.msra.mxu0 0
        %1016 = vmatprep.subr.bf16.mxu0 0
        %1017 = vmatpush1.bf16.xpose.msra.mxu0 0
        %1018 = vmatprep.mubr.bf16.mxu0 0
        %1019 = vmatmul.mubr.bf16.gmra.mrb[0].mxu0 %v981
        %v1020 = vpop.f32.mrb[0].mxu0
        %v1021 = vadd.f32 %v883, %v1020
        %v1022 = vpop.f32.mrb[0].mxu0
        %v1023 = vpop.f32.mrb[0].mxu0
        %v1024 = vadd.f32 %v884, %v1023
        %v1025 = vpop.f32.mrb[0].mxu0
        %1026 = vdwg.mxu0
        %v1028 = vsel %vm885, %v874, 0
        %v1031 = vsel %vm885, %v878, 0
        %1033 = vmatprep.subr.bf16.mxu0 0
        %1034 = vmatpush1.bf16.xpose.msra.mxu0 %v1031
        %1035 = vmatprep.subr.bf16.mxu0 0
        %1036 = vmatpush1.bf16.xpose.msra.mxu0 0
        %1037 = vmatprep.subr.bf16.mxu0 0
        %1038 = vmatpush1.bf16.xpose.msra.mxu0 0
        %1039 = vmatprep.subr.bf16.mxu0 0
        %1040 = vmatpush1.bf16.xpose.msra.mxu0 0
        %1041 = vmatprep.subr.bf16.mxu0 0
        %1042 = vmatpush1.bf16.xpose.msra.mxu0 0
        %1043 = vmatprep.subr.bf16.mxu0 0
        %1044 = vmatpush1.bf16.xpose.msra.mxu0 0
        %1045 = vmatprep.subr.bf16.mxu0 0
        %1046 = vmatpush1.bf16.xpose.msra.mxu0 0
        %1047 = vmatprep.subr.bf16.mxu0 0
        %1048 = vmatpush1.bf16.xpose.msra.mxu0 0
        %1049 = vmatprep.subr.bf16.mxu0 0
        %1050 = vmatpush1.bf16.xpose.msra.mxu0 0
        %1051 = vmatprep.subr.bf16.mxu0 0
        %1052 = vmatpush1.bf16.xpose.msra.mxu0 0
        %1053 = vmatprep.subr.bf16.mxu0 0
        %1054 = vmatpush1.bf16.xpose.msra.mxu0 0
        %1055 = vmatprep.subr.bf16.mxu0 0
        %1056 = vmatpush1.bf16.xpose.msra.mxu0 0
        %1057 = vmatprep.subr.bf16.mxu0 0
        %1058 = vmatpush1.bf16.xpose.msra.mxu0 0
        %1059 = vmatprep.subr.bf16.mxu0 0
        %1060 = vmatpush1.bf16.xpose.msra.mxu0 0
        %1061 = vmatprep.subr.bf16.mxu0 0
        %1062 = vmatpush1.bf16.xpose.msra.mxu0 0
        %1063 = vmatprep.subr.bf16.mxu0 0
        %1064 = vmatpush1.bf16.xpose.msra.mxu0 0
        %1065 = vmatprep.mubr.bf16.mxu0 0
        %1066 = vmatmul.mubr.bf16.gmra.mrb[0].mxu0 %v1028
        %v1067 = vpop.f32.mrb[0].mxu0
        %v1068 = vadd.f32 %v883, %v1067
        %v1069 = vpop.f32.mrb[0].mxu0
        %v1070 = vpop.f32.mrb[0].mxu0
        %v1071 = vadd.f32 %v884, %v1070
        %v1072 = vpop.f32.mrb[0].mxu0
        %1073 = vdwg.mxu0
        %vm1074 = vcmask 130048
        %v1075 = vsel %vm1074, %v927, -inf
        %1076 = vmax.xlane.f32.xlu0 %v1075
        %v1077 = vpop.xlane.xlu0 %1076
        %v1078 = vsel %vm1074, %v930, -inf
        %1079 = vmax.xlane.f32.xlu0 %v1078
        %v1080 = vpop.xlane.xlu0 %1079
        %v1081 = vsel %vm1074, %v974, -inf
        %1082 = vmax.xlane.f32.xlu0 %v1081
        %v1083 = vpop.xlane.xlu0 %1082
        %v1084 = vsel %vm1074, %v977, -inf
        %1085 = vmax.xlane.f32.xlu0 %v1084
        %v1086 = vpop.xlane.xlu0 %1085
        %v1087 = vsel %vm1074, %v1021, -inf
        %1088 = vmax.xlane.f32.xlu0 %v1087
        %v1089 = vpop.xlane.xlu0 %1088
        %v1090 = vsel %vm1074, %v1024, -inf
        %1091 = vmax.xlane.f32.xlu0 %v1090
        %v1092 = vpop.xlane.xlu0 %1091
        %v1093 = vsel %vm1074, %v1068, -inf
        %1094 = vmax.xlane.f32.xlu0 %v1093
        %v1095 = vpop.xlane.xlu0 %1094
        %v1096 = vsel %vm1074, %v1071, -inf
        %1097 = vmax.xlane.f32.xlu0 %v1096
        %v1098 = vpop.xlane.xlu0 %1097
        %v1099 = vsub.f32 %v927, %v1077
        %v1100 = vsub.f32 %v930, %v1080
        %v1101 = vsub.f32 %v974, %v1083
        %v1102 = vsub.f32 %v977, %v1086
        %v1103 = vsub.f32 %v1021, %v1089
        %v1104 = vsub.f32 %v1024, %v1092
        %v1105 = vsub.f32 %v1068, %v1095
        %v1106 = vsub.f32 %v1071, %v1098
        %v1107 = vmul.f32 %v1099, 1.442695
        %v1108 = vpow.pop %v1107
        %v1109 = vmul.f32 %v1100, 1.442695
        %v1110 = vpow.pop %v1109
        %v1111 = vmul.f32 %v1101, 1.442695
        %v1112 = vpow.pop %v1111
        %v1113 = vmul.f32 %v1102, 1.442695
        %v1114 = vpow.pop %v1113
        %v1115 = vmul.f32 %v1103, 1.442695
        %v1116 = vpow.pop %v1115
        %v1117 = vmul.f32 %v1104, 1.442695
        %v1118 = vpow.pop %v1117
        %v1119 = vmul.f32 %v1105, 1.442695
        %v1120 = vpow.pop %v1119
        %v1121 = vmul.f32 %v1106, 1.442695
        %v1122 = vpow.pop %v1121
        %v1123 = vsel %vm1074, %v1108, 0.0
        %1124 = vadd.xlane.f32.xlu0 %v1123
        %v1125 = vpop.xlane.xlu0 %1124
        %v1126 = vsel %vm1074, %v1110, 0.0
        %1127 = vadd.xlane.f32.xlu0 %v1126
        %v1128 = vpop.xlane.xlu0 %1127
        %v1129 = vsel %vm1074, %v1112, 0.0
        %1130 = vadd.xlane.f32.xlu0 %v1129
        %v1131 = vpop.xlane.xlu0 %1130
        %v1132 = vsel %vm1074, %v1114, 0.0
        %1133 = vadd.xlane.f32.xlu0 %v1132
        %v1134 = vpop.xlane.xlu0 %1133
        %v1135 = vsel %vm1074, %v1116, 0.0
        %1136 = vadd.xlane.f32.xlu0 %v1135
        %v1137 = vpop.xlane.xlu0 %1136
        %v1138 = vsel %vm1074, %v1118, 0.0
        %1139 = vadd.xlane.f32.xlu0 %v1138
        %v1140 = vpop.xlane.xlu0 %1139
        %v1141 = vsel %vm1074, %v1120, 0.0
        %1142 = vadd.xlane.f32.xlu0 %v1141
        %v1143 = vpop.xlane.xlu0 %1142
        %v1144 = vsel %vm1074, %v1122, 0.0
        %1145 = vadd.xlane.f32.xlu0 %v1144
        %v1146 = vpop.xlane.xlu0 %1145
        %v1147 = vrcp.pop %v1125
        %v1148 = vrcp.pop %v1128
        %v1149 = vrcp.pop %v1131
        %v1150 = vrcp.pop %v1134
        %v1151 = vrcp.pop %v1137
        %v1152 = vrcp.pop %v1140
        %v1153 = vrcp.pop %v1143
        %v1154 = vrcp.pop %v1146
        %v1155 = vmul.f32 %v1108, %v1147
        %v1156 = vmul.f32 %v1110, %v1148
        %v1157 = vmul.f32 %v1112, %v1149
        %v1158 = vmul.f32 %v1114, %v1150
        %v1159 = vmul.f32 %v1116, %v1151
        %v1160 = vmul.f32 %v1118, %v1152
        %v1161 = vmul.f32 %v1120, %v1153
        %v1162 = vmul.f32 %v1122, %v1154
        %v1163 = vpack.c.bf16 %v1156, %v1155
        %v1164 = vpack.c.bf16 %v1158, %v1157
        %v1165 = vpack.c.bf16 %v1160, %v1159
        %v1166 = vpack.c.bf16 %v1162, %v1161
        %v1168 = vsel %vm1074, %v1163, 0
        %1170 = vmatprep.subr.bf16.mxu0 0
        %1171 = vmatpush1.bf16.msra.mxu0 %v879
        %1172 = vmatprep.subr.bf16.mxu0 0
        %1173 = vmatpush1.bf16.msra.mxu0 0
        %1174 = vmatprep.subr.bf16.mxu0 0
        %1175 = vmatpush1.bf16.msra.mxu0 0
        %1176 = vmatprep.subr.bf16.mxu0 0
        %1177 = vmatpush1.bf16.msra.mxu0 0
        %1178 = vmatprep.subr.bf16.mxu0 0
        %1179 = vmatpush1.bf16.msra.mxu0 0
        %1180 = vmatprep.subr.bf16.mxu0 0
        %1181 = vmatpush1.bf16.msra.mxu0 0
        %1182 = vmatprep.subr.bf16.mxu0 0
        %1183 = vmatpush1.bf16.msra.mxu0 0
        %1184 = vmatprep.subr.bf16.mxu0 0
        %1185 = vmatpush1.bf16.msra.mxu0 0
        %1186 = vmatprep.subr.bf16.mxu0 0
        %1187 = vmatpush1.bf16.msra.mxu0 0
        %1188 = vmatprep.subr.bf16.mxu0 0
        %1189 = vmatpush1.bf16.msra.mxu0 0
        %1190 = vmatprep.subr.bf16.mxu0 0
        %1191 = vmatpush1.bf16.msra.mxu0 0
        %1192 = vmatprep.subr.bf16.mxu0 0
        %1193 = vmatpush1.bf16.msra.mxu0 0
        %1194 = vmatprep.subr.bf16.mxu0 0
        %1195 = vmatpush1.bf16.msra.mxu0 0
        %1196 = vmatprep.subr.bf16.mxu0 0
        %1197 = vmatpush1.bf16.msra.mxu0 0
        %1198 = vmatprep.subr.bf16.mxu0 0
        %1199 = vmatpush1.bf16.msra.mxu0 0
        %1200 = vmatprep.subr.bf16.mxu0 0
        %1201 = vmatpush1.bf16.msra.mxu0 0
        %1202 = vmatprep.mubr.bf16.mxu0 0
        %1203 = vmatmul.mubr.bf16.gmra.mrb[0].mxu0 %v1168
        %v1204 = vpop.f32.mrb[0].mxu0
        %v1205 = vadd.f32 0.0, %v1204
        %v1206 = vpop.f32.mrb[0].mxu0
        %v1207 = vpop.f32.mrb[0].mxu0
        %v1208 = vadd.f32 0.0, %v1207
        %v1209 = vpop.f32.mrb[0].mxu0
        %1210 = vdwg.mxu0
        %v1212 = vsel %vm1074, %v1164, 0
        %1214 = vmatprep.subr.bf16.mxu0 0
        %1215 = vmatpush1.bf16.msra.mxu0 %v880
        %1216 = vmatprep.subr.bf16.mxu0 0
        %1217 = vmatpush1.bf16.msra.mxu0 0
        %1218 = vmatprep.subr.bf16.mxu0 0
        %1219 = vmatpush1.bf16.msra.mxu0 0
        %1220 = vmatprep.subr.bf16.mxu0 0
        %1221 = vmatpush1.bf16.msra.mxu0 0
        %1222 = vmatprep.subr.bf16.mxu0 0
        %1223 = vmatpush1.bf16.msra.mxu0 0
        %1224 = vmatprep.subr.bf16.mxu0 0
        %1225 = vmatpush1.bf16.msra.mxu0 0
        %1226 = vmatprep.subr.bf16.mxu0 0
        %1227 = vmatpush1.bf16.msra.mxu0 0
        %1228 = vmatprep.subr.bf16.mxu0 0
        %1229 = vmatpush1.bf16.msra.mxu0 0
        %1230 = vmatprep.subr.bf16.mxu0 0
        %1231 = vmatpush1.bf16.msra.mxu0 0
        %1232 = vmatprep.subr.bf16.mxu0 0
        %1233 = vmatpush1.bf16.msra.mxu0 0
        %1234 = vmatprep.subr.bf16.mxu0 0
        %1235 = vmatpush1.bf16.msra.mxu0 0
        %1236 = vmatprep.subr.bf16.mxu0 0
        %1237 = vmatpush1.bf16.msra.mxu0 0
        %1238 = vmatprep.subr.bf16.mxu0 0
        %1239 = vmatpush1.bf16.msra.mxu0 0
        %1240 = vmatprep.subr.bf16.mxu0 0
        %1241 = vmatpush1.bf16.msra.mxu0 0
        %1242 = vmatprep.subr.bf16.mxu0 0
        %1243 = vmatpush1.bf16.msra.mxu0 0
        %1244 = vmatprep.subr.bf16.mxu0 0
        %1245 = vmatpush1.bf16.msra.mxu0 0
        %1246 = vmatprep.mubr.bf16.mxu0 0
        %1247 = vmatmul.mubr.bf16.gmra.mrb[0].mxu0 %v1212
        %v1248 = vpop.f32.mrb[0].mxu0
        %v1249 = vadd.f32 0.0, %v1248
        %v1250 = vpop.f32.mrb[0].mxu0
        %v1251 = vpop.f32.mrb[0].mxu0
        %v1252 = vadd.f32 0.0, %v1251
        %v1253 = vpop.f32.mrb[0].mxu0
        %1254 = vdwg.mxu0
        %v1256 = vsel %vm1074, %v1165, 0
        %1258 = vmatprep.subr.bf16.mxu0 0
        %1259 = vmatpush1.bf16.msra.mxu0 %v881
        %1260 = vmatprep.subr.bf16.mxu0 0
        %1261 = vmatpush1.bf16.msra.mxu0 0
        %1262 = vmatprep.subr.bf16.mxu0 0
        %1263 = vmatpush1.bf16.msra.mxu0 0
        %1264 = vmatprep.subr.bf16.mxu0 0
        %1265 = vmatpush1.bf16.msra.mxu0 0
        %1266 = vmatprep.subr.bf16.mxu0 0
        %1267 = vmatpush1.bf16.msra.mxu0 0
        %1268 = vmatprep.subr.bf16.mxu0 0
        %1269 = vmatpush1.bf16.msra.mxu0 0
        %1270 = vmatprep.subr.bf16.mxu0 0
        %1271 = vmatpush1.bf16.msra.mxu0 0
        %1272 = vmatprep.subr.bf16.mxu0 0
        %1273 = vmatpush1.bf16.msra.mxu0 0
        %1274 = vmatprep.subr.bf16.mxu0 0
        %1275 = vmatpush1.bf16.msra.mxu0 0
        %1276 = vmatprep.subr.bf16.mxu0 0
        %1277 = vmatpush1.bf16.msra.mxu0 0
        %1278 = vmatprep.subr.bf16.mxu0 0
        %1279 = vmatpush1.bf16.msra.mxu0 0
        %1280 = vmatprep.subr.bf16.mxu0 0
        %1281 = vmatpush1.bf16.msra.mxu0 0
        %1282 = vmatprep.subr.bf16.mxu0 0
        %1283 = vmatpush1.bf16.msra.mxu0 0
        %1284 = vmatprep.subr.bf16.mxu0 0
        %1285 = vmatpush1.bf16.msra.mxu0 0
        %1286 = vmatprep.subr.bf16.mxu0 0
        %1287 = vmatpush1.bf16.msra.mxu0 0
        %1288 = vmatprep.subr.bf16.mxu0 0
        %1289 = vmatpush1.bf16.msra.mxu0 0
        %1290 = vmatprep.mubr.bf16.mxu0 0
        %1291 = vmatmul.mubr.bf16.gmra.mrb[0].mxu0 %v1256
        %v1292 = vpop.f32.mrb[0].mxu0
        %v1293 = vadd.f32 0.0, %v1292
        %v1294 = vpop.f32.mrb[0].mxu0
        %v1295 = vpop.f32.mrb[0].mxu0
        %v1296 = vadd.f32 0.0, %v1295
        %v1297 = vpop.f32.mrb[0].mxu0
        %1298 = vdwg.mxu0
        %v1300 = vsel %vm1074, %v1166, 0
        %1302 = vmatprep.subr.bf16.mxu0 0
        %1303 = vmatpush1.bf16.msra.mxu0 %v882
        %1304 = vmatprep.subr.bf16.mxu0 0
        %1305 = vmatpush1.bf16.msra.mxu0 0
        %1306 = vmatprep.subr.bf16.mxu0 0
        %1307 = vmatpush1.bf16.msra.mxu0 0
        %1308 = vmatprep.subr.bf16.mxu0 0
        %1309 = vmatpush1.bf16.msra.mxu0 0
        %1310 = vmatprep.subr.bf16.mxu0 0
        %1311 = vmatpush1.bf16.msra.mxu0 0
        %1312 = vmatprep.subr.bf16.mxu0 0
        %1313 = vmatpush1.bf16.msra.mxu0 0
        %1314 = vmatprep.subr.bf16.mxu0 0
        %1315 = vmatpush1.bf16.msra.mxu0 0
        %1316 = vmatprep.subr.bf16.mxu0 0
        %1317 = vmatpush1.bf16.msra.mxu0 0
        %1318 = vmatprep.subr.bf16.mxu0 0
        %1319 = vmatpush1.bf16.msra.mxu0 0
        %1320 = vmatprep.subr.bf16.mxu0 0
        %1321 = vmatpush1.bf16.msra.mxu0 0
        %1322 = vmatprep.subr.bf16.mxu0 0
        %1323 = vmatpush1.bf16.msra.mxu0 0
        %1324 = vmatprep.subr.bf16.mxu0 0
        %1325 = vmatpush1.bf16.msra.mxu0 0
        %1326 = vmatprep.subr.bf16.mxu0 0
        %1327 = vmatpush1.bf16.msra.mxu0 0
        %1328 = vmatprep.subr.bf16.mxu0 0
        %1329 = vmatpush1.bf16.msra.mxu0 0
        %1330 = vmatprep.subr.bf16.mxu0 0
        %1331 = vmatpush1.bf16.msra.mxu0 0
        %1332 = vmatprep.subr.bf16.mxu0 0
        %1333 = vmatpush1.bf16.msra.mxu0 0
        %1334 = vmatprep.mubr.bf16.mxu0 0
        %1335 = vmatmul.mubr.bf16.gmra.mrb[0].mxu0 %v1300
        %v1336 = vpop.f32.mrb[0].mxu0
        %v1337 = vadd.f32 0.0, %v1336
        %v1338 = vpop.f32.mrb[0].mxu0
        %v1339 = vpop.f32.mrb[0].mxu0
        %v1340 = vadd.f32 0.0, %v1339
        %v1341 = vpop.f32.mrb[0].mxu0
        %1342 = vdwg.mxu0
        %s1343 = scalar_lea.vmem %s4, 16
        %v1344 = vld [vmem:[%s1343] sm:$0xf]
        %v1345 = vld [vmem:[%s1343 + $0x4] sm:$0xf]
        %v1346 = vld [vmem:[%s1343 + $0x8] sm:$0xf]
        %v1347 = vld [vmem:[%s1343 + $0xc] sm:$0xf]
        %s1348 = scalar_lea.vmem %s7, 1
        %v1349 = vld [vmem:[%s1348] sm:$0x1]
        %v1351 = vlaneseq
        %v1352 = vshrl.u32 %v1351, 7
        %v1353 = vsub.s32 0, %v1352
        %v1354 = vrot.slane %v1349, %v1353
        %v1360 = vunpack.c.l.b16 %v1344
        %v1361 = vunpack.c.l.b16 %v1345
        %v1362 = vunpack.c.l.b16 %v1346
        %v1363 = vunpack.c.l.b16 %v1347
        %v1364 = vpack.c.b16 %v1361, %v1360
        %v1365 = vpack.c.b16 %v1363, %v1362
        %1368 = vmatprep.subr.bf16.mxu0 0
        %1369 = vmatpush1.bf16.msra.mxu0 %v1364
        %1370 = vmatprep.subr.bf16.mxu0 0
        %1371 = vmatpush1.bf16.msra.mxu0 %v1365
        %1372 = vmatprep.subr.bf16.mxu0 0
        %1373 = vmatpush1.bf16.msra.mxu0 0
        %1374 = vmatprep.subr.bf16.mxu0 0
        %1375 = vmatpush1.bf16.msra.mxu0 0
        %1376 = vmatprep.subr.bf16.mxu0 0
        %1377 = vmatpush1.bf16.msra.mxu0 0
        %1378 = vmatprep.subr.bf16.mxu0 0
        %1379 = vmatpush1.bf16.msra.mxu0 0
        %1380 = vmatprep.subr.bf16.mxu0 0
        %1381 = vmatpush1.bf16.msra.mxu0 0
        %1382 = vmatprep.subr.bf16.mxu0 0
        %1383 = vmatpush1.bf16.msra.mxu0 0
        %1384 = vmatprep.subr.bf16.mxu0 0
        %1385 = vmatpush1.bf16.msra.mxu0 0
        %1386 = vmatprep.subr.bf16.mxu0 0
        %1387 = vmatpush1.bf16.msra.mxu0 0
        %1388 = vmatprep.subr.bf16.mxu0 0
        %1389 = vmatpush1.bf16.msra.mxu0 0
        %1390 = vmatprep.subr.bf16.mxu0 0
        %1391 = vmatpush1.bf16.msra.mxu0 0
        %1392 = vmatprep.subr.bf16.mxu0 0
        %1393 = vmatpush1.bf16.msra.mxu0 0
        %1394 = vmatprep.subr.bf16.mxu0 0
        %1395 = vmatpush1.bf16.msra.mxu0 0
        %1396 = vmatprep.subr.bf16.mxu0 0
        %1397 = vmatpush1.bf16.msra.mxu0 0
        %1398 = vmatprep.subr.bf16.mxu0 0
        %1399 = vmatpush1.bf16.msra.mxu0 0
        %1400 = vmatprep.mubr.bf16.mxu0 0
        %1401 = vmatmul.mubr.bf16.gmra.mrb[0].mxu0 %v619
        %v1402 = vpop.f32.mrb[0].mxu0
        %v1403 = vadd.f32 %v1354, %v1402
        %v1404 = vpop.f32.mrb[0].mxu0
        %v1405 = vpop.f32.mrb[0].mxu0
        %v1406 = vadd.f32 %v1354, %v1405
        %v1407 = vpop.f32.mrb[0].mxu0
        %1408 = vmatprep.mubr.bf16.mxu0 0
        %1409 = vmatmul.mubr.bf16.gmra.mrb[0].mxu0 %v622
        %v1410 = vpop.f32.mrb[0].mxu0
        %v1411 = vadd.f32 %v1354, %v1410
        %v1412 = vpop.f32.mrb[0].mxu0
        %v1413 = vpop.f32.mrb[0].mxu0
        %v1414 = vadd.f32 %v1354, %v1413
        %v1415 = vpop.f32.mrb[0].mxu0
        %1416 = vmatprep.mubr.bf16.mxu0 0
        %1417 = vmatmul.mubr.bf16.gmra.mrb[0].mxu0 %v625
        %v1418 = vpop.f32.mrb[0].mxu0
        %v1419 = vadd.f32 %v1354, %v1418
        %v1420 = vpop.f32.mrb[0].mxu0
        %v1421 = vpop.f32.mrb[0].mxu0
        %v1422 = vadd.f32 %v1354, %v1421
        %v1423 = vpop.f32.mrb[0].mxu0
        %1424 = vmatprep.mubr.bf16.mxu0 0
        %1425 = vmatmul.mubr.bf16.gmra.mrb[0].mxu0 %v628
        %v1426 = vpop.f32.mrb[0].mxu0
        %v1427 = vadd.f32 %v1354, %v1426
        %v1428 = vpop.f32.mrb[0].mxu0
        %v1429 = vpop.f32.mrb[0].mxu0
        %v1430 = vadd.f32 %v1354, %v1429
        %v1431 = vpop.f32.mrb[0].mxu0
        %1432 = vdwg.mxu0
        %s1433 = scalar_lea.vmem %s5, 16
        %v1434 = vld [vmem:[%s1433] sm:$0xf]
        %v1435 = vld [vmem:[%s1433 + $0x4] sm:$0xf]
        %v1436 = vld [vmem:[%s1433 + $0x8] sm:$0xf]
        %v1437 = vld [vmem:[%s1433 + $0xc] sm:$0xf]
        %s1438 = scalar_lea.vmem %s8, 1
        %v1439 = vld [vmem:[%s1438] sm:$0x1]
        %v1441 = vlaneseq
        %v1442 = vshrl.u32 %v1441, 7
        %v1443 = vsub.s32 0, %v1442
        %v1444 = vrot.slane %v1439, %v1443
        %v1450 = vunpack.c.l.b16 %v1434
        %v1451 = vunpack.c.l.b16 %v1435
        %v1452 = vunpack.c.l.b16 %v1436
        %v1453 = vunpack.c.l.b16 %v1437
        %v1454 = vpack.c.b16 %v1451, %v1450
        %v1455 = vpack.c.b16 %v1453, %v1452
        %1458 = vmatprep.subr.bf16.mxu0 0
        %1459 = vmatpush1.bf16.msra.mxu0 %v1454
        %1460 = vmatprep.subr.bf16.mxu0 0
        %1461 = vmatpush1.bf16.msra.mxu0 %v1455
        %1462 = vmatprep.subr.bf16.mxu0 0
        %1463 = vmatpush1.bf16.msra.mxu0 0
        %1464 = vmatprep.subr.bf16.mxu0 0
        %1465 = vmatpush1.bf16.msra.mxu0 0
        %1466 = vmatprep.subr.bf16.mxu0 0
        %1467 = vmatpush1.bf16.msra.mxu0 0
        %1468 = vmatprep.subr.bf16.mxu0 0
        %1469 = vmatpush1.bf16.msra.mxu0 0
        %1470 = vmatprep.subr.bf16.mxu0 0
        %1471 = vmatpush1.bf16.msra.mxu0 0
        %1472 = vmatprep.subr.bf16.mxu0 0
        %1473 = vmatpush1.bf16.msra.mxu0 0
        %1474 = vmatprep.subr.bf16.mxu0 0
        %1475 = vmatpush1.bf16.msra.mxu0 0
        %1476 = vmatprep.subr.bf16.mxu0 0
        %1477 = vmatpush1.bf16.msra.mxu0 0
        %1478 = vmatprep.subr.bf16.mxu0 0
        %1479 = vmatpush1.bf16.msra.mxu0 0
        %1480 = vmatprep.subr.bf16.mxu0 0
        %1481 = vmatpush1.bf16.msra.mxu0 0
        %1482 = vmatprep.subr.bf16.mxu0 0
        %1483 = vmatpush1.bf16.msra.mxu0 0
        %1484 = vmatprep.subr.bf16.mxu0 0
        %1485 = vmatpush1.bf16.msra.mxu0 0
        %1486 = vmatprep.subr.bf16.mxu0 0
        %1487 = vmatpush1.bf16.msra.mxu0 0
        %1488 = vmatprep.subr.bf16.mxu0 0
        %1489 = vmatpush1.bf16.msra.mxu0 0
        %1490 = vmatprep.mubr.bf16.mxu0 0
        %1491 = vmatmul.mubr.bf16.gmra.mrb[0].mxu0 %v619
        %v1492 = vpop.f32.mrb[0].mxu0
        %v1493 = vadd.f32 %v1444, %v1492
        %v1494 = vpop.f32.mrb[0].mxu0
        %v1495 = vpop.f32.mrb[0].mxu0
        %v1496 = vadd.f32 %v1444, %v1495
        %v1497 = vpop.f32.mrb[0].mxu0
        %1498 = vmatprep.mubr.bf16.mxu0 0
        %1499 = vmatmul.mubr.bf16.gmra.mrb[0].mxu0 %v622
        %v1500 = vpop.f32.mrb[0].mxu0
        %v1501 = vadd.f32 %v1444, %v1500
        %v1502 = vpop.f32.mrb[0].mxu0
        %v1503 = vpop.f32.mrb[0].mxu0
        %v1504 = vadd.f32 %v1444, %v1503
        %v1505 = vpop.f32.mrb[0].mxu0
        %1506 = vmatprep.mubr.bf16.mxu0 0
        %1507 = vmatmul.mubr.bf16.gmra.mrb[0].mxu0 %v625
        %v1508 = vpop.f32.mrb[0].mxu0
        %v1509 = vadd.f32 %v1444, %v1508
        %v1510 = vpop.f32.mrb[0].mxu0
        %v1511 = vpop.f32.mrb[0].mxu0
        %v1512 = vadd.f32 %v1444, %v1511
        %v1513 = vpop.f32.mrb[0].mxu0
        %1514 = vmatprep.mubr.bf16.mxu0 0
        %1515 = vmatmul.mubr.bf16.gmra.mrb[0].mxu0 %v628
        %v1516 = vpop.f32.mrb[0].mxu0
        %v1517 = vadd.f32 %v1444, %v1516
        %v1518 = vpop.f32.mrb[0].mxu0
        %v1519 = vpop.f32.mrb[0].mxu0
        %v1520 = vadd.f32 %v1444, %v1519
        %v1521 = vpop.f32.mrb[0].mxu0
        %1522 = vdwg.mxu0
        %s1523 = scalar_lea.vmem %s6, 16
        %v1524 = vld [vmem:[%s1523] sm:$0xf]
        %v1525 = vld [vmem:[%s1523 + $0x4] sm:$0xf]
        %v1526 = vld [vmem:[%s1523 + $0x8] sm:$0xf]
        %v1527 = vld [vmem:[%s1523 + $0xc] sm:$0xf]
        %s1528 = scalar_lea.vmem %s9, 1
        %v1529 = vld [vmem:[%s1528] sm:$0x1]
        %v1531 = vlaneseq
        %v1532 = vshrl.u32 %v1531, 7
        %v1533 = vsub.s32 0, %v1532
        %v1534 = vrot.slane %v1529, %v1533
        %v1540 = vunpack.c.l.b16 %v1524
        %v1541 = vunpack.c.l.b16 %v1525
        %v1542 = vunpack.c.l.b16 %v1526
        %v1543 = vunpack.c.l.b16 %v1527
        %v1544 = vpack.c.b16 %v1541, %v1540
        %v1545 = vpack.c.b16 %v1543, %v1542
        %1548 = vmatprep.subr.bf16.mxu0 0
        %1549 = vmatpush1.bf16.msra.mxu0 %v1544
        %1550 = vmatprep.subr.bf16.mxu0 0
        %1551 = vmatpush1.bf16.msra.mxu0 %v1545
        %1552 = vmatprep.subr.bf16.mxu0 0
        %1553 = vmatpush1.bf16.msra.mxu0 0
        %1554 = vmatprep.subr.bf16.mxu0 0
        %1555 = vmatpush1.bf16.msra.mxu0 0
        %1556 = vmatprep.subr.bf16.mxu0 0
        %1557 = vmatpush1.bf16.msra.mxu0 0
        %1558 = vmatprep.subr.bf16.mxu0 0
        %1559 = vmatpush1.bf16.msra.mxu0 0
        %1560 = vmatprep.subr.bf16.mxu0 0
        %1561 = vmatpush1.bf16.msra.mxu0 0
        %1562 = vmatprep.subr.bf16.mxu0 0
        %1563 = vmatpush1.bf16.msra.mxu0 0
        %1564 = vmatprep.subr.bf16.mxu0 0
        %1565 = vmatpush1.bf16.msra.mxu0 0
        %1566 = vmatprep.subr.bf16.mxu0 0
        %1567 = vmatpush1.bf16.msra.mxu0 0
        %1568 = vmatprep.subr.bf16.mxu0 0
        %1569 = vmatpush1.bf16.msra.mxu0 0
        %1570 = vmatprep.subr.bf16.mxu0 0
        %1571 = vmatpush1.bf16.msra.mxu0 0
        %1572 = vmatprep.subr.bf16.mxu0 0
        %1573 = vmatpush1.bf16.msra.mxu0 0
        %1574 = vmatprep.subr.bf16.mxu0 0
        %1575 = vmatpush1.bf16.msra.mxu0 0
        %1576 = vmatprep.subr.bf16.mxu0 0
        %1577 = vmatpush1.bf16.msra.mxu0 0
        %1578 = vmatprep.subr.bf16.mxu0 0
        %1579 = vmatpush1.bf16.msra.mxu0 0
        %1580 = vmatprep.mubr.bf16.mxu0 0
        %1581 = vmatmul.mubr.bf16.gmra.mrb[0].mxu0 %v619
        %v1582 = vpop.f32.mrb[0].mxu0
        %v1583 = vadd.f32 %v1534, %v1582
        %v1584 = vpop.f32.mrb[0].mxu0
        %v1585 = vpop.f32.mrb[0].mxu0
        %v1586 = vadd.f32 %v1534, %v1585
        %v1587 = vpop.f32.mrb[0].mxu0
        %1588 = vmatprep.mubr.bf16.mxu0 0
        %1589 = vmatmul.mubr.bf16.gmra.mrb[0].mxu0 %v622
        %v1590 = vpop.f32.mrb[0].mxu0
        %v1591 = vadd.f32 %v1534, %v1590
        %v1592 = vpop.f32.mrb[0].mxu0
        %v1593 = vpop.f32.mrb[0].mxu0
        %v1594 = vadd.f32 %v1534, %v1593
        %v1595 = vpop.f32.mrb[0].mxu0
        %1596 = vmatprep.mubr.bf16.mxu0 0
        %1597 = vmatmul.mubr.bf16.gmra.mrb[0].mxu0 %v625
        %v1598 = vpop.f32.mrb[0].mxu0
        %v1599 = vadd.f32 %v1534, %v1598
        %v1600 = vpop.f32.mrb[0].mxu0
        %v1601 = vpop.f32.mrb[0].mxu0
        %v1602 = vadd.f32 %v1534, %v1601
        %v1603 = vpop.f32.mrb[0].mxu0
        %1604 = vmatprep.mubr.bf16.mxu0 0
        %1605 = vmatmul.mubr.bf16.gmra.mrb[0].mxu0 %v628
        %v1606 = vpop.f32.mrb[0].mxu0
        %v1607 = vadd.f32 %v1534, %v1606
        %v1608 = vpop.f32.mrb[0].mxu0
        %v1609 = vpop.f32.mrb[0].mxu0
        %v1610 = vadd.f32 %v1534, %v1609
        %v1611 = vpop.f32.mrb[0].mxu0
        %1612 = vdwg.mxu0
        %v1613 = vpack.c.bf16 %v1406, %v1403
        %v1614 = vpack.c.bf16 %v1414, %v1411
        %v1615 = vpack.c.bf16 %v1422, %v1419
        %v1616 = vpack.c.bf16 %v1430, %v1427
        %v1617 = vpack.c.bf16 %v1496, %v1493
        %v1618 = vpack.c.bf16 %v1504, %v1501
        %v1619 = vpack.c.bf16 %v1512, %v1509
        %v1620 = vpack.c.bf16 %v1520, %v1517
        %v1621 = vpack.c.bf16 %v1586, %v1583
        %v1622 = vpack.c.bf16 %v1594, %v1591
        %v1623 = vpack.c.bf16 %v1602, %v1599
        %v1624 = vpack.c.bf16 %v1610, %v1607
        %s1625 = scalar_lea.vmem %s1, 16
        %v1626 = vld [vmem:[%s1625] sm:$0xff]
        %v1627 = vld [vmem:[%s1625 + $0x8] sm:$0xff]
        %v1629 = vsel %vm885, %v1613, 0
        %v1632 = vsel %vm885, %v1617, 0
        %1634 = vmatprep.subr.bf16.mxu0 0
        %1635 = vmatpush1.bf16.xpose.msra.mxu0 %v1632
        %1636 = vmatprep.subr.bf16.mxu0 0
        %1637 = vmatpush1.bf16.xpose.msra.mxu0 0
        %1638 = vmatprep.subr.bf16.mxu0 0
        %1639 = vmatpush1.bf16.xpose.msra.mxu0 0
        %1640 = vmatprep.subr.bf16.mxu0 0
        %1641 = vmatpush1.bf16.xpose.msra.mxu0 0
        %1642 = vmatprep.subr.bf16.mxu0 0
        %1643 = vmatpush1.bf16.xpose.msra.mxu0 0
        %1644 = vmatprep.subr.bf16.mxu0 0
        %1645 = vmatpush1.bf16.xpose.msra.mxu0 0
        %1646 = vmatprep.subr.bf16.mxu0 0
        %1647 = vmatpush1.bf16.xpose.msra.mxu0 0
        %1648 = vmatprep.subr.bf16.mxu0 0
        %1649 = vmatpush1.bf16.xpose.msra.mxu0 0
        %1650 = vmatprep.subr.bf16.mxu0 0
        %1651 = vmatpush1.bf16.xpose.msra.mxu0 0
        %1652 = vmatprep.subr.bf16.mxu0 0
        %1653 = vmatpush1.bf16.xpose.msra.mxu0 0
        %1654 = vmatprep.subr.bf16.mxu0 0
        %1655 = vmatpush1.bf16.xpose.msra.mxu0 0
        %1656 = vmatprep.subr.bf16.mxu0 0
        %1657 = vmatpush1.bf16.xpose.msra.mxu0 0
        %1658 = vmatprep.subr.bf16.mxu0 0
        %1659 = vmatpush1.bf16.xpose.msra.mxu0 0
        %1660 = vmatprep.subr.bf16.mxu0 0
        %1661 = vmatpush1.bf16.xpose.msra.mxu0 0
        %1662 = vmatprep.subr.bf16.mxu0 0
        %1663 = vmatpush1.bf16.xpose.msra.mxu0 0
        %1664 = vmatprep.subr.bf16.mxu0 0
        %1665 = vmatpush1.bf16.xpose.msra.mxu0 0
        %1666 = vmatprep.mubr.bf16.mxu0 0
        %1667 = vmatmul.mubr.bf16.gmra.mrb[0].mxu0 %v1629
        %v1668 = vpop.f32.mrb[0].mxu0
        %v1669 = vadd.f32 %v1626, %v1668
        %v1670 = vpop.f32.mrb[0].mxu0
        %v1671 = vpop.f32.mrb[0].mxu0
        %v1672 = vadd.f32 %v1627, %v1671
        %v1673 = vpop.f32.mrb[0].mxu0
        %1674 = vdwg.mxu0
        %v1676 = vsel %vm885, %v1614, 0
        %v1679 = vsel %vm885, %v1618, 0
        %1681 = vmatprep.subr.bf16.mxu0 0
        %1682 = vmatpush1.bf16.xpose.msra.mxu0 %v1679
        %1683 = vmatprep.subr.bf16.mxu0 0
        %1684 = vmatpush1.bf16.xpose.msra.mxu0 0
        %1685 = vmatprep.subr.bf16.mxu0 0
        %1686 = vmatpush1.bf16.xpose.msra.mxu0 0
        %1687 = vmatprep.subr.bf16.mxu0 0
        %1688 = vmatpush1.bf16.xpose.msra.mxu0 0
        %1689 = vmatprep.subr.bf16.mxu0 0
        %1690 = vmatpush1.bf16.xpose.msra.mxu0 0
        %1691 = vmatprep.subr.bf16.mxu0 0
        %1692 = vmatpush1.bf16.xpose.msra.mxu0 0
        %1693 = vmatprep.subr.bf16.mxu0 0
        %1694 = vmatpush1.bf16.xpose.msra.mxu0 0
        %1695 = vmatprep.subr.bf16.mxu0 0
        %1696 = vmatpush1.bf16.xpose.msra.mxu0 0
        %1697 = vmatprep.subr.bf16.mxu0 0
        %1698 = vmatpush1.bf16.xpose.msra.mxu0 0
        %1699 = vmatprep.subr.bf16.mxu0 0
        %1700 = vmatpush1.bf16.xpose.msra.mxu0 0
        %1701 = vmatprep.subr.bf16.mxu0 0
        %1702 = vmatpush1.bf16.xpose.msra.mxu0 0
        %1703 = vmatprep.subr.bf16.mxu0 0
        %1704 = vmatpush1.bf16.xpose.msra.mxu0 0
        %1705 = vmatprep.subr.bf16.mxu0 0
        %1706 = vmatpush1.bf16.xpose.msra.mxu0 0
        %1707 = vmatprep.subr.bf16.mxu0 0
        %1708 = vmatpush1.bf16.xpose.msra.mxu0 0
        %1709 = vmatprep.subr.bf16.mxu0 0
        %1710 = vmatpush1.bf16.xpose.msra.mxu0 0
        %1711 = vmatprep.subr.bf16.mxu0 0
        %1712 = vmatpush1.bf16.xpose.msra.mxu0 0
        %1713 = vmatprep.mubr.bf16.mxu0 0
        %1714 = vmatmul.mubr.bf16.gmra.mrb[0].mxu0 %v1676
        %v1715 = vpop.f32.mrb[0].mxu0
        %v1716 = vadd.f32 %v1626, %v1715
        %v1717 = vpop.f32.mrb[0].mxu0
        %v1718 = vpop.f32.mrb[0].mxu0
        %v1719 = vadd.f32 %v1627, %v1718
        %v1720 = vpop.f32.mrb[0].mxu0
        %1721 = vdwg.mxu0
        %v1723 = vsel %vm885, %v1615, 0
        %v1726 = vsel %vm885, %v1619, 0
        %1728 = vmatprep.subr.bf16.mxu0 0
        %1729 = vmatpush1.bf16.xpose.msra.mxu0 %v1726
        %1730 = vmatprep.subr.bf16.mxu0 0
        %1731 = vmatpush1.bf16.xpose.msra.mxu0 0
        %1732 = vmatprep.subr.bf16.mxu0 0
        %1733 = vmatpush1.bf16.xpose.msra.mxu0 0
        %1734 = vmatprep.subr.bf16.mxu0 0
        %1735 = vmatpush1.bf16.xpose.msra.mxu0 0
        %1736 = vmatprep.subr.bf16.mxu0 0
        %1737 = vmatpush1.bf16.xpose.msra.mxu0 0
        %1738 = vmatprep.subr.bf16.mxu0 0
        %1739 = vmatpush1.bf16.xpose.msra.mxu0 0
        %1740 = vmatprep.subr.bf16.mxu0 0
        %1741 = vmatpush1.bf16.xpose.msra.mxu0 0
        %1742 = vmatprep.subr.bf16.mxu0 0
        %1743 = vmatpush1.bf16.xpose.msra.mxu0 0
        %1744 = vmatprep.subr.bf16.mxu0 0
        %1745 = vmatpush1.bf16.xpose.msra.mxu0 0
        %1746 = vmatprep.subr.bf16.mxu0 0
        %1747 = vmatpush1.bf16.xpose.msra.mxu0 0
        %1748 = vmatprep.subr.bf16.mxu0 0
        %1749 = vmatpush1.bf16.xpose.msra.mxu0 0
        %1750 = vmatprep.subr.bf16.mxu0 0
        %1751 = vmatpush1.bf16.xpose.msra.mxu0 0
        %1752 = vmatprep.subr.bf16.mxu0 0
        %1753 = vmatpush1.bf16.xpose.msra.mxu0 0
        %1754 = vmatprep.subr.bf16.mxu0 0
        %1755 = vmatpush1.bf16.xpose.msra.mxu0 0
        %1756 = vmatprep.subr.bf16.mxu0 0
        %1757 = vmatpush1.bf16.xpose.msra.mxu0 0
        %1758 = vmatprep.subr.bf16.mxu0 0
        %1759 = vmatpush1.bf16.xpose.msra.mxu0 0
        %1760 = vmatprep.mubr.bf16.mxu0 0
        %1761 = vmatmul.mubr.bf16.gmra.mrb[0].mxu0 %v1723
        %v1762 = vpop.f32.mrb[0].mxu0
        %v1763 = vadd.f32 %v1626, %v1762
        %v1764 = vpop.f32.mrb[0].mxu0
        %v1765 = vpop.f32.mrb[0].mxu0
        %v1766 = vadd.f32 %v1627, %v1765
        %v1767 = vpop.f32.mrb[0].mxu0
        %1768 = vdwg.mxu0
        %v1770 = vsel %vm885, %v1616, 0
        %v1773 = vsel %vm885, %v1620, 0
        %1775 = vmatprep.subr.bf16.mxu0 0
        %1776 = vmatpush1.bf16.xpose.msra.mxu0 %v1773
        %1777 = vmatprep.subr.bf16.mxu0 0
        %1778 = vmatpush1.bf16.xpose.msra.mxu0 0
        %1779 = vmatprep.subr.bf16.mxu0 0
        %1780 = vmatpush1.bf16.xpose.msra.mxu0 0
        %1781 = vmatprep.subr.bf16.mxu0 0
        %1782 = vmatpush1.bf16.xpose.msra.mxu0 0
        %1783 = vmatprep.subr.bf16.mxu0 0
        %1784 = vmatpush1.bf16.xpose.msra.mxu0 0
        %1785 = vmatprep.subr.bf16.mxu0 0
        %1786 = vmatpush1.bf16.xpose.msra.mxu0 0
        %1787 = vmatprep.subr.bf16.mxu0 0
        %1788 = vmatpush1.bf16.xpose.msra.mxu0 0
        %1789 = vmatprep.subr.bf16.mxu0 0
        %1790 = vmatpush1.bf16.xpose.msra.mxu0 0
        %1791 = vmatprep.subr.bf16.mxu0 0
        %1792 = vmatpush1.bf16.xpose.msra.mxu0 0
        %1793 = vmatprep.subr.bf16.mxu0 0
        %1794 = vmatpush1.bf16.xpose.msra.mxu0 0
        %1795 = vmatprep.subr.bf16.mxu0 0
        %1796 = vmatpush1.bf16.xpose.msra.mxu0 0
        %1797 = vmatprep.subr.bf16.mxu0 0
        %1798 = vmatpush1.bf16.xpose.msra.mxu0 0
        %1799 = vmatprep.subr.bf16.mxu0 0
        %1800 = vmatpush1.bf16.xpose.msra.mxu0 0
        %1801 = vmatprep.subr.bf16.mxu0 0
        %1802 = vmatpush1.bf16.xpose.msra.mxu0 0
        %1803 = vmatprep.subr.bf16.mxu0 0
        %1804 = vmatpush1.bf16.xpose.msra.mxu0 0
        %1805 = vmatprep.subr.bf16.mxu0 0
        %1806 = vmatpush1.bf16.xpose.msra.mxu0 0
        %1807 = vmatprep.mubr.bf16.mxu0 0
        %1808 = vmatmul.mubr.bf16.gmra.mrb[0].mxu0 %v1770
        %v1809 = vpop.f32.mrb[0].mxu0
        %v1810 = vadd.f32 %v1626, %v1809
        %v1811 = vpop.f32.mrb[0].mxu0
        %v1812 = vpop.f32.mrb[0].mxu0
        %v1813 = vadd.f32 %v1627, %v1812
        %v1814 = vpop.f32.mrb[0].mxu0
        %1815 = vdwg.mxu0
        %v1816 = vsel %vm1074, %v1669, -inf
        %1817 = vmax.xlane.f32.xlu0 %v1816
        %v1818 = vpop.xlane.xlu0 %1817
        %v1819 = vsel %vm1074, %v1672, -inf
        %1820 = vmax.xlane.f32.xlu0 %v1819
        %v1821 = vpop.xlane.xlu0 %1820
        %v1822 = vsel %vm1074, %v1716, -inf
        %1823 = vmax.xlane.f32.xlu0 %v1822
        %v1824 = vpop.xlane.xlu0 %1823
        %v1825 = vsel %vm1074, %v1719, -inf
        %1826 = vmax.xlane.f32.xlu0 %v1825
        %v1827 = vpop.xlane.xlu0 %1826
        %v1828 = vsel %vm1074, %v1763, -inf
        %1829 = vmax.xlane.f32.xlu0 %v1828
        %v1830 = vpop.xlane.xlu0 %1829
        %v1831 = vsel %vm1074, %v1766, -inf
        %1832 = vmax.xlane.f32.xlu0 %v1831
        %v1833 = vpop.xlane.xlu0 %1832
        %v1834 = vsel %vm1074, %v1810, -inf
        %1835 = vmax.xlane.f32.xlu0 %v1834
        %v1836 = vpop.xlane.xlu0 %1835
        %v1837 = vsel %vm1074, %v1813, -inf
        %1838 = vmax.xlane.f32.xlu0 %v1837
        %v1839 = vpop.xlane.xlu0 %1838
        %v1840 = vsub.f32 %v1669, %v1818
        %v1841 = vsub.f32 %v1672, %v1821
        %v1842 = vsub.f32 %v1716, %v1824
        %v1843 = vsub.f32 %v1719, %v1827
        %v1844 = vsub.f32 %v1763, %v1830
        %v1845 = vsub.f32 %v1766, %v1833
        %v1846 = vsub.f32 %v1810, %v1836
        %v1847 = vsub.f32 %v1813, %v1839
        %v1848 = vmul.f32 %v1840, 1.442695
        %v1849 = vpow.pop %v1848
        %v1850 = vmul.f32 %v1841, 1.442695
        %v1851 = vpow.pop %v1850
        %v1852 = vmul.f32 %v1842, 1.442695
        %v1853 = vpow.pop %v1852
        %v1854 = vmul.f32 %v1843, 1.442695
        %v1855 = vpow.pop %v1854
        %v1856 = vmul.f32 %v1844, 1.442695
        %v1857 = vpow.pop %v1856
        %v1858 = vmul.f32 %v1845, 1.442695
        %v1859 = vpow.pop %v1858
        %v1860 = vmul.f32 %v1846, 1.442695
        %v1861 = vpow.pop %v1860
        %v1862 = vmul.f32 %v1847, 1.442695
        %v1863 = vpow.pop %v1862
        %v1864 = vsel %vm1074, %v1849, 0.0
        %1865 = vadd.xlane.f32.xlu0 %v1864
        %v1866 = vpop.xlane.xlu0 %1865
        %v1867 = vsel %vm1074, %v1851, 0.0
        %1868 = vadd.xlane.f32.xlu0 %v1867
        %v1869 = vpop.xlane.xlu0 %1868
        %v1870 = vsel %vm1074, %v1853, 0.0
        %1871 = vadd.xlane.f32.xlu0 %v1870
        %v1872 = vpop.xlane.xlu0 %1871
        %v1873 = vsel %vm1074, %v1855, 0.0
        %1874 = vadd.xlane.f32.xlu0 %v1873
        %v1875 = vpop.xlane.xlu0 %1874
        %v1876 = vsel %vm1074, %v1857, 0.0
        %1877 = vadd.xlane.f32.xlu0 %v1876
        %v1878 = vpop.xlane.xlu0 %1877
        %v1879 = vsel %vm1074, %v1859, 0.0
        %1880 = vadd.xlane.f32.xlu0 %v1879
        %v1881 = vpop.xlane.xlu0 %1880
        %v1882 = vsel %vm1074, %v1861, 0.0
        %1883 = vadd.xlane.f32.xlu0 %v1882
        %v1884 = vpop.xlane.xlu0 %1883
        %v1885 = vsel %vm1074, %v1863, 0.0
        %1886 = vadd.xlane.f32.xlu0 %v1885
        %v1887 = vpop.xlane.xlu0 %1886
        %v1888 = vrcp.pop %v1866
        %v1889 = vrcp.pop %v1869
        %v1890 = vrcp.pop %v1872
        %v1891 = vrcp.pop %v1875
        %v1892 = vrcp.pop %v1878
        %v1893 = vrcp.pop %v1881
        %v1894 = vrcp.pop %v1884
        %v1895 = vrcp.pop %v1887
        %v1896 = vmul.f32 %v1849, %v1888
        %v1897 = vmul.f32 %v1851, %v1889
        %v1898 = vmul.f32 %v1853, %v1890
        %v1899 = vmul.f32 %v1855, %v1891
        %v1900 = vmul.f32 %v1857, %v1892
        %v1901 = vmul.f32 %v1859, %v1893
        %v1902 = vmul.f32 %v1861, %v1894
        %v1903 = vmul.f32 %v1863, %v1895
        %v1904 = vpack.c.bf16 %v1897, %v1896
        %v1905 = vpack.c.bf16 %v1899, %v1898
        %v1906 = vpack.c.bf16 %v1901, %v1900
        %v1907 = vpack.c.bf16 %v1903, %v1902
        %v1909 = vsel %vm1074, %v1904, 0
        %1911 = vmatprep.subr.bf16.mxu0 0
        %1912 = vmatpush1.bf16.msra.mxu0 %v1621
        %1913 = vmatprep.subr.bf16.mxu0 0
        %1914 = vmatpush1.bf16.msra.mxu0 0
        %1915 = vmatprep.subr.bf16.mxu0 0
        %1916 = vmatpush1.bf16.msra.mxu0 0
        %1917 = vmatprep.subr.bf16.mxu0 0
        %1918 = vmatpush1.bf16.msra.mxu0 0
        %1919 = vmatprep.subr.bf16.mxu0 0
        %1920 = vmatpush1.bf16.msra.mxu0 0
        %1921 = vmatprep.subr.bf16.mxu0 0
        %1922 = vmatpush1.bf16.msra.mxu0 0
        %1923 = vmatprep.subr.bf16.mxu0 0
        %1924 = vmatpush1.bf16.msra.mxu0 0
        %1925 = vmatprep.subr.bf16.mxu0 0
        %1926 = vmatpush1.bf16.msra.mxu0 0
        %1927 = vmatprep.subr.bf16.mxu0 0
        %1928 = vmatpush1.bf16.msra.mxu0 0
        %1929 = vmatprep.subr.bf16.mxu0 0
        %1930 = vmatpush1.bf16.msra.mxu0 0
        %1931 = vmatprep.subr.bf16.mxu0 0
        %1932 = vmatpush1.bf16.msra.mxu0 0
        %1933 = vmatprep.subr.bf16.mxu0 0
        %1934 = vmatpush1.bf16.msra.mxu0 0
        %1935 = vmatprep.subr.bf16.mxu0 0
        %1936 = vmatpush1.bf16.msra.mxu0 0
        %1937 = vmatprep.subr.bf16.mxu0 0
        %1938 = vmatpush1.bf16.msra.mxu0 0
        %1939 = vmatprep.subr.bf16.mxu0 0
        %1940 = vmatpush1.bf16.msra.mxu0 0
        %1941 = vmatprep.subr.bf16.mxu0 0
        %1942 = vmatpush1.bf16.msra.mxu0 0
        %1943 = vmatprep.mubr.bf16.mxu0 0
        %1944 = vmatmul.mubr.bf16.gmra.mrb[0].mxu0 %v1909
        %v1945 = vpop.f32.mrb[0].mxu0
        %v1946 = vadd.f32 0.0, %v1945
        %v1947 = vpop.f32.mrb[0].mxu0
        %v1948 = vpop.f32.mrb[0].mxu0
        %v1949 = vadd.f32 0.0, %v1948
        %v1950 = vpop.f32.mrb[0].mxu0
        %1951 = vdwg.mxu0
        %v1953 = vsel %vm1074, %v1905, 0
        %1955 = vmatprep.subr.bf16.mxu0 0
        %1956 = vmatpush1.bf16.msra.mxu0 %v1622
        %1957 = vmatprep.subr.bf16.mxu0 0
        %1958 = vmatpush1.bf16.msra.mxu0 0
        %1959 = vmatprep.subr.bf16.mxu0 0
        %1960 = vmatpush1.bf16.msra.mxu0 0
        %1961 = vmatprep.subr.bf16.mxu0 0
        %1962 = vmatpush1.bf16.msra.mxu0 0
        %1963 = vmatprep.subr.bf16.mxu0 0
        %1964 = vmatpush1.bf16.msra.mxu0 0
        %1965 = vmatprep.subr.bf16.mxu0 0
        %1966 = vmatpush1.bf16.msra.mxu0 0
        %1967 = vmatprep.subr.bf16.mxu0 0
        %1968 = vmatpush1.bf16.msra.mxu0 0
        %1969 = vmatprep.subr.bf16.mxu0 0
        %1970 = vmatpush1.bf16.msra.mxu0 0
        %1971 = vmatprep.subr.bf16.mxu0 0
        %1972 = vmatpush1.bf16.msra.mxu0 0
        %1973 = vmatprep.subr.bf16.mxu0 0
        %1974 = vmatpush1.bf16.msra.mxu0 0
        %1975 = vmatprep.subr.bf16.mxu0 0
        %1976 = vmatpush1.bf16.msra.mxu0 0
        %1977 = vmatprep.subr.bf16.mxu0 0
        %1978 = vmatpush1.bf16.msra.mxu0 0
        %1979 = vmatprep.subr.bf16.mxu0 0
        %1980 = vmatpush1.bf16.msra.mxu0 0
        %1981 = vmatprep.subr.bf16.mxu0 0
        %1982 = vmatpush1.bf16.msra.mxu0 0
        %1983 = vmatprep.subr.bf16.mxu0 0
        %1984 = vmatpush1.bf16.msra.mxu0 0
        %1985 = vmatprep.subr.bf16.mxu0 0
        %1986 = vmatpush1.bf16.msra.mxu0 0
        %1987 = vmatprep.mubr.bf16.mxu0 0
        %1988 = vmatmul.mubr.bf16.gmra.mrb[0].mxu0 %v1953
        %v1989 = vpop.f32.mrb[0].mxu0
        %v1990 = vadd.f32 0.0, %v1989
        %v1991 = vpop.f32.mrb[0].mxu0
        %v1992 = vpop.f32.mrb[0].mxu0
        %v1993 = vadd.f32 0.0, %v1992
        %v1994 = vpop.f32.mrb[0].mxu0
        %1995 = vdwg.mxu0
        %v1997 = vsel %vm1074, %v1906, 0
        %1999 = vmatprep.subr.bf16.mxu0 0
        %2000 = vmatpush1.bf16.msra.mxu0 %v1623
        %2001 = vmatprep.subr.bf16.mxu0 0
        %2002 = vmatpush1.bf16.msra.mxu0 0
        %2003 = vmatprep.subr.bf16.mxu0 0
        %2004 = vmatpush1.bf16.msra.mxu0 0
        %2005 = vmatprep.subr.bf16.mxu0 0
        %2006 = vmatpush1.bf16.msra.mxu0 0
        %2007 = vmatprep.subr.bf16.mxu0 0
        %2008 = vmatpush1.bf16.msra.mxu0 0
        %2009 = vmatprep.subr.bf16.mxu0 0
        %2010 = vmatpush1.bf16.msra.mxu0 0
        %2011 = vmatprep.subr.bf16.mxu0 0
        %2012 = vmatpush1.bf16.msra.mxu0 0
        %2013 = vmatprep.subr.bf16.mxu0 0
        %2014 = vmatpush1.bf16.msra.mxu0 0
        %2015 = vmatprep.subr.bf16.mxu0 0
        %2016 = vmatpush1.bf16.msra.mxu0 0
        %2017 = vmatprep.subr.bf16.mxu0 0
        %2018 = vmatpush1.bf16.msra.mxu0 0
        %2019 = vmatprep.subr.bf16.mxu0 0
        %2020 = vmatpush1.bf16.msra.mxu0 0
        %2021 = vmatprep.subr.bf16.mxu0 0
        %2022 = vmatpush1.bf16.msra.mxu0 0
        %2023 = vmatprep.subr.bf16.mxu0 0
        %2024 = vmatpush1.bf16.msra.mxu0 0
        %2025 = vmatprep.subr.bf16.mxu0 0
        %2026 = vmatpush1.bf16.msra.mxu0 0
        %2027 = vmatprep.subr.bf16.mxu0 0
        %2028 = vmatpush1.bf16.msra.mxu0 0
        %2029 = vmatprep.subr.bf16.mxu0 0
        %2030 = vmatpush1.bf16.msra.mxu0 0
        %2031 = vmatprep.mubr.bf16.mxu0 0
        %2032 = vmatmul.mubr.bf16.gmra.mrb[0].mxu0 %v1997
        %v2033 = vpop.f32.mrb[0].mxu0
        %v2034 = vadd.f32 0.0, %v2033
        %v2035 = vpop.f32.mrb[0].mxu0
        %v2036 = vpop.f32.mrb[0].mxu0
        %v2037 = vadd.f32 0.0, %v2036
        %v2038 = vpop.f32.mrb[0].mxu0
        %2039 = vdwg.mxu0
        %v2041 = vsel %vm1074, %v1907, 0
        %2043 = vmatprep.subr.bf16.mxu0 0
        %2044 = vmatpush1.bf16.msra.mxu0 %v1624
        %2045 = vmatprep.subr.bf16.mxu0 0
        %2046 = vmatpush1.bf16.msra.mxu0 0
        %2047 = vmatprep.subr.bf16.mxu0 0
        %2048 = vmatpush1.bf16.msra.mxu0 0
        %2049 = vmatprep.subr.bf16.mxu0 0
        %2050 = vmatpush1.bf16.msra.mxu0 0
        %2051 = vmatprep.subr.bf16.mxu0 0
        %2052 = vmatpush1.bf16.msra.mxu0 0
        %2053 = vmatprep.subr.bf16.mxu0 0
        %2054 = vmatpush1.bf16.msra.mxu0 0
        %2055 = vmatprep.subr.bf16.mxu0 0
        %2056 = vmatpush1.bf16.msra.mxu0 0
        %2057 = vmatprep.subr.bf16.mxu0 0
        %2058 = vmatpush1.bf16.msra.mxu0 0
        %2059 = vmatprep.subr.bf16.mxu0 0
        %2060 = vmatpush1.bf16.msra.mxu0 0
        %2061 = vmatprep.subr.bf16.mxu0 0
        %2062 = vmatpush1.bf16.msra.mxu0 0
        %2063 = vmatprep.subr.bf16.mxu0 0
        %2064 = vmatpush1.bf16.msra.mxu0 0
        %2065 = vmatprep.subr.bf16.mxu0 0
        %2066 = vmatpush1.bf16.msra.mxu0 0
        %2067 = vmatprep.subr.bf16.mxu0 0
        %2068 = vmatpush1.bf16.msra.mxu0 0
        %2069 = vmatprep.subr.bf16.mxu0 0
        %2070 = vmatpush1.bf16.msra.mxu0 0
        %2071 = vmatprep.subr.bf16.mxu0 0
        %2072 = vmatpush1.bf16.msra.mxu0 0
        %2073 = vmatprep.subr.bf16.mxu0 0
        %2074 = vmatpush1.bf16.msra.mxu0 0
        %2075 = vmatprep.mubr.bf16.mxu0 0
        %2076 = vmatmul.mubr.bf16.gmra.mrb[0].mxu0 %v2041
        %v2077 = vpop.f32.mrb[0].mxu0
        %v2078 = vadd.f32 0.0, %v2077
        %v2079 = vpop.f32.mrb[0].mxu0
        %v2080 = vpop.f32.mrb[0].mxu0
        %v2081 = vadd.f32 0.0, %v2080
        %v2082 = vpop.f32.mrb[0].mxu0
        %2083 = vdwg.mxu0
        %s2084 = scalar_lea.vmem %s4, 32
        %v2085 = vld [vmem:[%s2084] sm:$0xf]
        %v2086 = vld [vmem:[%s2084 + $0x4] sm:$0xf]
        %v2087 = vld [vmem:[%s2084 + $0x8] sm:$0xf]
        %v2088 = vld [vmem:[%s2084 + $0xc] sm:$0xf]
        %s2089 = scalar_lea.vmem %s7, 2
        %v2090 = vld [vmem:[%s2089] sm:$0x1]
        %v2092 = vlaneseq
        %v2093 = vshrl.u32 %v2092, 7
        %v2094 = vsub.s32 0, %v2093
        %v2095 = vrot.slane %v2090, %v2094
        %v2101 = vunpack.c.l.b16 %v2085
        %v2102 = vunpack.c.l.b16 %v2086
        %v2103 = vunpack.c.l.b16 %v2087
        %v2104 = vunpack.c.l.b16 %v2088
        %v2105 = vpack.c.b16 %v2102, %v2101
        %v2106 = vpack.c.b16 %v2104, %v2103
        %2109 = vmatprep.subr.bf16.mxu0 0
        %2110 = vmatpush1.bf16.msra.mxu0 %v2105
        %2111 = vmatprep.subr.bf16.mxu0 0
        %2112 = vmatpush1.bf16.msra.mxu0 %v2106
        %2113 = vmatprep.subr.bf16.mxu0 0
        %2114 = vmatpush1.bf16.msra.mxu0 0
        %2115 = vmatprep.subr.bf16.mxu0 0
        %2116 = vmatpush1.bf16.msra.mxu0 0
        %2117 = vmatprep.subr.bf16.mxu0 0
        %2118 = vmatpush1.bf16.msra.mxu0 0
        %2119 = vmatprep.subr.bf16.mxu0 0
        %2120 = vmatpush1.bf16.msra.mxu0 0
        %2121 = vmatprep.subr.bf16.mxu0 0
        %2122 = vmatpush1.bf16.msra.mxu0 0
        %2123 = vmatprep.subr.bf16.mxu0 0
        %2124 = vmatpush1.bf16.msra.mxu0 0
        %2125 = vmatprep.subr.bf16.mxu0 0
        %2126 = vmatpush1.bf16.msra.mxu0 0
        %2127 = vmatprep.subr.bf16.mxu0 0
        %2128 = vmatpush1.bf16.msra.mxu0 0
        %2129 = vmatprep.subr.bf16.mxu0 0
        %2130 = vmatpush1.bf16.msra.mxu0 0
        %2131 = vmatprep.subr.bf16.mxu0 0
        %2132 = vmatpush1.bf16.msra.mxu0 0
        %2133 = vmatprep.subr.bf16.mxu0 0
        %2134 = vmatpush1.bf16.msra.mxu0 0
        %2135 = vmatprep.subr.bf16.mxu0 0
        %2136 = vmatpush1.bf16.msra.mxu0 0
        %2137 = vmatprep.subr.bf16.mxu0 0
        %2138 = vmatpush1.bf16.msra.mxu0 0
        %2139 = vmatprep.subr.bf16.mxu0 0
        %2140 = vmatpush1.bf16.msra.mxu0 0
        %2141 = vmatprep.mubr.bf16.mxu0 0
        %2142 = vmatmul.mubr.bf16.gmra.mrb[0].mxu0 %v619
        %v2143 = vpop.f32.mrb[0].mxu0
        %v2144 = vadd.f32 %v2095, %v2143
        %v2145 = vpop.f32.mrb[0].mxu0
        %v2146 = vpop.f32.mrb[0].mxu0
        %v2147 = vadd.f32 %v2095, %v2146
        %v2148 = vpop.f32.mrb[0].mxu0
        %2149 = vmatprep.mubr.bf16.mxu0 0
        %2150 = vmatmul.mubr.bf16.gmra.mrb[0].mxu0 %v622
        %v2151 = vpop.f32.mrb[0].mxu0
        %v2152 = vadd.f32 %v2095, %v2151
        %v2153 = vpop.f32.mrb[0].mxu0
        %v2154 = vpop.f32.mrb[0].mxu0
        %v2155 = vadd.f32 %v2095, %v2154
        %v2156 = vpop.f32.mrb[0].mxu0
        %2157 = vmatprep.mubr.bf16.mxu0 0
        %2158 = vmatmul.mubr.bf16.gmra.mrb[0].mxu0 %v625
        %v2159 = vpop.f32.mrb[0].mxu0
        %v2160 = vadd.f32 %v2095, %v2159
        %v2161 = vpop.f32.mrb[0].mxu0
        %v2162 = vpop.f32.mrb[0].mxu0
        %v2163 = vadd.f32 %v2095, %v2162
        %v2164 = vpop.f32.mrb[0].mxu0
        %2165 = vmatprep.mubr.bf16.mxu0 0
        %2166 = vmatmul.mubr.bf16.gmra.mrb[0].mxu0 %v628
        %v2167 = vpop.f32.mrb[0].mxu0
        %v2168 = vadd.f32 %v2095, %v2167
        %v2169 = vpop.f32.mrb[0].mxu0
        %v2170 = vpop.f32.mrb[0].mxu0
        %v2171 = vadd.f32 %v2095, %v2170
        %v2172 = vpop.f32.mrb[0].mxu0
        %2173 = vdwg.mxu0
        %s2174 = scalar_lea.vmem %s5, 32
        %v2175 = vld [vmem:[%s2174] sm:$0xf]
        %v2176 = vld [vmem:[%s2174 + $0x4] sm:$0xf]
        %v2177 = vld [vmem:[%s2174 + $0x8] sm:$0xf]
        %v2178 = vld [vmem:[%s2174 + $0xc] sm:$0xf]
        %s2179 = scalar_lea.vmem %s8, 2
        %v2180 = vld [vmem:[%s2179] sm:$0x1]
        %v2182 = vlaneseq
        %v2183 = vshrl.u32 %v2182, 7
        %v2184 = vsub.s32 0, %v2183
        %v2185 = vrot.slane %v2180, %v2184
        %v2191 = vunpack.c.l.b16 %v2175
        %v2192 = vunpack.c.l.b16 %v2176
        %v2193 = vunpack.c.l.b16 %v2177
        %v2194 = vunpack.c.l.b16 %v2178
        %v2195 = vpack.c.b16 %v2192, %v2191
        %v2196 = vpack.c.b16 %v2194, %v2193
        %2199 = vmatprep.subr.bf16.mxu0 0
        %2200 = vmatpush1.bf16.msra.mxu0 %v2195
        %2201 = vmatprep.subr.bf16.mxu0 0
        %2202 = vmatpush1.bf16.msra.mxu0 %v2196
        %2203 = vmatprep.subr.bf16.mxu0 0
        %2204 = vmatpush1.bf16.msra.mxu0 0
        %2205 = vmatprep.subr.bf16.mxu0 0
        %2206 = vmatpush1.bf16.msra.mxu0 0
        %2207 = vmatprep.subr.bf16.mxu0 0
        %2208 = vmatpush1.bf16.msra.mxu0 0
        %2209 = vmatprep.subr.bf16.mxu0 0
        %2210 = vmatpush1.bf16.msra.mxu0 0
        %2211 = vmatprep.subr.bf16.mxu0 0
        %2212 = vmatpush1.bf16.msra.mxu0 0
        %2213 = vmatprep.subr.bf16.mxu0 0
        %2214 = vmatpush1.bf16.msra.mxu0 0
        %2215 = vmatprep.subr.bf16.mxu0 0
        %2216 = vmatpush1.bf16.msra.mxu0 0
        %2217 = vmatprep.subr.bf16.mxu0 0
        %2218 = vmatpush1.bf16.msra.mxu0 0
        %2219 = vmatprep.subr.bf16.mxu0 0
        %2220 = vmatpush1.bf16.msra.mxu0 0
        %2221 = vmatprep.subr.bf16.mxu0 0
        %2222 = vmatpush1.bf16.msra.mxu0 0
        %2223 = vmatprep.subr.bf16.mxu0 0
        %2224 = vmatpush1.bf16.msra.mxu0 0
        %2225 = vmatprep.subr.bf16.mxu0 0
        %2226 = vmatpush1.bf16.msra.mxu0 0
        %2227 = vmatprep.subr.bf16.mxu0 0
        %2228 = vmatpush1.bf16.msra.mxu0 0
        %2229 = vmatprep.subr.bf16.mxu0 0
        %2230 = vmatpush1.bf16.msra.mxu0 0
        %2231 = vmatprep.mubr.bf16.mxu0 0
        %2232 = vmatmul.mubr.bf16.gmra.mrb[0].mxu0 %v619
        %v2233 = vpop.f32.mrb[0].mxu0
        %v2234 = vadd.f32 %v2185, %v2233
        %v2235 = vpop.f32.mrb[0].mxu0
        %v2236 = vpop.f32.mrb[0].mxu0
        %v2237 = vadd.f32 %v2185, %v2236
        %v2238 = vpop.f32.mrb[0].mxu0
        %2239 = vmatprep.mubr.bf16.mxu0 0
        %2240 = vmatmul.mubr.bf16.gmra.mrb[0].mxu0 %v622
        %v2241 = vpop.f32.mrb[0].mxu0
        %v2242 = vadd.f32 %v2185, %v2241
        %v2243 = vpop.f32.mrb[0].mxu0
        %v2244 = vpop.f32.mrb[0].mxu0
        %v2245 = vadd.f32 %v2185, %v2244
        %v2246 = vpop.f32.mrb[0].mxu0
        %2247 = vmatprep.mubr.bf16.mxu0 0
        %2248 = vmatmul.mubr.bf16.gmra.mrb[0].mxu0 %v625
        %v2249 = vpop.f32.mrb[0].mxu0
        %v2250 = vadd.f32 %v2185, %v2249
        %v2251 = vpop.f32.mrb[0].mxu0
        %v2252 = vpop.f32.mrb[0].mxu0
        %v2253 = vadd.f32 %v2185, %v2252
        %v2254 = vpop.f32.mrb[0].mxu0
        %2255 = vmatprep.mubr.bf16.mxu0 0
        %2256 = vmatmul.mubr.bf16.gmra.mrb[0].mxu0 %v628
        %v2257 = vpop.f32.mrb[0].mxu0
        %v2258 = vadd.f32 %v2185, %v2257
        %v2259 = vpop.f32.mrb[0].mxu0
        %v2260 = vpop.f32.mrb[0].mxu0
        %v2261 = vadd.f32 %v2185, %v2260
        %v2262 = vpop.f32.mrb[0].mxu0
        %2263 = vdwg.mxu0
        %s2264 = scalar_lea.vmem %s6, 32
        %v2265 = vld [vmem:[%s2264] sm:$0xf]
        %v2266 = vld [vmem:[%s2264 + $0x4] sm:$0xf]
        %v2267 = vld [vmem:[%s2264 + $0x8] sm:$0xf]
        %v2268 = vld [vmem:[%s2264 + $0xc] sm:$0xf]
        %s2269 = scalar_lea.vmem %s9, 2
        %v2270 = vld [vmem:[%s2269] sm:$0x1]
        %v2272 = vlaneseq
        %v2273 = vshrl.u32 %v2272, 7
        %v2274 = vsub.s32 0, %v2273
        %v2275 = vrot.slane %v2270, %v2274
        %v2281 = vunpack.c.l.b16 %v2265
        %v2282 = vunpack.c.l.b16 %v2266
        %v2283 = vunpack.c.l.b16 %v2267
        %v2284 = vunpack.c.l.b16 %v2268
        %v2285 = vpack.c.b16 %v2282, %v2281
        %v2286 = vpack.c.b16 %v2284, %v2283
        %2289 = vmatprep.subr.bf16.mxu0 0
        %2290 = vmatpush1.bf16.msra.mxu0 %v2285
        %2291 = vmatprep.subr.bf16.mxu0 0
        %2292 = vmatpush1.bf16.msra.mxu0 %v2286
        %2293 = vmatprep.subr.bf16.mxu0 0
        %2294 = vmatpush1.bf16.msra.mxu0 0
        %2295 = vmatprep.subr.bf16.mxu0 0
        %2296 = vmatpush1.bf16.msra.mxu0 0
        %2297 = vmatprep.subr.bf16.mxu0 0
        %2298 = vmatpush1.bf16.msra.mxu0 0
        %2299 = vmatprep.subr.bf16.mxu0 0
        %2300 = vmatpush1.bf16.msra.mxu0 0
        %2301 = vmatprep.subr.bf16.mxu0 0
        %2302 = vmatpush1.bf16.msra.mxu0 0
        %2303 = vmatprep.subr.bf16.mxu0 0
        %2304 = vmatpush1.bf16.msra.mxu0 0
        %2305 = vmatprep.subr.bf16.mxu0 0
        %2306 = vmatpush1.bf16.msra.mxu0 0
        %2307 = vmatprep.subr.bf16.mxu0 0
        %2308 = vmatpush1.bf16.msra.mxu0 0
        %2309 = vmatprep.subr.bf16.mxu0 0
        %2310 = vmatpush1.bf16.msra.mxu0 0
        %2311 = vmatprep.subr.bf16.mxu0 0
        %2312 = vmatpush1.bf16.msra.mxu0 0
        %2313 = vmatprep.subr.bf16.mxu0 0
        %2314 = vmatpush1.bf16.msra.mxu0 0
        %2315 = vmatprep.subr.bf16.mxu0 0
        %2316 = vmatpush1.bf16.msra.mxu0 0
        %2317 = vmatprep.subr.bf16.mxu0 0
        %2318 = vmatpush1.bf16.msra.mxu0 0
        %2319 = vmatprep.subr.bf16.mxu0 0
        %2320 = vmatpush1.bf16.msra.mxu0 0
        %2321 = vmatprep.mubr.bf16.mxu0 0
        %2322 = vmatmul.mubr.bf16.gmra.mrb[0].mxu0 %v619
        %v2323 = vpop.f32.mrb[0].mxu0
        %v2324 = vadd.f32 %v2275, %v2323
        %v2325 = vpop.f32.mrb[0].mxu0
        %v2326 = vpop.f32.mrb[0].mxu0
        %v2327 = vadd.f32 %v2275, %v2326
        %v2328 = vpop.f32.mrb[0].mxu0
        %2329 = vmatprep.mubr.bf16.mxu0 0
        %2330 = vmatmul.mubr.bf16.gmra.mrb[0].mxu0 %v622
        %v2331 = vpop.f32.mrb[0].mxu0
        %v2332 = vadd.f32 %v2275, %v2331
        %v2333 = vpop.f32.mrb[0].mxu0
        %v2334 = vpop.f32.mrb[0].mxu0
        %v2335 = vadd.f32 %v2275, %v2334
        %v2336 = vpop.f32.mrb[0].mxu0
        %2337 = vmatprep.mubr.bf16.mxu0 0
        %2338 = vmatmul.mubr.bf16.gmra.mrb[0].mxu0 %v625
        %v2339 = vpop.f32.mrb[0].mxu0
        %v2340 = vadd.f32 %v2275, %v2339
        %v2341 = vpop.f32.mrb[0].mxu0
        %v2342 = vpop.f32.mrb[0].mxu0
        %v2343 = vadd.f32 %v2275, %v2342
        %v2344 = vpop.f32.mrb[0].mxu0
        %2345 = vmatprep.mubr.bf16.mxu0 0
        %2346 = vmatmul.mubr.bf16.gmra.mrb[0].mxu0 %v628
        %v2347 = vpop.f32.mrb[0].mxu0
        %v2348 = vadd.f32 %v2275, %v2347
        %v2349 = vpop.f32.mrb[0].mxu0
        %v2350 = vpop.f32.mrb[0].mxu0
        %v2351 = vadd.f32 %v2275, %v2350
        %v2352 = vpop.f32.mrb[0].mxu0
        %2353 = vdwg.mxu0
        %v2354 = vpack.c.bf16 %v2147, %v2144
        %v2355 = vpack.c.bf16 %v2155, %v2152
        %v2356 = vpack.c.bf16 %v2163, %v2160
        %v2357 = vpack.c.bf16 %v2171, %v2168
        %v2358 = vpack.c.bf16 %v2237, %v2234
        %v2359 = vpack.c.bf16 %v2245, %v2242
        %v2360 = vpack.c.bf16 %v2253, %v2250
        %v2361 = vpack.c.bf16 %v2261, %v2258
        %v2362 = vpack.c.bf16 %v2327, %v2324
        %v2363 = vpack.c.bf16 %v2335, %v2332
        %v2364 = vpack.c.bf16 %v2343, %v2340
        %v2365 = vpack.c.bf16 %v2351, %v2348
        %s2366 = scalar_lea.vmem %s1, 32
        %v2367 = vld [vmem:[%s2366] sm:$0xff]
        %v2368 = vld [vmem:[%s2366 + $0x8] sm:$0xff]
        %v2370 = vsel %vm885, %v2354, 0
        %v2373 = vsel %vm885, %v2358, 0
        %2375 = vmatprep.subr.bf16.mxu0 0
        %2376 = vmatpush1.bf16.xpose.msra.mxu0 %v2373
        %2377 = vmatprep.subr.bf16.mxu0 0
        %2378 = vmatpush1.bf16.xpose.msra.mxu0 0
        %2379 = vmatprep.subr.bf16.mxu0 0
        %2380 = vmatpush1.bf16.xpose.msra.mxu0 0
        %2381 = vmatprep.subr.bf16.mxu0 0
        %2382 = vmatpush1.bf16.xpose.msra.mxu0 0
        %2383 = vmatprep.subr.bf16.mxu0 0
        %2384 = vmatpush1.bf16.xpose.msra.mxu0 0
        %2385 = vmatprep.subr.bf16.mxu0 0
        %2386 = vmatpush1.bf16.xpose.msra.mxu0 0
        %2387 = vmatprep.subr.bf16.mxu0 0
        %2388 = vmatpush1.bf16.xpose.msra.mxu0 0
        %2389 = vmatprep.subr.bf16.mxu0 0
        %2390 = vmatpush1.bf16.xpose.msra.mxu0 0
        %2391 = vmatprep.subr.bf16.mxu0 0
        %2392 = vmatpush1.bf16.xpose.msra.mxu0 0
        %2393 = vmatprep.subr.bf16.mxu0 0
        %2394 = vmatpush1.bf16.xpose.msra.mxu0 0
        %2395 = vmatprep.subr.bf16.mxu0 0
        %2396 = vmatpush1.bf16.xpose.msra.mxu0 0
        %2397 = vmatprep.subr.bf16.mxu0 0
        %2398 = vmatpush1.bf16.xpose.msra.mxu0 0
        %2399 = vmatprep.subr.bf16.mxu0 0
        %2400 = vmatpush1.bf16.xpose.msra.mxu0 0
        %2401 = vmatprep.subr.bf16.mxu0 0
        %2402 = vmatpush1.bf16.xpose.msra.mxu0 0
        %2403 = vmatprep.subr.bf16.mxu0 0
        %2404 = vmatpush1.bf16.xpose.msra.mxu0 0
        %2405 = vmatprep.subr.bf16.mxu0 0
        %2406 = vmatpush1.bf16.xpose.msra.mxu0 0
        %2407 = vmatprep.mubr.bf16.mxu0 0
        %2408 = vmatmul.mubr.bf16.gmra.mrb[0].mxu0 %v2370
        %v2409 = vpop.f32.mrb[0].mxu0
        %v2410 = vadd.f32 %v2367, %v2409
        %v2411 = vpop.f32.mrb[0].mxu0
        %v2412 = vpop.f32.mrb[0].mxu0
        %v2413 = vadd.f32 %v2368, %v2412
        %v2414 = vpop.f32.mrb[0].mxu0
        %2415 = vdwg.mxu0
        %v2417 = vsel %vm885, %v2355, 0
        %v2420 = vsel %vm885, %v2359, 0
        %2422 = vmatprep.subr.bf16.mxu0 0
        %2423 = vmatpush1.bf16.xpose.msra.mxu0 %v2420
        %2424 = vmatprep.subr.bf16.mxu0 0
        %2425 = vmatpush1.bf16.xpose.msra.mxu0 0
        %2426 = vmatprep.subr.bf16.mxu0 0
        %2427 = vmatpush1.bf16.xpose.msra.mxu0 0
        %2428 = vmatprep.subr.bf16.mxu0 0
        %2429 = vmatpush1.bf16.xpose.msra.mxu0 0
        %2430 = vmatprep.subr.bf16.mxu0 0
        %2431 = vmatpush1.bf16.xpose.msra.mxu0 0
        %2432 = vmatprep.subr.bf16.mxu0 0
        %2433 = vmatpush1.bf16.xpose.msra.mxu0 0
        %2434 = vmatprep.subr.bf16.mxu0 0
        %2435 = vmatpush1.bf16.xpose.msra.mxu0 0
        %2436 = vmatprep.subr.bf16.mxu0 0
        %2437 = vmatpush1.bf16.xpose.msra.mxu0 0
        %2438 = vmatprep.subr.bf16.mxu0 0
        %2439 = vmatpush1.bf16.xpose.msra.mxu0 0
        %2440 = vmatprep.subr.bf16.mxu0 0
        %2441 = vmatpush1.bf16.xpose.msra.mxu0 0
        %2442 = vmatprep.subr.bf16.mxu0 0
        %2443 = vmatpush1.bf16.xpose.msra.mxu0 0
        %2444 = vmatprep.subr.bf16.mxu0 0
        %2445 = vmatpush1.bf16.xpose.msra.mxu0 0
        %2446 = vmatprep.subr.bf16.mxu0 0
        %2447 = vmatpush1.bf16.xpose.msra.mxu0 0
        %2448 = vmatprep.subr.bf16.mxu0 0
        %2449 = vmatpush1.bf16.xpose.msra.mxu0 0
        %2450 = vmatprep.subr.bf16.mxu0 0
        %2451 = vmatpush1.bf16.xpose.msra.mxu0 0
        %2452 = vmatprep.subr.bf16.mxu0 0
        %2453 = vmatpush1.bf16.xpose.msra.mxu0 0
        %2454 = vmatprep.mubr.bf16.mxu0 0
        %2455 = vmatmul.mubr.bf16.gmra.mrb[0].mxu0 %v2417
        %v2456 = vpop.f32.mrb[0].mxu0
        %v2457 = vadd.f32 %v2367, %v2456
        %v2458 = vpop.f32.mrb[0].mxu0
        %v2459 = vpop.f32.mrb[0].mxu0
        %v2460 = vadd.f32 %v2368, %v2459
        %v2461 = vpop.f32.mrb[0].mxu0
        %2462 = vdwg.mxu0
        %v2464 = vsel %vm885, %v2356, 0
        %v2467 = vsel %vm885, %v2360, 0
        %2469 = vmatprep.subr.bf16.mxu0 0
        %2470 = vmatpush1.bf16.xpose.msra.mxu0 %v2467
        %2471 = vmatprep.subr.bf16.mxu0 0
        %2472 = vmatpush1.bf16.xpose.msra.mxu0 0
        %2473 = vmatprep.subr.bf16.mxu0 0
        %2474 = vmatpush1.bf16.xpose.msra.mxu0 0
        %2475 = vmatprep.subr.bf16.mxu0 0
        %2476 = vmatpush1.bf16.xpose.msra.mxu0 0
        %2477 = vmatprep.subr.bf16.mxu0 0
        %2478 = vmatpush1.bf16.xpose.msra.mxu0 0
        %2479 = vmatprep.subr.bf16.mxu0 0
        %2480 = vmatpush1.bf16.xpose.msra.mxu0 0
        %2481 = vmatprep.subr.bf16.mxu0 0
        %2482 = vmatpush1.bf16.xpose.msra.mxu0 0
        %2483 = vmatprep.subr.bf16.mxu0 0
        %2484 = vmatpush1.bf16.xpose.msra.mxu0 0
        %2485 = vmatprep.subr.bf16.mxu0 0
        %2486 = vmatpush1.bf16.xpose.msra.mxu0 0
        %2487 = vmatprep.subr.bf16.mxu0 0
        %2488 = vmatpush1.bf16.xpose.msra.mxu0 0
        %2489 = vmatprep.subr.bf16.mxu0 0
        %2490 = vmatpush1.bf16.xpose.msra.mxu0 0
        %2491 = vmatprep.subr.bf16.mxu0 0
        %2492 = vmatpush1.bf16.xpose.msra.mxu0 0
        %2493 = vmatprep.subr.bf16.mxu0 0
        %2494 = vmatpush1.bf16.xpose.msra.mxu0 0
        %2495 = vmatprep.subr.bf16.mxu0 0
        %2496 = vmatpush1.bf16.xpose.msra.mxu0 0
        %2497 = vmatprep.subr.bf16.mxu0 0
        %2498 = vmatpush1.bf16.xpose.msra.mxu0 0
        %2499 = vmatprep.subr.bf16.mxu0 0
        %2500 = vmatpush1.bf16.xpose.msra.mxu0 0
        %2501 = vmatprep.mubr.bf16.mxu0 0
        %2502 = vmatmul.mubr.bf16.gmra.mrb[0].mxu0 %v2464
        %v2503 = vpop.f32.mrb[0].mxu0
        %v2504 = vadd.f32 %v2367, %v2503
        %v2505 = vpop.f32.mrb[0].mxu0
        %v2506 = vpop.f32.mrb[0].mxu0
        %v2507 = vadd.f32 %v2368, %v2506
        %v2508 = vpop.f32.mrb[0].mxu0
        %2509 = vdwg.mxu0
        %v2511 = vsel %vm885, %v2357, 0
        %v2514 = vsel %vm885, %v2361, 0
        %2516 = vmatprep.subr.bf16.mxu0 0
        %2517 = vmatpush1.bf16.xpose.msra.mxu0 %v2514
        %2518 = vmatprep.subr.bf16.mxu0 0
        %2519 = vmatpush1.bf16.xpose.msra.mxu0 0
        %2520 = vmatprep.subr.bf16.mxu0 0
        %2521 = vmatpush1.bf16.xpose.msra.mxu0 0
        %2522 = vmatprep.subr.bf16.mxu0 0
        %2523 = vmatpush1.bf16.xpose.msra.mxu0 0
        %2524 = vmatprep.subr.bf16.mxu0 0
        %2525 = vmatpush1.bf16.xpose.msra.mxu0 0
        %2526 = vmatprep.subr.bf16.mxu0 0
        %2527 = vmatpush1.bf16.xpose.msra.mxu0 0
        %2528 = vmatprep.subr.bf16.mxu0 0
        %2529 = vmatpush1.bf16.xpose.msra.mxu0 0
        %2530 = vmatprep.subr.bf16.mxu0 0
        %2531 = vmatpush1.bf16.xpose.msra.mxu0 0
        %2532 = vmatprep.subr.bf16.mxu0 0
        %2533 = vmatpush1.bf16.xpose.msra.mxu0 0
        %2534 = vmatprep.subr.bf16.mxu0 0
        %2535 = vmatpush1.bf16.xpose.msra.mxu0 0
        %2536 = vmatprep.subr.bf16.mxu0 0
        %2537 = vmatpush1.bf16.xpose.msra.mxu0 0
        %2538 = vmatprep.subr.bf16.mxu0 0
        %2539 = vmatpush1.bf16.xpose.msra.mxu0 0
        %2540 = vmatprep.subr.bf16.mxu0 0
        %2541 = vmatpush1.bf16.xpose.msra.mxu0 0
        %2542 = vmatprep.subr.bf16.mxu0 0
        %2543 = vmatpush1.bf16.xpose.msra.mxu0 0
        %2544 = vmatprep.subr.bf16.mxu0 0
        %2545 = vmatpush1.bf16.xpose.msra.mxu0 0
        %2546 = vmatprep.subr.bf16.mxu0 0
        %2547 = vmatpush1.bf16.xpose.msra.mxu0 0
        %2548 = vmatprep.mubr.bf16.mxu0 0
        %2549 = vmatmul.mubr.bf16.gmra.mrb[0].mxu0 %v2511
        %v2550 = vpop.f32.mrb[0].mxu0
        %v2551 = vadd.f32 %v2367, %v2550
        %v2552 = vpop.f32.mrb[0].mxu0
        %v2553 = vpop.f32.mrb[0].mxu0
        %v2554 = vadd.f32 %v2368, %v2553
        %v2555 = vpop.f32.mrb[0].mxu0
        %2556 = vdwg.mxu0
        %v2557 = vsel %vm1074, %v2410, -inf
        %2558 = vmax.xlane.f32.xlu0 %v2557
        %v2559 = vpop.xlane.xlu0 %2558
        %v2560 = vsel %vm1074, %v2413, -inf
        %2561 = vmax.xlane.f32.xlu0 %v2560
        %v2562 = vpop.xlane.xlu0 %2561
        %v2563 = vsel %vm1074, %v2457, -inf
        %2564 = vmax.xlane.f32.xlu0 %v2563
        %v2565 = vpop.xlane.xlu0 %2564
        %v2566 = vsel %vm1074, %v2460, -inf
        %2567 = vmax.xlane.f32.xlu0 %v2566
        %v2568 = vpop.xlane.xlu0 %2567
        %v2569 = vsel %vm1074, %v2504, -inf
        %2570 = vmax.xlane.f32.xlu0 %v2569
        %v2571 = vpop.xlane.xlu0 %2570
        %v2572 = vsel %vm1074, %v2507, -inf
        %2573 = vmax.xlane.f32.xlu0 %v2572
        %v2574 = vpop.xlane.xlu0 %2573
        %v2575 = vsel %vm1074, %v2551, -inf
        %2576 = vmax.xlane.f32.xlu0 %v2575
        %v2577 = vpop.xlane.xlu0 %2576
        %v2578 = vsel %vm1074, %v2554, -inf
        %2579 = vmax.xlane.f32.xlu0 %v2578
        %v2580 = vpop.xlane.xlu0 %2579
        %v2581 = vsub.f32 %v2410, %v2559
        %v2582 = vsub.f32 %v2413, %v2562
        %v2583 = vsub.f32 %v2457, %v2565
        %v2584 = vsub.f32 %v2460, %v2568
        %v2585 = vsub.f32 %v2504, %v2571
        %v2586 = vsub.f32 %v2507, %v2574
        %v2587 = vsub.f32 %v2551, %v2577
        %v2588 = vsub.f32 %v2554, %v2580
        %v2589 = vmul.f32 %v2581, 1.442695
        %v2590 = vpow.pop %v2589
        %v2591 = vmul.f32 %v2582, 1.442695
        %v2592 = vpow.pop %v2591
        %v2593 = vmul.f32 %v2583, 1.442695
        %v2594 = vpow.pop %v2593
        %v2595 = vmul.f32 %v2584, 1.442695
        %v2596 = vpow.pop %v2595
        %v2597 = vmul.f32 %v2585, 1.442695
        %v2598 = vpow.pop %v2597
        %v2599 = vmul.f32 %v2586, 1.442695
        %v2600 = vpow.pop %v2599
        %v2601 = vmul.f32 %v2587, 1.442695
        %v2602 = vpow.pop %v2601
        %v2603 = vmul.f32 %v2588, 1.442695
        %v2604 = vpow.pop %v2603
        %v2605 = vsel %vm1074, %v2590, 0.0
        %2606 = vadd.xlane.f32.xlu0 %v2605
        %v2607 = vpop.xlane.xlu0 %2606
        %v2608 = vsel %vm1074, %v2592, 0.0
        %2609 = vadd.xlane.f32.xlu0 %v2608
        %v2610 = vpop.xlane.xlu0 %2609
        %v2611 = vsel %vm1074, %v2594, 0.0
        %2612 = vadd.xlane.f32.xlu0 %v2611
        %v2613 = vpop.xlane.xlu0 %2612
        %v2614 = vsel %vm1074, %v2596, 0.0
        %2615 = vadd.xlane.f32.xlu0 %v2614
        %v2616 = vpop.xlane.xlu0 %2615
        %v2617 = vsel %vm1074, %v2598, 0.0
        %2618 = vadd.xlane.f32.xlu0 %v2617
        %v2619 = vpop.xlane.xlu0 %2618
        %v2620 = vsel %vm1074, %v2600, 0.0
        %2621 = vadd.xlane.f32.xlu0 %v2620
        %v2622 = vpop.xlane.xlu0 %2621
        %v2623 = vsel %vm1074, %v2602, 0.0
        %2624 = vadd.xlane.f32.xlu0 %v2623
        %v2625 = vpop.xlane.xlu0 %2624
        %v2626 = vsel %vm1074, %v2604, 0.0
        %2627 = vadd.xlane.f32.xlu0 %v2626
        %v2628 = vpop.xlane.xlu0 %2627
        %v2629 = vrcp.pop %v2607
        %v2630 = vrcp.pop %v2610
        %v2631 = vrcp.pop %v2613
        %v2632 = vrcp.pop %v2616
        %v2633 = vrcp.pop %v2619
        %v2634 = vrcp.pop %v2622
        %v2635 = vrcp.pop %v2625
        %v2636 = vrcp.pop %v2628
        %v2637 = vmul.f32 %v2590, %v2629
        %v2638 = vmul.f32 %v2592, %v2630
        %v2639 = vmul.f32 %v2594, %v2631
        %v2640 = vmul.f32 %v2596, %v2632
        %v2641 = vmul.f32 %v2598, %v2633
        %v2642 = vmul.f32 %v2600, %v2634
        %v2643 = vmul.f32 %v2602, %v2635
        %v2644 = vmul.f32 %v2604, %v2636
        %v2645 = vpack.c.bf16 %v2638, %v2637
        %v2646 = vpack.c.bf16 %v2640, %v2639
        %v2647 = vpack.c.bf16 %v2642, %v2641
        %v2648 = vpack.c.bf16 %v2644, %v2643
        %v2650 = vsel %vm1074, %v2645, 0
        %2652 = vmatprep.subr.bf16.mxu0 0
        %2653 = vmatpush1.bf16.msra.mxu0 %v2362
        %2654 = vmatprep.subr.bf16.mxu0 0
        %2655 = vmatpush1.bf16.msra.mxu0 0
        %2656 = vmatprep.subr.bf16.mxu0 0
        %2657 = vmatpush1.bf16.msra.mxu0 0
        %2658 = vmatprep.subr.bf16.mxu0 0
        %2659 = vmatpush1.bf16.msra.mxu0 0
        %2660 = vmatprep.subr.bf16.mxu0 0
        %2661 = vmatpush1.bf16.msra.mxu0 0
        %2662 = vmatprep.subr.bf16.mxu0 0
        %2663 = vmatpush1.bf16.msra.mxu0 0
        %2664 = vmatprep.subr.bf16.mxu0 0
        %2665 = vmatpush1.bf16.msra.mxu0 0
        %2666 = vmatprep.subr.bf16.mxu0 0
        %2667 = vmatpush1.bf16.msra.mxu0 0
        %2668 = vmatprep.subr.bf16.mxu0 0
        %2669 = vmatpush1.bf16.msra.mxu0 0
        %2670 = vmatprep.subr.bf16.mxu0 0
        %2671 = vmatpush1.bf16.msra.mxu0 0
        %2672 = vmatprep.subr.bf16.mxu0 0
        %2673 = vmatpush1.bf16.msra.mxu0 0
        %2674 = vmatprep.subr.bf16.mxu0 0
        %2675 = vmatpush1.bf16.msra.mxu0 0
        %2676 = vmatprep.subr.bf16.mxu0 0
        %2677 = vmatpush1.bf16.msra.mxu0 0
        %2678 = vmatprep.subr.bf16.mxu0 0
        %2679 = vmatpush1.bf16.msra.mxu0 0
        %2680 = vmatprep.subr.bf16.mxu0 0
        %2681 = vmatpush1.bf16.msra.mxu0 0
        %2682 = vmatprep.subr.bf16.mxu0 0
        %2683 = vmatpush1.bf16.msra.mxu0 0
        %2684 = vmatprep.mubr.bf16.mxu0 0
        %2685 = vmatmul.mubr.bf16.gmra.mrb[0].mxu0 %v2650
        %v2686 = vpop.f32.mrb[0].mxu0
        %v2687 = vadd.f32 0.0, %v2686
        %v2688 = vpop.f32.mrb[0].mxu0
        %v2689 = vpop.f32.mrb[0].mxu0
        %v2690 = vadd.f32 0.0, %v2689
        %v2691 = vpop.f32.mrb[0].mxu0
        %2692 = vdwg.mxu0
        %v2694 = vsel %vm1074, %v2646, 0
        %2696 = vmatprep.subr.bf16.mxu0 0
        %2697 = vmatpush1.bf16.msra.mxu0 %v2363
        %2698 = vmatprep.subr.bf16.mxu0 0
        %2699 = vmatpush1.bf16.msra.mxu0 0
        %2700 = vmatprep.subr.bf16.mxu0 0
        %2701 = vmatpush1.bf16.msra.mxu0 0
        %2702 = vmatprep.subr.bf16.mxu0 0
        %2703 = vmatpush1.bf16.msra.mxu0 0
        %2704 = vmatprep.subr.bf16.mxu0 0
        %2705 = vmatpush1.bf16.msra.mxu0 0
        %2706 = vmatprep.subr.bf16.mxu0 0
        %2707 = vmatpush1.bf16.msra.mxu0 0
        %2708 = vmatprep.subr.bf16.mxu0 0
        %2709 = vmatpush1.bf16.msra.mxu0 0
        %2710 = vmatprep.subr.bf16.mxu0 0
        %2711 = vmatpush1.bf16.msra.mxu0 0
        %2712 = vmatprep.subr.bf16.mxu0 0
        %2713 = vmatpush1.bf16.msra.mxu0 0
        %2714 = vmatprep.subr.bf16.mxu0 0
        %2715 = vmatpush1.bf16.msra.mxu0 0
        %2716 = vmatprep.subr.bf16.mxu0 0
        %2717 = vmatpush1.bf16.msra.mxu0 0
        %2718 = vmatprep.subr.bf16.mxu0 0
        %2719 = vmatpush1.bf16.msra.mxu0 0
        %2720 = vmatprep.subr.bf16.mxu0 0
        %2721 = vmatpush1.bf16.msra.mxu0 0
        %2722 = vmatprep.subr.bf16.mxu0 0
        %2723 = vmatpush1.bf16.msra.mxu0 0
        %2724 = vmatprep.subr.bf16.mxu0 0
        %2725 = vmatpush1.bf16.msra.mxu0 0
        %2726 = vmatprep.subr.bf16.mxu0 0
        %2727 = vmatpush1.bf16.msra.mxu0 0
        %2728 = vmatprep.mubr.bf16.mxu0 0
        %2729 = vmatmul.mubr.bf16.gmra.mrb[0].mxu0 %v2694
        %v2730 = vpop.f32.mrb[0].mxu0
        %v2731 = vadd.f32 0.0, %v2730
        %v2732 = vpop.f32.mrb[0].mxu0
        %v2733 = vpop.f32.mrb[0].mxu0
        %v2734 = vadd.f32 0.0, %v2733
        %v2735 = vpop.f32.mrb[0].mxu0
        %2736 = vdwg.mxu0
        %v2738 = vsel %vm1074, %v2647, 0
        %2740 = vmatprep.subr.bf16.mxu0 0
        %2741 = vmatpush1.bf16.msra.mxu0 %v2364
        %2742 = vmatprep.subr.bf16.mxu0 0
        %2743 = vmatpush1.bf16.msra.mxu0 0
        %2744 = vmatprep.subr.bf16.mxu0 0
        %2745 = vmatpush1.bf16.msra.mxu0 0
        %2746 = vmatprep.subr.bf16.mxu0 0
        %2747 = vmatpush1.bf16.msra.mxu0 0
        %2748 = vmatprep.subr.bf16.mxu0 0
        %2749 = vmatpush1.bf16.msra.mxu0 0
        %2750 = vmatprep.subr.bf16.mxu0 0
        %2751 = vmatpush1.bf16.msra.mxu0 0
        %2752 = vmatprep.subr.bf16.mxu0 0
        %2753 = vmatpush1.bf16.msra.mxu0 0
        %2754 = vmatprep.subr.bf16.mxu0 0
        %2755 = vmatpush1.bf16.msra.mxu0 0
        %2756 = vmatprep.subr.bf16.mxu0 0
        %2757 = vmatpush1.bf16.msra.mxu0 0
        %2758 = vmatprep.subr.bf16.mxu0 0
        %2759 = vmatpush1.bf16.msra.mxu0 0
        %2760 = vmatprep.subr.bf16.mxu0 0
        %2761 = vmatpush1.bf16.msra.mxu0 0
        %2762 = vmatprep.subr.bf16.mxu0 0
        %2763 = vmatpush1.bf16.msra.mxu0 0
        %2764 = vmatprep.subr.bf16.mxu0 0
        %2765 = vmatpush1.bf16.msra.mxu0 0
        %2766 = vmatprep.subr.bf16.mxu0 0
        %2767 = vmatpush1.bf16.msra.mxu0 0
        %2768 = vmatprep.subr.bf16.mxu0 0
        %2769 = vmatpush1.bf16.msra.mxu0 0
        %2770 = vmatprep.subr.bf16.mxu0 0
        %2771 = vmatpush1.bf16.msra.mxu0 0
        %2772 = vmatprep.mubr.bf16.mxu0 0
        %2773 = vmatmul.mubr.bf16.gmra.mrb[0].mxu0 %v2738
        %v2774 = vpop.f32.mrb[0].mxu0
        %v2775 = vadd.f32 0.0, %v2774
        %v2776 = vpop.f32.mrb[0].mxu0
        %v2777 = vpop.f32.mrb[0].mxu0
        %v2778 = vadd.f32 0.0, %v2777
        %v2779 = vpop.f32.mrb[0].mxu0
        %2780 = vdwg.mxu0
        %v2782 = vsel %vm1074, %v2648, 0
        %2784 = vmatprep.subr.bf16.mxu0 0
        %2785 = vmatpush1.bf16.msra.mxu0 %v2365
        %2786 = vmatprep.subr.bf16.mxu0 0
        %2787 = vmatpush1.bf16.msra.mxu0 0
        %2788 = vmatprep.subr.bf16.mxu0 0
        %2789 = vmatpush1.bf16.msra.mxu0 0
        %2790 = vmatprep.subr.bf16.mxu0 0
        %2791 = vmatpush1.bf16.msra.mxu0 0
        %2792 = vmatprep.subr.bf16.mxu0 0
        %2793 = vmatpush1.bf16.msra.mxu0 0
        %2794 = vmatprep.subr.bf16.mxu0 0
        %2795 = vmatpush1.bf16.msra.mxu0 0
        %2796 = vmatprep.subr.bf16.mxu0 0
        %2797 = vmatpush1.bf16.msra.mxu0 0
        %2798 = vmatprep.subr.bf16.mxu0 0
        %2799 = vmatpush1.bf16.msra.mxu0 0
        %2800 = vmatprep.subr.bf16.mxu0 0
        %2801 = vmatpush1.bf16.msra.mxu0 0
        %2802 = vmatprep.subr.bf16.mxu0 0
        %2803 = vmatpush1.bf16.msra.mxu0 0
        %2804 = vmatprep.subr.bf16.mxu0 0
        %2805 = vmatpush1.bf16.msra.mxu0 0
        %2806 = vmatprep.subr.bf16.mxu0 0
        %2807 = vmatpush1.bf16.msra.mxu0 0
        %2808 = vmatprep.subr.bf16.mxu0 0
        %2809 = vmatpush1.bf16.msra.mxu0 0
        %2810 = vmatprep.subr.bf16.mxu0 0
        %2811 = vmatpush1.bf16.msra.mxu0 0
        %2812 = vmatprep.subr.bf16.mxu0 0
        %2813 = vmatpush1.bf16.msra.mxu0 0
        %2814 = vmatprep.subr.bf16.mxu0 0
        %2815 = vmatpush1.bf16.msra.mxu0 0
        %2816 = vmatprep.mubr.bf16.mxu0 0
        %2817 = vmatmul.mubr.bf16.gmra.mrb[0].mxu0 %v2782
        %v2818 = vpop.f32.mrb[0].mxu0
        %v2819 = vadd.f32 0.0, %v2818
        %v2820 = vpop.f32.mrb[0].mxu0
        %v2821 = vpop.f32.mrb[0].mxu0
        %v2822 = vadd.f32 0.0, %v2821
        %v2823 = vpop.f32.mrb[0].mxu0
        %2824 = vdwg.mxu0
        %s2825 = scalar_lea.vmem %s4, 48
        %v2826 = vld [vmem:[%s2825] sm:$0xf]
        %v2827 = vld [vmem:[%s2825 + $0x4] sm:$0xf]
        %v2828 = vld [vmem:[%s2825 + $0x8] sm:$0xf]
        %v2829 = vld [vmem:[%s2825 + $0xc] sm:$0xf]
        %s2830 = scalar_lea.vmem %s7, 3
        %v2831 = vld [vmem:[%s2830] sm:$0x1]
        %v2833 = vlaneseq
        %v2834 = vshrl.u32 %v2833, 7
        %v2835 = vsub.s32 0, %v2834
        %v2836 = vrot.slane %v2831, %v2835
        %v2842 = vunpack.c.l.b16 %v2826
        %v2843 = vunpack.c.l.b16 %v2827
        %v2844 = vunpack.c.l.b16 %v2828
        %v2845 = vunpack.c.l.b16 %v2829
        %v2846 = vpack.c.b16 %v2843, %v2842
        %v2847 = vpack.c.b16 %v2845, %v2844
        %2850 = vmatprep.subr.bf16.mxu0 0
        %2851 = vmatpush1.bf16.msra.mxu0 %v2846
        %2852 = vmatprep.subr.bf16.mxu0 0
        %2853 = vmatpush1.bf16.msra.mxu0 %v2847
        %2854 = vmatprep.subr.bf16.mxu0 0
        %2855 = vmatpush1.bf16.msra.mxu0 0
        %2856 = vmatprep.subr.bf16.mxu0 0
        %2857 = vmatpush1.bf16.msra.mxu0 0
        %2858 = vmatprep.subr.bf16.mxu0 0
        %2859 = vmatpush1.bf16.msra.mxu0 0
        %2860 = vmatprep.subr.bf16.mxu0 0
        %2861 = vmatpush1.bf16.msra.mxu0 0
        %2862 = vmatprep.subr.bf16.mxu0 0
        %2863 = vmatpush1.bf16.msra.mxu0 0
        %2864 = vmatprep.subr.bf16.mxu0 0
        %2865 = vmatpush1.bf16.msra.mxu0 0
        %2866 = vmatprep.subr.bf16.mxu0 0
        %2867 = vmatpush1.bf16.msra.mxu0 0
        %2868 = vmatprep.subr.bf16.mxu0 0
        %2869 = vmatpush1.bf16.msra.mxu0 0
        %2870 = vmatprep.subr.bf16.mxu0 0
        %2871 = vmatpush1.bf16.msra.mxu0 0
        %2872 = vmatprep.subr.bf16.mxu0 0
        %2873 = vmatpush1.bf16.msra.mxu0 0
        %2874 = vmatprep.subr.bf16.mxu0 0
        %2875 = vmatpush1.bf16.msra.mxu0 0
        %2876 = vmatprep.subr.bf16.mxu0 0
        %2877 = vmatpush1.bf16.msra.mxu0 0
        %2878 = vmatprep.subr.bf16.mxu0 0
        %2879 = vmatpush1.bf16.msra.mxu0 0
        %2880 = vmatprep.subr.bf16.mxu0 0
        %2881 = vmatpush1.bf16.msra.mxu0 0
        %2882 = vmatprep.mubr.bf16.mxu0 0
        %2883 = vmatmul.mubr.bf16.gmra.mrb[0].mxu0 %v619
        %v2884 = vpop.f32.mrb[0].mxu0
        %v2885 = vadd.f32 %v2836, %v2884
        %v2886 = vpop.f32.mrb[0].mxu0
        %v2887 = vpop.f32.mrb[0].mxu0
        %v2888 = vadd.f32 %v2836, %v2887
        %v2889 = vpop.f32.mrb[0].mxu0
        %2890 = vmatprep.mubr.bf16.mxu0 0
        %2891 = vmatmul.mubr.bf16.gmra.mrb[0].mxu0 %v622
        %v2892 = vpop.f32.mrb[0].mxu0
        %v2893 = vadd.f32 %v2836, %v2892
        %v2894 = vpop.f32.mrb[0].mxu0
        %v2895 = vpop.f32.mrb[0].mxu0
        %v2896 = vadd.f32 %v2836, %v2895
        %v2897 = vpop.f32.mrb[0].mxu0
        %2898 = vmatprep.mubr.bf16.mxu0 0
        %2899 = vmatmul.mubr.bf16.gmra.mrb[0].mxu0 %v625
        %v2900 = vpop.f32.mrb[0].mxu0
        %v2901 = vadd.f32 %v2836, %v2900
        %v2902 = vpop.f32.mrb[0].mxu0
        %v2903 = vpop.f32.mrb[0].mxu0
        %v2904 = vadd.f32 %v2836, %v2903
        %v2905 = vpop.f32.mrb[0].mxu0
        %2906 = vmatprep.mubr.bf16.mxu0 0
        %2907 = vmatmul.mubr.bf16.gmra.mrb[0].mxu0 %v628
        %v2908 = vpop.f32.mrb[0].mxu0
        %v2909 = vadd.f32 %v2836, %v2908
        %v2910 = vpop.f32.mrb[0].mxu0
        %v2911 = vpop.f32.mrb[0].mxu0
        %v2912 = vadd.f32 %v2836, %v2911
        %v2913 = vpop.f32.mrb[0].mxu0
        %2914 = vdwg.mxu0
        %s2915 = scalar_lea.vmem %s5, 48
        %v2916 = vld [vmem:[%s2915] sm:$0xf]
        %v2917 = vld [vmem:[%s2915 + $0x4] sm:$0xf]
        %v2918 = vld [vmem:[%s2915 + $0x8] sm:$0xf]
        %v2919 = vld [vmem:[%s2915 + $0xc] sm:$0xf]
        %s2920 = scalar_lea.vmem %s8, 3
        %v2921 = vld [vmem:[%s2920] sm:$0x1]
        %v2923 = vlaneseq
        %v2924 = vshrl.u32 %v2923, 7
        %v2925 = vsub.s32 0, %v2924
        %v2926 = vrot.slane %v2921, %v2925
        %v2932 = vunpack.c.l.b16 %v2916
        %v2933 = vunpack.c.l.b16 %v2917
        %v2934 = vunpack.c.l.b16 %v2918
        %v2935 = vunpack.c.l.b16 %v2919
        %v2936 = vpack.c.b16 %v2933, %v2932
        %v2937 = vpack.c.b16 %v2935, %v2934
        %2940 = vmatprep.subr.bf16.mxu0 0
        %2941 = vmatpush1.bf16.msra.mxu0 %v2936
        %2942 = vmatprep.subr.bf16.mxu0 0
        %2943 = vmatpush1.bf16.msra.mxu0 %v2937
        %2944 = vmatprep.subr.bf16.mxu0 0
        %2945 = vmatpush1.bf16.msra.mxu0 0
        %2946 = vmatprep.subr.bf16.mxu0 0
        %2947 = vmatpush1.bf16.msra.mxu0 0
        %2948 = vmatprep.subr.bf16.mxu0 0
        %2949 = vmatpush1.bf16.msra.mxu0 0
        %2950 = vmatprep.subr.bf16.mxu0 0
        %2951 = vmatpush1.bf16.msra.mxu0 0
        %2952 = vmatprep.subr.bf16.mxu0 0
        %2953 = vmatpush1.bf16.msra.mxu0 0
        %2954 = vmatprep.subr.bf16.mxu0 0
        %2955 = vmatpush1.bf16.msra.mxu0 0
        %2956 = vmatprep.subr.bf16.mxu0 0
        %2957 = vmatpush1.bf16.msra.mxu0 0
        %2958 = vmatprep.subr.bf16.mxu0 0
        %2959 = vmatpush1.bf16.msra.mxu0 0
        %2960 = vmatprep.subr.bf16.mxu0 0
        %2961 = vmatpush1.bf16.msra.mxu0 0
        %2962 = vmatprep.subr.bf16.mxu0 0
        %2963 = vmatpush1.bf16.msra.mxu0 0
        %2964 = vmatprep.subr.bf16.mxu0 0
        %2965 = vmatpush1.bf16.msra.mxu0 0
        %2966 = vmatprep.subr.bf16.mxu0 0
        %2967 = vmatpush1.bf16.msra.mxu0 0
        %2968 = vmatprep.subr.bf16.mxu0 0
        %2969 = vmatpush1.bf16.msra.mxu0 0
        %2970 = vmatprep.subr.bf16.mxu0 0
        %2971 = vmatpush1.bf16.msra.mxu0 0
        %2972 = vmatprep.mubr.bf16.mxu0 0
        %2973 = vmatmul.mubr.bf16.gmra.mrb[0].mxu0 %v619
        %v2974 = vpop.f32.mrb[0].mxu0
        %v2975 = vadd.f32 %v2926, %v2974
        %v2976 = vpop.f32.mrb[0].mxu0
        %v2977 = vpop.f32.mrb[0].mxu0
        %v2978 = vadd.f32 %v2926, %v2977
        %v2979 = vpop.f32.mrb[0].mxu0
        %2980 = vmatprep.mubr.bf16.mxu0 0
        %2981 = vmatmul.mubr.bf16.gmra.mrb[0].mxu0 %v622
        %v2982 = vpop.f32.mrb[0].mxu0
        %v2983 = vadd.f32 %v2926, %v2982
        %v2984 = vpop.f32.mrb[0].mxu0
        %v2985 = vpop.f32.mrb[0].mxu0
        %v2986 = vadd.f32 %v2926, %v2985
        %v2987 = vpop.f32.mrb[0].mxu0
        %2988 = vmatprep.mubr.bf16.mxu0 0
        %2989 = vmatmul.mubr.bf16.gmra.mrb[0].mxu0 %v625
        %v2990 = vpop.f32.mrb[0].mxu0
        %v2991 = vadd.f32 %v2926, %v2990
        %v2992 = vpop.f32.mrb[0].mxu0
        %v2993 = vpop.f32.mrb[0].mxu0
        %v2994 = vadd.f32 %v2926, %v2993
        %v2995 = vpop.f32.mrb[0].mxu0
        %2996 = vmatprep.mubr.bf16.mxu0 0
        %2997 = vmatmul.mubr.bf16.gmra.mrb[0].mxu0 %v628
        %v2998 = vpop.f32.mrb[0].mxu0
        %v2999 = vadd.f32 %v2926, %v2998
        %v3000 = vpop.f32.mrb[0].mxu0
        %v3001 = vpop.f32.mrb[0].mxu0
        %v3002 = vadd.f32 %v2926, %v3001
        %v3003 = vpop.f32.mrb[0].mxu0
        %3004 = vdwg.mxu0
        %s3005 = scalar_lea.vmem %s6, 48
        %v3006 = vld [vmem:[%s3005] sm:$0xf]
        %v3007 = vld [vmem:[%s3005 + $0x4] sm:$0xf]
        %v3008 = vld [vmem:[%s3005 + $0x8] sm:$0xf]
        %v3009 = vld [vmem:[%s3005 + $0xc] sm:$0xf]
        %s3010 = scalar_lea.vmem %s9, 3
        %v3011 = vld [vmem:[%s3010] sm:$0x1]
        %v3013 = vlaneseq
        %v3014 = vshrl.u32 %v3013, 7
        %v3015 = vsub.s32 0, %v3014
        %v3016 = vrot.slane %v3011, %v3015
        %v3022 = vunpack.c.l.b16 %v3006
        %v3023 = vunpack.c.l.b16 %v3007
        %v3024 = vunpack.c.l.b16 %v3008
        %v3025 = vunpack.c.l.b16 %v3009
        %v3026 = vpack.c.b16 %v3023, %v3022
        %v3027 = vpack.c.b16 %v3025, %v3024
        %3030 = vmatprep.subr.bf16.mxu0 0
        %3031 = vmatpush1.bf16.msra.mxu0 %v3026
        %3032 = vmatprep.subr.bf16.mxu0 0
        %3033 = vmatpush1.bf16.msra.mxu0 %v3027
        %3034 = vmatprep.subr.bf16.mxu0 0
        %3035 = vmatpush1.bf16.msra.mxu0 0
        %3036 = vmatprep.subr.bf16.mxu0 0
        %3037 = vmatpush1.bf16.msra.mxu0 0
        %3038 = vmatprep.subr.bf16.mxu0 0
        %3039 = vmatpush1.bf16.msra.mxu0 0
        %3040 = vmatprep.subr.bf16.mxu0 0
        %3041 = vmatpush1.bf16.msra.mxu0 0
        %3042 = vmatprep.subr.bf16.mxu0 0
        %3043 = vmatpush1.bf16.msra.mxu0 0
        %3044 = vmatprep.subr.bf16.mxu0 0
        %3045 = vmatpush1.bf16.msra.mxu0 0
        %3046 = vmatprep.subr.bf16.mxu0 0
        %3047 = vmatpush1.bf16.msra.mxu0 0
        %3048 = vmatprep.subr.bf16.mxu0 0
        %3049 = vmatpush1.bf16.msra.mxu0 0
        %3050 = vmatprep.subr.bf16.mxu0 0
        %3051 = vmatpush1.bf16.msra.mxu0 0
        %3052 = vmatprep.subr.bf16.mxu0 0
        %3053 = vmatpush1.bf16.msra.mxu0 0
        %3054 = vmatprep.subr.bf16.mxu0 0
        %3055 = vmatpush1.bf16.msra.mxu0 0
        %3056 = vmatprep.subr.bf16.mxu0 0
        %3057 = vmatpush1.bf16.msra.mxu0 0
        %3058 = vmatprep.subr.bf16.mxu0 0
        %3059 = vmatpush1.bf16.msra.mxu0 0
        %3060 = vmatprep.subr.bf16.mxu0 0
        %3061 = vmatpush1.bf16.msra.mxu0 0
        %3062 = vmatprep.mubr.bf16.mxu0 0
        %3063 = vmatmul.mubr.bf16.gmra.mrb[0].mxu0 %v619
        %v3064 = vpop.f32.mrb[0].mxu0
        %v3065 = vadd.f32 %v3016, %v3064
        %v3066 = vpop.f32.mrb[0].mxu0
        %v3067 = vpop.f32.mrb[0].mxu0
        %v3068 = vadd.f32 %v3016, %v3067
        %v3069 = vpop.f32.mrb[0].mxu0
        %3070 = vmatprep.mubr.bf16.mxu0 0
        %3071 = vmatmul.mubr.bf16.gmra.mrb[0].mxu0 %v622
        %v3072 = vpop.f32.mrb[0].mxu0
        %v3073 = vadd.f32 %v3016, %v3072
        %v3074 = vpop.f32.mrb[0].mxu0
        %v3075 = vpop.f32.mrb[0].mxu0
        %v3076 = vadd.f32 %v3016, %v3075
        %v3077 = vpop.f32.mrb[0].mxu0
        %3078 = vmatprep.mubr.bf16.mxu0 0
        %3079 = vmatmul.mubr.bf16.gmra.mrb[0].mxu0 %v625
        %v3080 = vpop.f32.mrb[0].mxu0
        %v3081 = vadd.f32 %v3016, %v3080
        %v3082 = vpop.f32.mrb[0].mxu0
        %v3083 = vpop.f32.mrb[0].mxu0
        %v3084 = vadd.f32 %v3016, %v3083
        %v3085 = vpop.f32.mrb[0].mxu0
        %3086 = vmatprep.mubr.bf16.mxu0 0
        %3087 = vmatmul.mubr.bf16.gmra.mrb[0].mxu0 %v628
        %v3088 = vpop.f32.mrb[0].mxu0
        %v3089 = vadd.f32 %v3016, %v3088
        %v3090 = vpop.f32.mrb[0].mxu0
        %v3091 = vpop.f32.mrb[0].mxu0
        %v3092 = vadd.f32 %v3016, %v3091
        %v3093 = vpop.f32.mrb[0].mxu0
        %3094 = vdwg.mxu0
        %v3095 = vpack.c.bf16 %v2888, %v2885
        %v3096 = vpack.c.bf16 %v2896, %v2893
        %v3097 = vpack.c.bf16 %v2904, %v2901
        %v3098 = vpack.c.bf16 %v2912, %v2909
        %v3099 = vpack.c.bf16 %v2978, %v2975
        %v3100 = vpack.c.bf16 %v2986, %v2983
        %v3101 = vpack.c.bf16 %v2994, %v2991
        %v3102 = vpack.c.bf16 %v3002, %v2999
        %v3103 = vpack.c.bf16 %v3068, %v3065
        %v3104 = vpack.c.bf16 %v3076, %v3073
        %v3105 = vpack.c.bf16 %v3084, %v3081
        %v3106 = vpack.c.bf16 %v3092, %v3089
        %s3107 = scalar_lea.vmem %s1, 48
        %v3108 = vld [vmem:[%s3107] sm:$0xff]
        %v3109 = vld [vmem:[%s3107 + $0x8] sm:$0xff]
        %v3111 = vsel %vm885, %v3095, 0
        %v3114 = vsel %vm885, %v3099, 0
        %3116 = vmatprep.subr.bf16.mxu0 0
        %3117 = vmatpush1.bf16.xpose.msra.mxu0 %v3114
        %3118 = vmatprep.subr.bf16.mxu0 0
        %3119 = vmatpush1.bf16.xpose.msra.mxu0 0
        %3120 = vmatprep.subr.bf16.mxu0 0
        %3121 = vmatpush1.bf16.xpose.msra.mxu0 0
        %3122 = vmatprep.subr.bf16.mxu0 0
        %3123 = vmatpush1.bf16.xpose.msra.mxu0 0
        %3124 = vmatprep.subr.bf16.mxu0 0
        %3125 = vmatpush1.bf16.xpose.msra.mxu0 0
        %3126 = vmatprep.subr.bf16.mxu0 0
        %3127 = vmatpush1.bf16.xpose.msra.mxu0 0
        %3128 = vmatprep.subr.bf16.mxu0 0
        %3129 = vmatpush1.bf16.xpose.msra.mxu0 0
        %3130 = vmatprep.subr.bf16.mxu0 0
        %3131 = vmatpush1.bf16.xpose.msra.mxu0 0
        %3132 = vmatprep.subr.bf16.mxu0 0
        %3133 = vmatpush1.bf16.xpose.msra.mxu0 0
        %3134 = vmatprep.subr.bf16.mxu0 0
        %3135 = vmatpush1.bf16.xpose.msra.mxu0 0
        %3136 = vmatprep.subr.bf16.mxu0 0
        %3137 = vmatpush1.bf16.xpose.msra.mxu0 0
        %3138 = vmatprep.subr.bf16.mxu0 0
        %3139 = vmatpush1.bf16.xpose.msra.mxu0 0
        %3140 = vmatprep.subr.bf16.mxu0 0
        %3141 = vmatpush1.bf16.xpose.msra.mxu0 0
        %3142 = vmatprep.subr.bf16.mxu0 0
        %3143 = vmatpush1.bf16.xpose.msra.mxu0 0
        %3144 = vmatprep.subr.bf16.mxu0 0
        %3145 = vmatpush1.bf16.xpose.msra.mxu0 0
        %3146 = vmatprep.subr.bf16.mxu0 0
        %3147 = vmatpush1.bf16.xpose.msra.mxu0 0
        %3148 = vmatprep.mubr.bf16.mxu0 0
        %3149 = vmatmul.mubr.bf16.gmra.mrb[0].mxu0 %v3111
        %v3150 = vpop.f32.mrb[0].mxu0
        %v3151 = vadd.f32 %v3108, %v3150
        %v3152 = vpop.f32.mrb[0].mxu0
        %v3153 = vpop.f32.mrb[0].mxu0
        %v3154 = vadd.f32 %v3109, %v3153
        %v3155 = vpop.f32.mrb[0].mxu0
        %3156 = vdwg.mxu0
        %v3158 = vsel %vm885, %v3096, 0
        %v3161 = vsel %vm885, %v3100, 0
        %3163 = vmatprep.subr.bf16.mxu0 0
        %3164 = vmatpush1.bf16.xpose.msra.mxu0 %v3161
        %3165 = vmatprep.subr.bf16.mxu0 0
        %3166 = vmatpush1.bf16.xpose.msra.mxu0 0
        %3167 = vmatprep.subr.bf16.mxu0 0
        %3168 = vmatpush1.bf16.xpose.msra.mxu0 0
        %3169 = vmatprep.subr.bf16.mxu0 0
        %3170 = vmatpush1.bf16.xpose.msra.mxu0 0
        %3171 = vmatprep.subr.bf16.mxu0 0
        %3172 = vmatpush1.bf16.xpose.msra.mxu0 0
        %3173 = vmatprep.subr.bf16.mxu0 0
        %3174 = vmatpush1.bf16.xpose.msra.mxu0 0
        %3175 = vmatprep.subr.bf16.mxu0 0
        %3176 = vmatpush1.bf16.xpose.msra.mxu0 0
        %3177 = vmatprep.subr.bf16.mxu0 0
        %3178 = vmatpush1.bf16.xpose.msra.mxu0 0
        %3179 = vmatprep.subr.bf16.mxu0 0
        %3180 = vmatpush1.bf16.xpose.msra.mxu0 0
        %3181 = vmatprep.subr.bf16.mxu0 0
        %3182 = vmatpush1.bf16.xpose.msra.mxu0 0
        %3183 = vmatprep.subr.bf16.mxu0 0
        %3184 = vmatpush1.bf16.xpose.msra.mxu0 0
        %3185 = vmatprep.subr.bf16.mxu0 0
        %3186 = vmatpush1.bf16.xpose.msra.mxu0 0
        %3187 = vmatprep.subr.bf16.mxu0 0
        %3188 = vmatpush1.bf16.xpose.msra.mxu0 0
        %3189 = vmatprep.subr.bf16.mxu0 0
        %3190 = vmatpush1.bf16.xpose.msra.mxu0 0
        %3191 = vmatprep.subr.bf16.mxu0 0
        %3192 = vmatpush1.bf16.xpose.msra.mxu0 0
        %3193 = vmatprep.subr.bf16.mxu0 0
        %3194 = vmatpush1.bf16.xpose.msra.mxu0 0
        %3195 = vmatprep.mubr.bf16.mxu0 0
        %3196 = vmatmul.mubr.bf16.gmra.mrb[0].mxu0 %v3158
        %v3197 = vpop.f32.mrb[0].mxu0
        %v3198 = vadd.f32 %v3108, %v3197
        %v3199 = vpop.f32.mrb[0].mxu0
        %v3200 = vpop.f32.mrb[0].mxu0
        %v3201 = vadd.f32 %v3109, %v3200
        %v3202 = vpop.f32.mrb[0].mxu0
        %3203 = vdwg.mxu0
        %v3205 = vsel %vm885, %v3097, 0
        %v3208 = vsel %vm885, %v3101, 0
        %3210 = vmatprep.subr.bf16.mxu0 0
        %3211 = vmatpush1.bf16.xpose.msra.mxu0 %v3208
        %3212 = vmatprep.subr.bf16.mxu0 0
        %3213 = vmatpush1.bf16.xpose.msra.mxu0 0
        %3214 = vmatprep.subr.bf16.mxu0 0
        %3215 = vmatpush1.bf16.xpose.msra.mxu0 0
        %3216 = vmatprep.subr.bf16.mxu0 0
        %3217 = vmatpush1.bf16.xpose.msra.mxu0 0
        %3218 = vmatprep.subr.bf16.mxu0 0
        %3219 = vmatpush1.bf16.xpose.msra.mxu0 0
        %3220 = vmatprep.subr.bf16.mxu0 0
        %3221 = vmatpush1.bf16.xpose.msra.mxu0 0
        %3222 = vmatprep.subr.bf16.mxu0 0
        %3223 = vmatpush1.bf16.xpose.msra.mxu0 0
        %3224 = vmatprep.subr.bf16.mxu0 0
        %3225 = vmatpush1.bf16.xpose.msra.mxu0 0
        %3226 = vmatprep.subr.bf16.mxu0 0
        %3227 = vmatpush1.bf16.xpose.msra.mxu0 0
        %3228 = vmatprep.subr.bf16.mxu0 0
        %3229 = vmatpush1.bf16.xpose.msra.mxu0 0
        %3230 = vmatprep.subr.bf16.mxu0 0
        %3231 = vmatpush1.bf16.xpose.msra.mxu0 0
        %3232 = vmatprep.subr.bf16.mxu0 0
        %3233 = vmatpush1.bf16.xpose.msra.mxu0 0
        %3234 = vmatprep.subr.bf16.mxu0 0
        %3235 = vmatpush1.bf16.xpose.msra.mxu0 0
        %3236 = vmatprep.subr.bf16.mxu0 0
        %3237 = vmatpush1.bf16.xpose.msra.mxu0 0
        %3238 = vmatprep.subr.bf16.mxu0 0
        %3239 = vmatpush1.bf16.xpose.msra.mxu0 0
        %3240 = vmatprep.subr.bf16.mxu0 0
        %3241 = vmatpush1.bf16.xpose.msra.mxu0 0
        %3242 = vmatprep.mubr.bf16.mxu0 0
        %3243 = vmatmul.mubr.bf16.gmra.mrb[0].mxu0 %v3205
        %v3244 = vpop.f32.mrb[0].mxu0
        %v3245 = vadd.f32 %v3108, %v3244
        %v3246 = vpop.f32.mrb[0].mxu0
        %v3247 = vpop.f32.mrb[0].mxu0
        %v3248 = vadd.f32 %v3109, %v3247
        %v3249 = vpop.f32.mrb[0].mxu0
        %3250 = vdwg.mxu0
        %v3252 = vsel %vm885, %v3098, 0
        %v3255 = vsel %vm885, %v3102, 0
        %3257 = vmatprep.subr.bf16.mxu0 0
        %3258 = vmatpush1.bf16.xpose.msra.mxu0 %v3255
        %3259 = vmatprep.subr.bf16.mxu0 0
        %3260 = vmatpush1.bf16.xpose.msra.mxu0 0
        %3261 = vmatprep.subr.bf16.mxu0 0
        %3262 = vmatpush1.bf16.xpose.msra.mxu0 0
        %3263 = vmatprep.subr.bf16.mxu0 0
        %3264 = vmatpush1.bf16.xpose.msra.mxu0 0
        %3265 = vmatprep.subr.bf16.mxu0 0
        %3266 = vmatpush1.bf16.xpose.msra.mxu0 0
        %3267 = vmatprep.subr.bf16.mxu0 0
        %3268 = vmatpush1.bf16.xpose.msra.mxu0 0
        %3269 = vmatprep.subr.bf16.mxu0 0
        %3270 = vmatpush1.bf16.xpose.msra.mxu0 0
        %3271 = vmatprep.subr.bf16.mxu0 0
        %3272 = vmatpush1.bf16.xpose.msra.mxu0 0
        %3273 = vmatprep.subr.bf16.mxu0 0
        %3274 = vmatpush1.bf16.xpose.msra.mxu0 0
        %3275 = vmatprep.subr.bf16.mxu0 0
        %3276 = vmatpush1.bf16.xpose.msra.mxu0 0
        %3277 = vmatprep.subr.bf16.mxu0 0
        %3278 = vmatpush1.bf16.xpose.msra.mxu0 0
        %3279 = vmatprep.subr.bf16.mxu0 0
        %3280 = vmatpush1.bf16.xpose.msra.mxu0 0
        %3281 = vmatprep.subr.bf16.mxu0 0
        %3282 = vmatpush1.bf16.xpose.msra.mxu0 0
        %3283 = vmatprep.subr.bf16.mxu0 0
        %3284 = vmatpush1.bf16.xpose.msra.mxu0 0
        %3285 = vmatprep.subr.bf16.mxu0 0
        %3286 = vmatpush1.bf16.xpose.msra.mxu0 0
        %3287 = vmatprep.subr.bf16.mxu0 0
        %3288 = vmatpush1.bf16.xpose.msra.mxu0 0
        %3289 = vmatprep.mubr.bf16.mxu0 0
        %3290 = vmatmul.mubr.bf16.gmra.mrb[0].mxu0 %v3252
        %v3291 = vpop.f32.mrb[0].mxu0
        %v3292 = vadd.f32 %v3108, %v3291
        %v3293 = vpop.f32.mrb[0].mxu0
        %v3294 = vpop.f32.mrb[0].mxu0
        %v3295 = vadd.f32 %v3109, %v3294
        %v3296 = vpop.f32.mrb[0].mxu0
        %3297 = vdwg.mxu0
        %v3298 = vsel %vm1074, %v3151, -inf
        %3299 = vmax.xlane.f32.xlu0 %v3298
        %v3300 = vpop.xlane.xlu0 %3299
        %v3301 = vsel %vm1074, %v3154, -inf
        %3302 = vmax.xlane.f32.xlu0 %v3301
        %v3303 = vpop.xlane.xlu0 %3302
        %v3304 = vsel %vm1074, %v3198, -inf
        %3305 = vmax.xlane.f32.xlu0 %v3304
        %v3306 = vpop.xlane.xlu0 %3305
        %v3307 = vsel %vm1074, %v3201, -inf
        %3308 = vmax.xlane.f32.xlu0 %v3307
        %v3309 = vpop.xlane.xlu0 %3308
        %v3310 = vsel %vm1074, %v3245, -inf
        %3311 = vmax.xlane.f32.xlu0 %v3310
        %v3312 = vpop.xlane.xlu0 %3311
        %v3313 = vsel %vm1074, %v3248, -inf
        %3314 = vmax.xlane.f32.xlu0 %v3313
        %v3315 = vpop.xlane.xlu0 %3314
        %v3316 = vsel %vm1074, %v3292, -inf
        %3317 = vmax.xlane.f32.xlu0 %v3316
        %v3318 = vpop.xlane.xlu0 %3317
        %v3319 = vsel %vm1074, %v3295, -inf
        %3320 = vmax.xlane.f32.xlu0 %v3319
        %v3321 = vpop.xlane.xlu0 %3320
        %v3322 = vsub.f32 %v3151, %v3300
        %v3323 = vsub.f32 %v3154, %v3303
        %v3324 = vsub.f32 %v3198, %v3306
        %v3325 = vsub.f32 %v3201, %v3309
        %v3326 = vsub.f32 %v3245, %v3312
        %v3327 = vsub.f32 %v3248, %v3315
        %v3328 = vsub.f32 %v3292, %v3318
        %v3329 = vsub.f32 %v3295, %v3321
        %v3330 = vmul.f32 %v3322, 1.442695
        %v3331 = vpow.pop %v3330
        %v3332 = vmul.f32 %v3323, 1.442695
        %v3333 = vpow.pop %v3332
        %v3334 = vmul.f32 %v3324, 1.442695
        %v3335 = vpow.pop %v3334
        %v3336 = vmul.f32 %v3325, 1.442695
        %v3337 = vpow.pop %v3336
        %v3338 = vmul.f32 %v3326, 1.442695
        %v3339 = vpow.pop %v3338
        %v3340 = vmul.f32 %v3327, 1.442695
        %v3341 = vpow.pop %v3340
        %v3342 = vmul.f32 %v3328, 1.442695
        %v3343 = vpow.pop %v3342
        %v3344 = vmul.f32 %v3329, 1.442695
        %v3345 = vpow.pop %v3344
        %v3346 = vsel %vm1074, %v3331, 0.0
        %3347 = vadd.xlane.f32.xlu0 %v3346
        %v3348 = vpop.xlane.xlu0 %3347
        %v3349 = vsel %vm1074, %v3333, 0.0
        %3350 = vadd.xlane.f32.xlu0 %v3349
        %v3351 = vpop.xlane.xlu0 %3350
        %v3352 = vsel %vm1074, %v3335, 0.0
        %3353 = vadd.xlane.f32.xlu0 %v3352
        %v3354 = vpop.xlane.xlu0 %3353
        %v3355 = vsel %vm1074, %v3337, 0.0
        %3356 = vadd.xlane.f32.xlu0 %v3355
        %v3357 = vpop.xlane.xlu0 %3356
        %v3358 = vsel %vm1074, %v3339, 0.0
        %3359 = vadd.xlane.f32.xlu0 %v3358
        %v3360 = vpop.xlane.xlu0 %3359
        %v3361 = vsel %vm1074, %v3341, 0.0
        %3362 = vadd.xlane.f32.xlu0 %v3361
        %v3363 = vpop.xlane.xlu0 %3362
        %v3364 = vsel %vm1074, %v3343, 0.0
        %3365 = vadd.xlane.f32.xlu0 %v3364
        %v3366 = vpop.xlane.xlu0 %3365
        %v3367 = vsel %vm1074, %v3345, 0.0
        %3368 = vadd.xlane.f32.xlu0 %v3367
        %v3369 = vpop.xlane.xlu0 %3368
        %v3370 = vrcp.pop %v3348
        %v3371 = vrcp.pop %v3351
        %v3372 = vrcp.pop %v3354
        %v3373 = vrcp.pop %v3357
        %v3374 = vrcp.pop %v3360
        %v3375 = vrcp.pop %v3363
        %v3376 = vrcp.pop %v3366
        %v3377 = vrcp.pop %v3369
        %v3378 = vmul.f32 %v3331, %v3370
        %v3379 = vmul.f32 %v3333, %v3371
        %v3380 = vmul.f32 %v3335, %v3372
        %v3381 = vmul.f32 %v3337, %v3373
        %v3382 = vmul.f32 %v3339, %v3374
        %v3383 = vmul.f32 %v3341, %v3375
        %v3384 = vmul.f32 %v3343, %v3376
        %v3385 = vmul.f32 %v3345, %v3377
        %v3386 = vpack.c.bf16 %v3379, %v3378
        %v3387 = vpack.c.bf16 %v3381, %v3380
        %v3388 = vpack.c.bf16 %v3383, %v3382
        %v3389 = vpack.c.bf16 %v3385, %v3384
        %v3391 = vsel %vm1074, %v3386, 0
        %3393 = vmatprep.subr.bf16.mxu0 0
        %3394 = vmatpush1.bf16.msra.mxu0 %v3103
        %3395 = vmatprep.subr.bf16.mxu0 0
        %3396 = vmatpush1.bf16.msra.mxu0 0
        %3397 = vmatprep.subr.bf16.mxu0 0
        %3398 = vmatpush1.bf16.msra.mxu0 0
        %3399 = vmatprep.subr.bf16.mxu0 0
        %3400 = vmatpush1.bf16.msra.mxu0 0
        %3401 = vmatprep.subr.bf16.mxu0 0
        %3402 = vmatpush1.bf16.msra.mxu0 0
        %3403 = vmatprep.subr.bf16.mxu0 0
        %3404 = vmatpush1.bf16.msra.mxu0 0
        %3405 = vmatprep.subr.bf16.mxu0 0
        %3406 = vmatpush1.bf16.msra.mxu0 0
        %3407 = vmatprep.subr.bf16.mxu0 0
        %3408 = vmatpush1.bf16.msra.mxu0 0
        %3409 = vmatprep.subr.bf16.mxu0 0
        %3410 = vmatpush1.bf16.msra.mxu0 0
        %3411 = vmatprep.subr.bf16.mxu0 0
        %3412 = vmatpush1.bf16.msra.mxu0 0
        %3413 = vmatprep.subr.bf16.mxu0 0
        %3414 = vmatpush1.bf16.msra.mxu0 0
        %3415 = vmatprep.subr.bf16.mxu0 0
        %3416 = vmatpush1.bf16.msra.mxu0 0
        %3417 = vmatprep.subr.bf16.mxu0 0
        %3418 = vmatpush1.bf16.msra.mxu0 0
        %3419 = vmatprep.subr.bf16.mxu0 0
        %3420 = vmatpush1.bf16.msra.mxu0 0
        %3421 = vmatprep.subr.bf16.mxu0 0
        %3422 = vmatpush1.bf16.msra.mxu0 0
        %3423 = vmatprep.subr.bf16.mxu0 0
        %3424 = vmatpush1.bf16.msra.mxu0 0
        %3425 = vmatprep.mubr.bf16.mxu0 0
        %3426 = vmatmul.mubr.bf16.gmra.mrb[0].mxu0 %v3391
        %v3427 = vpop.f32.mrb[0].mxu0
        %v3428 = vadd.f32 0.0, %v3427
        %v3429 = vpop.f32.mrb[0].mxu0
        %v3430 = vpop.f32.mrb[0].mxu0
        %v3431 = vadd.f32 0.0, %v3430
        %v3432 = vpop.f32.mrb[0].mxu0
        %3433 = vdwg.mxu0
        %v3435 = vsel %vm1074, %v3387, 0
        %3437 = vmatprep.subr.bf16.mxu0 0
        %3438 = vmatpush1.bf16.msra.mxu0 %v3104
        %3439 = vmatprep.subr.bf16.mxu0 0
        %3440 = vmatpush1.bf16.msra.mxu0 0
        %3441 = vmatprep.subr.bf16.mxu0 0
        %3442 = vmatpush1.bf16.msra.mxu0 0
        %3443 = vmatprep.subr.bf16.mxu0 0
        %3444 = vmatpush1.bf16.msra.mxu0 0
        %3445 = vmatprep.subr.bf16.mxu0 0
        %3446 = vmatpush1.bf16.msra.mxu0 0
        %3447 = vmatprep.subr.bf16.mxu0 0
        %3448 = vmatpush1.bf16.msra.mxu0 0
        %3449 = vmatprep.subr.bf16.mxu0 0
        %3450 = vmatpush1.bf16.msra.mxu0 0
        %3451 = vmatprep.subr.bf16.mxu0 0
        %3452 = vmatpush1.bf16.msra.mxu0 0
        %3453 = vmatprep.subr.bf16.mxu0 0
        %3454 = vmatpush1.bf16.msra.mxu0 0
        %3455 = vmatprep.subr.bf16.mxu0 0
        %3456 = vmatpush1.bf16.msra.mxu0 0
        %3457 = vmatprep.subr.bf16.mxu0 0
        %3458 = vmatpush1.bf16.msra.mxu0 0
        %3459 = vmatprep.subr.bf16.mxu0 0
        %3460 = vmatpush1.bf16.msra.mxu0 0
        %3461 = vmatprep.subr.bf16.mxu0 0
        %3462 = vmatpush1.bf16.msra.mxu0 0
        %3463 = vmatprep.subr.bf16.mxu0 0
        %3464 = vmatpush1.bf16.msra.mxu0 0
        %3465 = vmatprep.subr.bf16.mxu0 0
        %3466 = vmatpush1.bf16.msra.mxu0 0
        %3467 = vmatprep.subr.bf16.mxu0 0
        %3468 = vmatpush1.bf16.msra.mxu0 0
        %3469 = vmatprep.mubr.bf16.mxu0 0
        %3470 = vmatmul.mubr.bf16.gmra.mrb[0].mxu0 %v3435
        %v3471 = vpop.f32.mrb[0].mxu0
        %v3472 = vadd.f32 0.0, %v3471
        %v3473 = vpop.f32.mrb[0].mxu0
        %v3474 = vpop.f32.mrb[0].mxu0
        %v3475 = vadd.f32 0.0, %v3474
        %v3476 = vpop.f32.mrb[0].mxu0
        %3477 = vdwg.mxu0
        %v3479 = vsel %vm1074, %v3388, 0
        %3481 = vmatprep.subr.bf16.mxu0 0
        %3482 = vmatpush1.bf16.msra.mxu0 %v3105
        %3483 = vmatprep.subr.bf16.mxu0 0
        %3484 = vmatpush1.bf16.msra.mxu0 0
        %3485 = vmatprep.subr.bf16.mxu0 0
        %3486 = vmatpush1.bf16.msra.mxu0 0
        %3487 = vmatprep.subr.bf16.mxu0 0
        %3488 = vmatpush1.bf16.msra.mxu0 0
        %3489 = vmatprep.subr.bf16.mxu0 0
        %3490 = vmatpush1.bf16.msra.mxu0 0
        %3491 = vmatprep.subr.bf16.mxu0 0
        %3492 = vmatpush1.bf16.msra.mxu0 0
        %3493 = vmatprep.subr.bf16.mxu0 0
        %3494 = vmatpush1.bf16.msra.mxu0 0
        %3495 = vmatprep.subr.bf16.mxu0 0
        %3496 = vmatpush1.bf16.msra.mxu0 0
        %3497 = vmatprep.subr.bf16.mxu0 0
        %3498 = vmatpush1.bf16.msra.mxu0 0
        %3499 = vmatprep.subr.bf16.mxu0 0
        %3500 = vmatpush1.bf16.msra.mxu0 0
        %3501 = vmatprep.subr.bf16.mxu0 0
        %3502 = vmatpush1.bf16.msra.mxu0 0
        %3503 = vmatprep.subr.bf16.mxu0 0
        %3504 = vmatpush1.bf16.msra.mxu0 0
        %3505 = vmatprep.subr.bf16.mxu0 0
        %3506 = vmatpush1.bf16.msra.mxu0 0
        %3507 = vmatprep.subr.bf16.mxu0 0
        %3508 = vmatpush1.bf16.msra.mxu0 0
        %3509 = vmatprep.subr.bf16.mxu0 0
        %3510 = vmatpush1.bf16.msra.mxu0 0
        %3511 = vmatprep.subr.bf16.mxu0 0
        %3512 = vmatpush1.bf16.msra.mxu0 0
        %3513 = vmatprep.mubr.bf16.mxu0 0
        %3514 = vmatmul.mubr.bf16.gmra.mrb[0].mxu0 %v3479
        %v3515 = vpop.f32.mrb[0].mxu0
        %v3516 = vadd.f32 0.0, %v3515
        %v3517 = vpop.f32.mrb[0].mxu0
        %v3518 = vpop.f32.mrb[0].mxu0
        %v3519 = vadd.f32 0.0, %v3518
        %v3520 = vpop.f32.mrb[0].mxu0
        %3521 = vdwg.mxu0
        %v3523 = vsel %vm1074, %v3389, 0
        %3525 = vmatprep.subr.bf16.mxu0 0
        %3526 = vmatpush1.bf16.msra.mxu0 %v3106
        %3527 = vmatprep.subr.bf16.mxu0 0
        %3528 = vmatpush1.bf16.msra.mxu0 0
        %3529 = vmatprep.subr.bf16.mxu0 0
        %3530 = vmatpush1.bf16.msra.mxu0 0
        %3531 = vmatprep.subr.bf16.mxu0 0
        %3532 = vmatpush1.bf16.msra.mxu0 0
        %3533 = vmatprep.subr.bf16.mxu0 0
        %3534 = vmatpush1.bf16.msra.mxu0 0
        %3535 = vmatprep.subr.bf16.mxu0 0
        %3536 = vmatpush1.bf16.msra.mxu0 0
        %3537 = vmatprep.subr.bf16.mxu0 0
        %3538 = vmatpush1.bf16.msra.mxu0 0
        %3539 = vmatprep.subr.bf16.mxu0 0
        %3540 = vmatpush1.bf16.msra.mxu0 0
        %3541 = vmatprep.subr.bf16.mxu0 0
        %3542 = vmatpush1.bf16.msra.mxu0 0
        %3543 = vmatprep.subr.bf16.mxu0 0
        %3544 = vmatpush1.bf16.msra.mxu0 0
        %3545 = vmatprep.subr.bf16.mxu0 0
        %3546 = vmatpush1.bf16.msra.mxu0 0
        %3547 = vmatprep.subr.bf16.mxu0 0
        %3548 = vmatpush1.bf16.msra.mxu0 0
        %3549 = vmatprep.subr.bf16.mxu0 0
        %3550 = vmatpush1.bf16.msra.mxu0 0
        %3551 = vmatprep.subr.bf16.mxu0 0
        %3552 = vmatpush1.bf16.msra.mxu0 0
        %3553 = vmatprep.subr.bf16.mxu0 0
        %3554 = vmatpush1.bf16.msra.mxu0 0
        %3555 = vmatprep.subr.bf16.mxu0 0
        %3556 = vmatpush1.bf16.msra.mxu0 0
        %3557 = vmatprep.mubr.bf16.mxu0 0
        %3558 = vmatmul.mubr.bf16.gmra.mrb[0].mxu0 %v3523
        %v3559 = vpop.f32.mrb[0].mxu0
        %v3560 = vadd.f32 0.0, %v3559
        %v3561 = vpop.f32.mrb[0].mxu0
        %v3562 = vpop.f32.mrb[0].mxu0
        %v3563 = vadd.f32 0.0, %v3562
        %v3564 = vpop.f32.mrb[0].mxu0
        %3565 = vdwg.mxu0
        %3574 = vrot.lane.b32.xlu0 %v1946, 8
        %v3575 = vpop.permute.xlu0 %3574
        %3576 = vrot.lane.b32.xlu0 %v1949, 8
        %v3577 = vpop.permute.xlu0 %3576
        %3578 = vrot.lane.b32.xlu0 %v1990, 8
        %v3579 = vpop.permute.xlu0 %3578
        %3580 = vrot.lane.b32.xlu0 %v1993, 8
        %v3581 = vpop.permute.xlu0 %3580
        %3582 = vrot.lane.b32.xlu0 %v2034, 8
        %v3583 = vpop.permute.xlu0 %3582
        %3584 = vrot.lane.b32.xlu0 %v2037, 8
        %v3585 = vpop.permute.xlu0 %3584
        %3586 = vrot.lane.b32.xlu0 %v2078, 8
        %v3587 = vpop.permute.xlu0 %3586
        %3588 = vrot.lane.b32.xlu0 %v2081, 8
        %v3589 = vpop.permute.xlu0 %3588
        %3606 = vrot.lane.b32.xlu0 %v2687, 16
        %v3607 = vpop.permute.xlu0 %3606
        %3608 = vrot.lane.b32.xlu0 %v2690, 16
        %v3609 = vpop.permute.xlu0 %3608
        %3610 = vrot.lane.b32.xlu0 %v2731, 16
        %v3611 = vpop.permute.xlu0 %3610
        %3612 = vrot.lane.b32.xlu0 %v2734, 16
        %v3613 = vpop.permute.xlu0 %3612
        %3614 = vrot.lane.b32.xlu0 %v2775, 16
        %v3615 = vpop.permute.xlu0 %3614
        %3616 = vrot.lane.b32.xlu0 %v2778, 16
        %v3617 = vpop.permute.xlu0 %3616
        %3618 = vrot.lane.b32.xlu0 %v2819, 16
        %v3619 = vpop.permute.xlu0 %3618
        %3620 = vrot.lane.b32.xlu0 %v2822, 16
        %v3621 = vpop.permute.xlu0 %3620
        %3638 = vrot.lane.b32.xlu0 %v3428, 24
        %v3639 = vpop.permute.xlu0 %3638
        %3640 = vrot.lane.b32.xlu0 %v3431, 24
        %v3641 = vpop.permute.xlu0 %3640
        %3642 = vrot.lane.b32.xlu0 %v3472, 24
        %v3643 = vpop.permute.xlu0 %3642
        %3644 = vrot.lane.b32.xlu0 %v3475, 24
        %v3645 = vpop.permute.xlu0 %3644
        %3646 = vrot.lane.b32.xlu0 %v3516, 24
        %v3647 = vpop.permute.xlu0 %3646
        %3648 = vrot.lane.b32.xlu0 %v3519, 24
        %v3649 = vpop.permute.xlu0 %3648
        %3650 = vrot.lane.b32.xlu0 %v3560, 24
        %v3651 = vpop.permute.xlu0 %3650
        %3652 = vrot.lane.b32.xlu0 %v3563, 24
        %v3653 = vpop.permute.xlu0 %3652
        %v3662 = vsel %vm885, %v1205, %v3575
        %v3663 = vsel %vm885, %v1208, %v3577
        %v3664 = vsel %vm885, %v1249, %v3579
        %v3665 = vsel %vm885, %v1252, %v3581
        %v3666 = vsel %vm885, %v1293, %v3583
        %v3667 = vsel %vm885, %v1296, %v3585
        %v3668 = vsel %vm885, %v1337, %v3587
        %v3669 = vsel %vm885, %v1340, %v3589
        %v3670 = vsel %vm1074, %v3662, %v3607
        %v3671 = vsel %vm1074, %v3663, %v3609
        %v3672 = vsel %vm1074, %v3664, %v3611
        %v3673 = vsel %vm1074, %v3665, %v3613
        %v3674 = vsel %vm1074, %v3666, %v3615
        %v3675 = vsel %vm1074, %v3667, %v3617
        %v3676 = vsel %vm1074, %v3668, %v3619
        %v3677 = vsel %vm1074, %v3669, %v3621
        %vm3678 = vcmask 195584
        %v3679 = vsel %vm3678, %v3670, %v3639
        %v3680 = vsel %vm3678, %v3671, %v3641
        %v3681 = vsel %vm3678, %v3672, %v3643
        %v3682 = vsel %vm3678, %v3673, %v3645
        %v3683 = vsel %vm3678, %v3674, %v3647
        %v3684 = vsel %vm3678, %v3675, %v3649
        %v3685 = vsel %vm3678, %v3676, %v3651
        %v3686 = vsel %vm3678, %v3677, %v3653
        %v3687 = vpack.c.bf16 %v3680, %v3679
        %v3688 = vpack.c.bf16 %v3682, %v3681
        %v3689 = vpack.c.bf16 %v3684, %v3683
        %v3690 = vpack.c.bf16 %v3686, %v3685
        %v3691 = vld [vmem:[%s10] sm:$0xf]
        %v3692 = vld [vmem:[%s10 + $0x4] sm:$0xf]
        %v3693 = vld [vmem:[%s10 + $0x8] sm:$0xf]
        %v3694 = vld [vmem:[%s10 + $0xc] sm:$0xf]
        %v3695 = vld [vmem:[%s11] sm:$0x1]
        %v3697 = vlaneseq
        %v3698 = vshrl.u32 %v3697, 7
        %v3699 = vsub.s32 0, %v3698
        %v3700 = vrot.slane %v3695, %v3699
        %v3706 = vunpack.c.l.b16 %v3691
        %v3707 = vunpack.c.l.b16 %v3692
        %v3708 = vunpack.c.l.b16 %v3693
        %v3709 = vunpack.c.l.b16 %v3694
        %v3710 = vpack.c.b16 %v3707, %v3706
        %v3711 = vpack.c.b16 %v3709, %v3708
        %v3715 = vsel %vm455, %v3687, 0
        %v3718 = vsel %vm455, %v3688, 0
        %v3721 = vsel %vm455, %v3689, 0
        %v3724 = vsel %vm455, %v3690, 0
        %3726 = vmatprep.subr.bf16.mxu0 0
        %3727 = vmatpush1.bf16.msra.mxu0 %v3710
        %3728 = vmatprep.subr.bf16.mxu0 0
        %3729 = vmatpush1.bf16.msra.mxu0 %v3711
        %3730 = vmatprep.subr.bf16.mxu0 0
        %3731 = vmatpush1.bf16.msra.mxu0 0
        %3732 = vmatprep.subr.bf16.mxu0 0
        %3733 = vmatpush1.bf16.msra.mxu0 0
        %3734 = vmatprep.subr.bf16.mxu0 0
        %3735 = vmatpush1.bf16.msra.mxu0 0
        %3736 = vmatprep.subr.bf16.mxu0 0
        %3737 = vmatpush1.bf16.msra.mxu0 0
        %3738 = vmatprep.subr.bf16.mxu0 0
        %3739 = vmatpush1.bf16.msra.mxu0 0
        %3740 = vmatprep.subr.bf16.mxu0 0
        %3741 = vmatpush1.bf16.msra.mxu0 0
        %3742 = vmatprep.subr.bf16.mxu0 0
        %3743 = vmatpush1.bf16.msra.mxu0 0
        %3744 = vmatprep.subr.bf16.mxu0 0
        %3745 = vmatpush1.bf16.msra.mxu0 0
        %3746 = vmatprep.subr.bf16.mxu0 0
        %3747 = vmatpush1.bf16.msra.mxu0 0
        %3748 = vmatprep.subr.bf16.mxu0 0
        %3749 = vmatpush1.bf16.msra.mxu0 0
        %3750 = vmatprep.subr.bf16.mxu0 0
        %3751 = vmatpush1.bf16.msra.mxu0 0
        %3752 = vmatprep.subr.bf16.mxu0 0
        %3753 = vmatpush1.bf16.msra.mxu0 0
        %3754 = vmatprep.subr.bf16.mxu0 0
        %3755 = vmatpush1.bf16.msra.mxu0 0
        %3756 = vmatprep.subr.bf16.mxu0 0
        %3757 = vmatpush1.bf16.msra.mxu0 0
        %3758 = vmatprep.mubr.bf16.mxu0 0
        %3759 = vmatmul.mubr.bf16.gmra.mrb[0].mxu0 %v3715
        %v3760 = vpop.f32.mrb[0].mxu0
        %v3761 = vadd.f32 %v3700, %v3760
        %v3762 = vpop.f32.mrb[0].mxu0
        %v3763 = vpop.f32.mrb[0].mxu0
        %v3764 = vadd.f32 %v3700, %v3763
        %v3765 = vpop.f32.mrb[0].mxu0
        %3766 = vmatprep.mubr.bf16.mxu0 0
        %3767 = vmatmul.mubr.bf16.gmra.mrb[0].mxu0 %v3718
        %v3768 = vpop.f32.mrb[0].mxu0
        %v3769 = vadd.f32 %v3700, %v3768
        %v3770 = vpop.f32.mrb[0].mxu0
        %v3771 = vpop.f32.mrb[0].mxu0
        %v3772 = vadd.f32 %v3700, %v3771
        %v3773 = vpop.f32.mrb[0].mxu0
        %3774 = vmatprep.mubr.bf16.mxu0 0
        %3775 = vmatmul.mubr.bf16.gmra.mrb[0].mxu0 %v3721
        %v3776 = vpop.f32.mrb[0].mxu0
        %v3777 = vadd.f32 %v3700, %v3776
        %v3778 = vpop.f32.mrb[0].mxu0
        %v3779 = vpop.f32.mrb[0].mxu0
        %v3780 = vadd.f32 %v3700, %v3779
        %v3781 = vpop.f32.mrb[0].mxu0
        %3782 = vmatprep.mubr.bf16.mxu0 0
        %3783 = vmatmul.mubr.bf16.gmra.mrb[0].mxu0 %v3724
        %v3784 = vpop.f32.mrb[0].mxu0
        %v3785 = vadd.f32 %v3700, %v3784
        %v3786 = vpop.f32.mrb[0].mxu0
        %v3787 = vpop.f32.mrb[0].mxu0
        %v3788 = vadd.f32 %v3700, %v3787
        %v3789 = vpop.f32.mrb[0].mxu0
        %3790 = vdwg.mxu0
        %3791 = vst.msk [vmem:[%s433] sm:$0xff] %vm455, %v3761
        %3792 = vst.msk [vmem:[%s433 + $0x8] sm:$0xff] %vm455, %v3764
        %3793 = vst.msk [vmem:[%s433 + $0x10] sm:$0xff] %vm455, %v3769
        %3794 = vst.msk [vmem:[%s433 + $0x18] sm:$0xff] %vm455, %v3772
        %3795 = vst.msk [vmem:[%s433 + $0x20] sm:$0xff] %vm455, %v3777
        %3796 = vst.msk [vmem:[%s433 + $0x28] sm:$0xff] %vm455, %v3780
        %3797 = vst.msk [vmem:[%s433 + $0x30] sm:$0xff] %vm455, %v3785
        %3798 = vst.msk [vmem:[%s433 + $0x38] sm:$0xff] %vm455, %v3788
        %s3799 = sand.u32 %s307, 1
        %s3800 = scalar_lea.sflag [#allocation3], %s3799
        %s3801 = sand.u32 %s307, 1
        %s3802 = smul.addr %s3801, 64
        %s3803 = scalar_lea.vmem [#allocation2], %s3802
        // Predicated region
        $region69: #{tpu_custom_call.1} parent=67 // pred_check
          %p3804 = pneg %p317
        $region70: #{tpu_custom_call.1} parent=67 // pred_check_branch
          %3806 = sbr.rel (%p3804) target = $region72
        $region71: #{tpu_custom_call.1} parent=67 // pred_region
          %s3807 = smul.u32 4, %s31
          %s3809 = ssub.s32 1024, 1024
          %3810 = vsyncadd %s3800, %s3809
          %s3811 = smul.addr %s3807, 2
          %s3812 = smul.addr %s30, 8
          %s3813 = sadd.s32 %s3811, %s3812
          %s3814 = smul.addr %s3813, 128
          %s3815 = scalar_lea.hbm %s12, %s3814
          %s3816 = sshll.u32 %s3803, 4
          %s3817 = int_to_ptr.vmem [resolvable:$true] %s3816
          %3822 = dma.vmem_to_hbm [thread:$0]  %s3817, 1024, %s3815, %s3800, 128, 128, 8
        $region72: #{tpu_custom_call.1} parent=67 // pred_fallthru
          _
      $region68: #{tpu_custom_call.1} parent=5 // pred_fallthru
        _
      %p3823 = scmp.le.s32.totalorder 2, %s21
      // Predicated region
      $region73: #{tpu_custom_call.1} parent=5 // pred_check
        %p3824 = pneg %p3823
      $region74: #{tpu_custom_call.1} parent=5 // pred_check_branch
        %3826 = sbr.rel (%p3824) target = $region76
      $region75: #{tpu_custom_call.1} parent=5 // pred_region
        %s3827 = ssub.s32 %s21, 2
        // Predicated region
        $region77: #{tpu_custom_call.1} parent=75 // pred_check
          %p3828 = pneg %p323
        $region78: #{tpu_custom_call.1} parent=75 // pred_check_branch
          %3830 = sbr.rel (%p3828) target = $region80
        $region79: #{tpu_custom_call.1} parent=75 // pred_region
          %s3831 = sand.u32 %s308, 1
          %s3832 = scalar_lea.sflag [#allocation3], %s3831
          %s3833 = sand.u32 %s308, 1
          %s3834 = smul.addr %s3833, 64
          %s3835 = scalar_lea.vmem [#allocation2], %s3834
          %3836 = dma.done %s3832, 1024
        $region80: #{tpu_custom_call.1} parent=75 // pred_fallthru
          _
      $region76: #{tpu_custom_call.1} parent=5 // pred_fallthru
        _
    $region6: #{tpu_custom_call.1} parent=1 // loop_footer
      %s25 = sadd.s32 1, %s21
    $region7: #{tpu_custom_call.1} parent=1 // loop_footer_branch
      %20 = sbr.rel target = $region3
    $region8: #{tpu_custom_call.1} parent=1 // loop_exit
      _
    %3837 = vsyncpa [#allocation3], 1
    %s3838 = scalar_lea.sflag [#allocation3], 1
    %3839 = vsyncpa %s3838, 1

</llo_original>
